<compile_context>
chip_gen: v7x
topology: tpu7x:2x2x1
jax: 0.10.0
libtpu: 0.0.40
codegen_flags: <defaults>
</compile_context>

<pallas_src>
import functools

import jax
import jax.numpy as jnp
import numpy as np
from jax.experimental import pallas as pl
from jax.experimental.pallas import tpu as pltpu

TILE_V = 5120  # vocab tile (multiple of 128); 2 tiles for V=9775 (padded to 10240)


def _round_up(x, m):
    return ((x + m - 1) // m) * m


def _decoder_kernel(
    x_ref, h_ref, enc_ref,
    wslab_ref, bslab_ref,
    wprob_ref, bprob_ref,
    logits_ref, hnew_ref, attnw_ref,
    o_sc,
    *, woff, boff, H, O, S,
):
    # ---- prologue: attention + GRU + out projection, only on the first vocab tile ----
    @pl.when(pl.program_id(0) == 0)
    def _prologue():
        x = x_ref[...]          # (B, O)
        h = h_ref[...]          # (B, H)

        def wmat(name, rows, cols):   # static slice of the packed weight slab
            return wslab_ref[pl.ds(woff[name], rows), pl.ds(0, cols)]

        def bvec(name, cols):         # static slice of the packed bias slab
            return bslab_ref[pl.ds(boff[name], 1), pl.ds(0, cols)]

        # dropout(p=0.3) in eval mode == identity

        # pre_att: (B, O) @ (O, H)
        pre = jnp.dot(x, wmat("wpre", O, H),
                      preferred_element_type=jnp.float32) + bvec("bpre", H)

        # attn(cat(pre, h)) == pre @ Wa[:H] + h @ Wa[H:] + b ; softmax over S
        attn_logits = (
            jnp.dot(pre, wmat("wattn_pre", H, S), preferred_element_type=jnp.float32)
            + jnp.dot(h, wmat("wattn_h", H, S), preferred_element_type=jnp.float32)
            + bvec("battn", S)
        )
        m = jnp.max(attn_logits, axis=-1, keepdims=True)
        e = jnp.exp(attn_logits - m)
        inv = pl.reciprocal(jnp.sum(e, axis=-1, keepdims=True), approx=False)
        attn_w = e * inv                                          # (B, S)

        # bmm: (B, S) @ (S, H)
        attn_applied = jnp.dot(attn_w, enc_ref[...], preferred_element_type=jnp.float32)

        # attn_combine(cat(pre, attn_applied)) then ReLU
        comb = (
            jnp.dot(pre, wmat("wcomb_pre", H, H), preferred_element_type=jnp.float32)
            + jnp.dot(attn_applied, wmat("wcomb_att", H, H), preferred_element_type=jnp.float32)
            + bvec("bcomb", H)
        )
        g = jnp.maximum(comb, 0.0)                                # (B, H)

        # single-step GRU (PyTorch gate order r, z, n), per-gate (H,H) matmuls
        r = jax.nn.sigmoid(
            jnp.dot(g, wmat("wih_r", H, H), preferred_element_type=jnp.float32)
            + jnp.dot(h, wmat("whh_r", H, H), preferred_element_type=jnp.float32)
            + bvec("b_r", H)
        )
        z = jax.nn.sigmoid(
            jnp.dot(g, wmat("wih_z", H, H), preferred_element_type=jnp.float32)
            + jnp.dot(h, wmat("whh_z", H, H), preferred_element_type=jnp.float32)
            + bvec("b_z", H)
        )
        n = jnp.tanh(
            jnp.dot(g, wmat("wih_n", H, H), preferred_element_type=jnp.float32)
            + bvec("bih_n", H)
            + r * (jnp.dot(h, wmat("whh_n", H, H), preferred_element_type=jnp.float32)
                   + bvec("bhh_n", H))
        )
        hnew = (1.0 - z) * n + z * h                              # (B, H)

        # out projection (input to the big vocab matmul), kept in VMEM scratch
        o = jnp.dot(hnew, wmat("wout", H, O),
                    preferred_element_type=jnp.float32) + bvec("bout", O)

        hnew_ref[...] = hnew
        attnw_ref[...] = attn_w
        o_sc[...] = o.astype(o_sc.dtype)   # single cast; reused by every vocab tile

    # ---- per-tile vocab projection: (B, O) @ (O, TILE_V), f32 accumulation ----
    logits_ref[...] = (
        jnp.dot(o_sc[...], wprob_ref[...], preferred_element_type=jnp.float32)
        + bprob_ref[...]
    ).astype(logits_ref.dtype)


def prepare_params(params, *, tile_v=TILE_V, vocab_dtype=jnp.bfloat16):
    """One-time weight preprocessing (hoisted out of the per-token call path):
    transpose to (in, out), split concat-consuming weights, split GRU weights per gate,
    pack all small weights/biases into two lane-padded slabs, pad + cast the vocab
    projection weight."""
    H = params["w_hh"].shape[1]
    O = params["w_out"].shape[0]
    S = params["w_attn"].shape[0]
    V = params["w_probs"].shape[0]
    v_pad = _round_up(V, tile_v)
    slab_w = _round_up(max(H, S, O), 128)

    wattn = params["w_attn"].T                  # (2H, S)
    wcomb = params["w_comb"].T                  # (2H, H)
    wih, bih = params["w_ih"], params["b_ih"]   # (3H, H), (3H,)
    whh, bhh = params["w_hh"], params["b_hh"]

    mats = [
        ("wpre", params["w_pre"].T),            # (O, H)
        ("wattn_pre", wattn[:H]),               # (H, S)
        ("wattn_h", wattn[H:]),                 # (H, S)
        ("wcomb_pre", wcomb[:H]),               # (H, H)
        ("wcomb_att", wcomb[H:]),               # (H, H)
        ("wih_r", wih[0:H].T), ("whh_r", whh[0:H].T),
        ("wih_z", wih[H:2 * H].T), ("whh_z", whh[H:2 * H].T),
        ("wih_n", wih[2 * H:].T), ("whh_n", whh[2 * H:].T),
        ("wout", params["w_out"].T),            # (H, O)
    ]
    woff, blocks, rows = {}, [], 0
    for name, m in mats:
        r = _round_up(m.shape[0], 8)            # sublane-aligned block start
        woff[name] = rows
        blk = jnp.zeros((r, slab_w), jnp.float32).at[:m.shape[0], :m.shape[1]].set(m)
        blocks.append(blk)
        rows += r
    wslab = jnp.concatenate(blocks, axis=0)     # (rows, slab_w), f32 (precision-sensitive)

    biases = [
        ("bpre", params["b_pre"]),
        ("battn", params["b_attn"]),
        ("bcomb", params["b_comb"]),
        ("b_r", bih[0:H] + bhh[0:H]),
        ("b_z", bih[H:2 * H] + bhh[H:2 * H]),
        ("bih_n", bih[2 * H:]),
        ("bhh_n", bhh[2 * H:]),
        ("bout", params["b_out"]),
    ]
    boff = {}
    bslab = jnp.zeros((_round_up(len(biases), 8), slab_w), jnp.float32)
    for i, (name, v) in enumerate(biases):
        boff[name] = i
        bslab = bslab.at[i, :v.shape[0]].set(v)

    wprob = (jnp.zeros((O, v_pad), jnp.float32)
             .at[:, :V].set(params["w_probs"].T).astype(vocab_dtype))
    bprob = jnp.zeros((1, v_pad), jnp.float32).at[0, :V].set(params["b_probs"])

    return {
        "wslab": wslab, "bslab": bslab, "wprob": wprob, "bprob": bprob,
        # static metadata (python ints; keep this dict out of jit tracing)
        "_meta": dict(H=H, O=O, S=S, V=V, v_pad=v_pad, tile_v=tile_v,
                      woff=woff, boff=boff, vocab_dtype=vocab_dtype),
    }


def decoder_rnn_forward(prep, input_, hidden, encoder_outputs, *, logits_dtype=jnp.float32):
    """input_: (1,B,O), hidden: (1,B,H), encoder_outputs: (S,H).
    Returns (logits (B,V), hidden (1,B,H), attn_weights (B,S)) like the PyTorch module."""
    x = input_[0]
    h = hidden[0]
    B, O = x.shape
    H = h.shape[1]
    S = encoder_outputs.shape[0]
    meta = prep["_meta"]
    V, v_pad, tile_v = meta["V"], meta["v_pad"], meta["tile_v"]
    nt = v_pad // tile_v

    kernel = functools.partial(
        _decoder_kernel,
        woff=meta["woff"], boff=meta["boff"], H=H, O=O, S=S,
    )

    args = (x, h, encoder_outputs, prep["wslab"], prep["bslab"],
            prep["wprob"], prep["bprob"])

    def resident(a):
        # small 2-D array: whole thing stays VMEM-resident across every vocab tile
        return pl.BlockSpec(a.shape, lambda j: (0, 0))

    in_specs = [resident(a) for a in args[:5]]
    in_specs += [
        pl.BlockSpec((O, tile_v), lambda j: (0, j)),   # W_probs tile (lane-dense)
        pl.BlockSpec((1, tile_v), lambda j: (0, j)),   # b_probs tile
    ]

    logits, hnew, attn_w = pl.pallas_call(
        kernel,
        grid=(nt,),
        in_specs=in_specs,
        out_specs=(
            pl.BlockSpec((B, tile_v), lambda j: (0, j)),   # logits tile
            pl.BlockSpec((B, H), lambda j: (0, 0)),        # new hidden (resident)
            pl.BlockSpec((B, S), lambda j: (0, 0)),        # attn weights (resident)
        ),
        out_shape=(
            jax.ShapeDtypeStruct((B, V), logits_dtype),
            jax.ShapeDtypeStruct((B, H), jnp.float32),
            jax.ShapeDtypeStruct((B, S), jnp.float32),
        ),
        # `o` reused by every vocab tile, already in the vocab-weight dtype
        scratch_shapes=[pltpu.VMEM((B, O), meta["vocab_dtype"])],
        compiler_params=pltpu.CompilerParams(
            dimension_semantics=("arbitrary",),
        ),
    )(*args)

    return logits, hnew[None], attn_w


def init_params(key, hidden_size, output_size, max_length, vocab=9775):
    """Deterministic PyTorch-default-style init (uniform +- 1/sqrt(fan_in))."""
    H, O, S = hidden_size, output_size, 2 * max_length + 4
    keys = iter(jax.random.split(key, 16))

    def lin(out_f, in_f):
        k = 1.0 / np.sqrt(in_f)
        w = jax.random.uniform(next(keys), (out_f, in_f), jnp.float32, -k, k)
        b = jax.random.uniform(next(keys), (out_f,), jnp.float32, -k, k)
        return w, b

    p = {}
    p["w_attn"], p["b_attn"] = lin(S, 2 * H)          # attn
    p["w_comb"], p["b_comb"] = lin(H, 2 * H)          # attn_combine
    p["w_ih"], p["b_ih"] = lin(3 * H, H)              # GRU weight_ih_l0 / bias_ih_l0
    p["w_hh"], p["b_hh"] = lin(3 * H, H)              # GRU weight_hh_l0 / bias_hh_l0
    p["w_out"], p["b_out"] = lin(O, H)                # out
    p["w_pre"], p["b_pre"] = lin(H, O)                # pre_att
    p["w_probs"], p["b_probs"] = lin(vocab, O)        # out_probs
    return p


def ref_forward(params, input_, hidden, encoder_outputs):
    """Pure-JAX reference of the PyTorch forward (eval-mode dropout, f32 everywhere)."""
    x = input_[0]
    h = hidden[0]
    H = h.shape[1]
    pre = x @ params["w_pre"].T + params["b_pre"]
    al = jnp.concatenate([pre, h], axis=1) @ params["w_attn"].T + params["b_attn"]
    aw = jax.nn.softmax(al, axis=1)
    aa = aw @ encoder_outputs
    comb = jnp.concatenate([pre, aa], axis=1) @ params["w_comb"].T + params["b_comb"]
    g = jax.nn.relu(comb)
    gi = g @ params["w_ih"].T + params["b_ih"]
    gh = h @ params["w_hh"].T + params["b_hh"]
    r = jax.nn.sigmoid(gi[:, :H] + gh[:, :H])
    z = jax.nn.sigmoid(gi[:, H:2 * H] + gh[:, H:2 * H])
    n = jnp.tanh(gi[:, 2 * H:] + r * gh[:, 2 * H:])
    hn = (1.0 - z) * n + z * h
    o = hn @ params["w_out"].T + params["b_out"]
    logits = o @ params["w_probs"].T + params["b_probs"]
    return logits, hn[None], aw


if __name__ == "__main__":
    H, O, MAX_LEN, B = 32, 16, 8, 8
    S = 2 * MAX_LEN + 4
    V = 9775

    key = jax.random.PRNGKey(0)
    kp, kx, kh, ke = jax.random.split(key, 4)
    params = init_params(kp, H, O, MAX_LEN, vocab=V)

    input_ = jax.random.normal(kx, (1, B, O), jnp.float32)
    hidden = jax.random.normal(kh, (1, B, H), jnp.float32)
    encoder_outputs = jax.random.normal(ke, (S, H), jnp.float32)

    rl, rh, ra = ref_forward(params, input_, hidden, encoder_outputs)

    # --- f32 vocab weights + f32 logits: tight check against the pure-JAX reference ---
    prep32 = prepare_params(params, vocab_dtype=jnp.float32)
    l32, h32, a32 = decoder_rnn_forward(prep32, input_, hidden, encoder_outputs,
                                        logits_dtype=jnp.float32)
    jax.block_until_ready((l32, h32, a32))
    assert l32.shape == (B, V) and h32.shape == (1, B, H) and a32.shape == (B, S)
    assert np.allclose(np.asarray(l32), np.asarray(rl), rtol=1e-3, atol=3e-3)
    assert np.allclose(np.asarray(h32), np.asarray(rh), rtol=1e-3, atol=2e-3)
    assert np.allclose(np.asarray(a32), np.asarray(ra), rtol=1e-3, atol=2e-3)

    # --- optimized path: bf16 vocab weights + bf16 logits, f32 accumulation ---
    prep = prepare_params(params)   # vocab_dtype=bf16
    logits, hnew, attn_w = decoder_rnn_forward(prep, input_, hidden, encoder_outputs,
                                               logits_dtype=jnp.bfloat16)
    jax.block_until_ready((logits, hnew, attn_w))
    assert logits.shape == (B, V) and hnew.shape == (1, B, H) and attn_w.shape == (B, S)
    # prologue path is identical (f32) -> tight; logits tolerate bf16 weight/output quantization
    assert np.allclose(np.asarray(hnew), np.asarray(rh), rtol=1e-3, atol=2e-3)
    assert np.allclose(np.asarray(attn_w), np.asarray(ra), rtol=1e-3, atol=2e-3)
    assert np.allclose(np.asarray(logits.astype(jnp.float32)), np.asarray(rl),
                       rtol=5e-2, atol=5e-2)

    print("KERNEL_OK")
</pallas_src>

<mosaic_0001>
module attributes {stable_mosaic.version = 11 : i64} {
  func.func @_decoder_kernel(%arg0: i32, %arg1: memref<8x16xf32, #tpu.memory_space<vmem>>, %arg2: memref<8x32xf32, #tpu.memory_space<vmem>>, %arg3: memref<20x32xf32, #tpu.memory_space<vmem>>, %arg4: memref<368x128xf32, #tpu.memory_space<vmem>>, %arg5: memref<8x128xf32, #tpu.memory_space<vmem>>, %arg6: memref<16x5120xf32, #tpu.memory_space<vmem>>, %arg7: memref<1x5120xf32, #tpu.memory_space<vmem>>, %arg8: memref<8x5120xf32, #tpu.memory_space<vmem>>, %arg9: memref<8x32xf32, #tpu.memory_space<vmem>>, %arg10: memref<8x20xf32, #tpu.memory_space<vmem>>, %arg11: memref<8x16xf32, #tpu.memory_space<vmem>>) attributes {dimension_semantics = [#tpu.dimension_semantics<arbitrary>], iteration_bounds = array<i64: 2>, scalar_prefetch = 0 : i64, scratch_operands = 1 : i64, tpu.core_type = #tpu.core_type<tc>, window_params = [{pipeline_mode = #tpu.pipeline_mode<synchronous>, transform_indices = @transform_0, window_bounds = array<i64: 8, 16>}, {pipeline_mode = #tpu.pipeline_mode<synchronous>, transform_indices = @transform_1, window_bounds = array<i64: 8, 32>}, {pipeline_mode = #tpu.pipeline_mode<synchronous>, transform_indices = @transform_2, window_bounds = array<i64: 20, 32>}, {pipeline_mode = #tpu.pipeline_mode<synchronous>, transform_indices = @transform_3, window_bounds = array<i64: 368, 128>}, {pipeline_mode = #tpu.pipeline_mode<synchronous>, transform_indices = @transform_4, window_bounds = array<i64: 8, 128>}, {transform_indices = @transform_5, window_bounds = array<i64: 16, 5120>}, {transform_indices = @transform_6, window_bounds = array<i64: 1, 5120>}, {transform_indices = @transform_7, window_bounds = array<i64: 8, 5120>}, {pipeline_mode = #tpu.pipeline_mode<synchronous>, transform_indices = @transform_8, window_bounds = array<i64: 8, 32>}, {pipeline_mode = #tpu.pipeline_mode<synchronous>, transform_indices = @transform_9, window_bounds = array<i64: 8, 20>}]} {
    %c0_i32 = arith.constant 0 : i32
    %0 = arith.cmpi eq, %arg0, %c0_i32 : i32
    %1 = arith.extui %0 : i1 to i32
    %c0_i32_0 = arith.constant 0 : i32
    %2 = arith.cmpi ne, %1, %c0_i32_0 : i32
    scf.if %2 {
      %c0_8 = arith.constant 0 : index
      %c0_9 = arith.constant 0 : index
      %10 = vector.load %arg1[%c0_8, %c0_9] : memref<8x16xf32, #tpu.memory_space<vmem>>, vector<8x16xf32>
      %c0_10 = arith.constant 0 : index
      %c0_11 = arith.constant 0 : index
      %11 = vector.load %arg2[%c0_10, %c0_11] : memref<8x32xf32, #tpu.memory_space<vmem>>, vector<8x32xf32>
      %c0_12 = arith.constant 0 : index
      %c0_13 = arith.constant 0 : index
      %12 = vector.load %arg4[%c0_12, %c0_13] : memref<368x128xf32, #tpu.memory_space<vmem>>, vector<16x32xf32>
      %cst_14 = arith.constant dense<0.000000e+00> : vector<8x32xf32>
      %13 = tpu.matmul %10, %12, %cst_14 {dimension_numbers = #tpu.dot_dimension_numbers<[1], [0], [0], [1], [0, 0, 1, 1], [], []>} : vector<8x16xf32>, vector<16x32xf32>, vector<8x32xf32> -> vector<8x32xf32>
      %c0_15 = arith.constant 0 : index
      %c0_16 = arith.constant 0 : index
      %14 = vector.load %arg5[%c0_15, %c0_16] : memref<8x128xf32, #tpu.memory_space<vmem>>, vector<1x32xf32>
      %15 = vector.broadcast %14 : vector<1x32xf32> to vector<8x32xf32>
      %16 = arith.addf %13, %15 : vector<8x32xf32>
      %c16 = arith.constant 16 : index
      %c0_17 = arith.constant 0 : index
      %17 = vector.load %arg4[%c16, %c0_17] : memref<368x128xf32, #tpu.memory_space<vmem>>, vector<32x20xf32>
      %cst_18 = arith.constant dense<0.000000e+00> : vector<8x20xf32>
      %18 = tpu.matmul %16, %17, %cst_18 {dimension_numbers = #tpu.dot_dimension_numbers<[1], [0], [0], [1], [0, 0, 1, 1], [], []>} : vector<8x32xf32>, vector<32x20xf32>, vector<8x20xf32> -> vector<8x20xf32>
      %c48 = arith.constant 48 : index
      %c0_19 = arith.constant 0 : index
      %19 = vector.load %arg4[%c48, %c0_19] : memref<368x128xf32, #tpu.memory_space<vmem>>, vector<32x20xf32>
      %cst_20 = arith.constant dense<0.000000e+00> : vector<8x20xf32>
      %20 = tpu.matmul %11, %19, %cst_20 {dimension_numbers = #tpu.dot_dimension_numbers<[1], [0], [0], [1], [0, 0, 1, 1], [], []>} : vector<8x32xf32>, vector<32x20xf32>, vector<8x20xf32> -> vector<8x20xf32>
      %21 = arith.addf %18, %20 : vector<8x20xf32>
      %c1 = arith.constant 1 : index
      %c0_21 = arith.constant 0 : index
      %22 = vector.load %arg5[%c1, %c0_21] : memref<8x128xf32, #tpu.memory_space<vmem>>, vector<1x20xf32>
      %23 = vector.broadcast %22 : vector<1x20xf32> to vector<8x20xf32>
      %24 = arith.addf %21, %23 : vector<8x20xf32>
      %cst_22 = arith.constant dense<0xFF800000> : vector<8xf32>
      %25 = vector.multi_reduction <maximumf>, %24, %cst_22 [1] : vector<8x20xf32> to vector<8xf32>
      %26 = vector.shape_cast %25 : vector<8xf32> to vector<8x1xf32>
      %27 = vector.broadcast %26 : vector<8x1xf32> to vector<8x20xf32>
      %28 = arith.subf %24, %27 : vector<8x20xf32>
      %29 = math.exp %28 : vector<8x20xf32>
      %cst_23 = arith.constant dense<0.000000e+00> : vector<8xf32>
      %30 = vector.multi_reduction <add>, %29, %cst_23 [1] : vector<8x20xf32> to vector<8xf32>
      %31 = vector.shape_cast %30 : vector<8xf32> to vector<8x1xf32>
      %32 = tpu.reciprocal %31 : vector<8x1xf32> -> vector<8x1xf32>
      %33 = vector.broadcast %32 : vector<8x1xf32> to vector<8x20xf32>
      %34 = arith.mulf %29, %33 : vector<8x20xf32>
      %c0_24 = arith.constant 0 : index
      %c0_25 = arith.constant 0 : index
      %35 = vector.load %arg3[%c0_24, %c0_25] : memref<20x32xf32, #tpu.memory_space<vmem>>, vector<20x32xf32>
      %cst_26 = arith.constant dense<0.000000e+00> : vector<8x32xf32>
      %36 = tpu.matmul %34, %35, %cst_26 {dimension_numbers = #tpu.dot_dimension_numbers<[1], [0], [0], [1], [0, 0, 1, 1], [], []>} : vector<8x20xf32>, vector<20x32xf32>, vector<8x32xf32> -> vector<8x32xf32>
      %c80 = arith.constant 80 : index
      %c0_27 = arith.constant 0 : index
      %37 = vector.load %arg4[%c80, %c0_27] : memref<368x128xf32, #tpu.memory_space<vmem>>, vector<32x32xf32>
      %cst_28 = arith.constant dense<0.000000e+00> : vector<8x32xf32>
      %38 = tpu.matmul %16, %37, %cst_28 {dimension_numbers = #tpu.dot_dimension_numbers<[1], [0], [0], [1], [0, 0, 1, 1], [], []>} : vector<8x32xf32>, vector<32x32xf32>, vector<8x32xf32> -> vector<8x32xf32>
      %c112 = arith.constant 112 : index
      %c0_29 = arith.constant 0 : index
      %39 = vector.load %arg4[%c112, %c0_29] : memref<368x128xf32, #tpu.memory_space<vmem>>, vector<32x32xf32>
      %cst_30 = arith.constant dense<0.000000e+00> : vector<8x32xf32>
      %40 = tpu.matmul %36, %39, %cst_30 {dimension_numbers = #tpu.dot_dimension_numbers<[1], [0], [0], [1], [0, 0, 1, 1], [], []>} : vector<8x32xf32>, vector<32x32xf32>, vector<8x32xf32> -> vector<8x32xf32>
      %41 = arith.addf %38, %40 : vector<8x32xf32>
      %c2 = arith.constant 2 : index
      %c0_31 = arith.constant 0 : index
      %42 = vector.load %arg5[%c2, %c0_31] : memref<8x128xf32, #tpu.memory_space<vmem>>, vector<1x32xf32>
      %43 = vector.broadcast %42 : vector<1x32xf32> to vector<8x32xf32>
      %44 = arith.addf %41, %43 : vector<8x32xf32>
      %cst_32 = arith.constant 0.000000e+00 : f32
      %45 = vector.broadcast %cst_32 : f32 to vector<8x32xf32>
      %46 = arith.maximumf %44, %45 : vector<8x32xf32>
      %c144 = arith.constant 144 : index
      %c0_33 = arith.constant 0 : index
      %47 = vector.load %arg4[%c144, %c0_33] : memref<368x128xf32, #tpu.memory_space<vmem>>, vector<32x32xf32>
      %cst_34 = arith.constant dense<0.000000e+00> : vector<8x32xf32>
      %48 = tpu.matmul %46, %47, %cst_34 {dimension_numbers = #tpu.dot_dimension_numbers<[1], [0], [0], [1], [0, 0, 1, 1], [], []>} : vector<8x32xf32>, vector<32x32xf32>, vector<8x32xf32> -> vector<8x32xf32>
      %c176 = arith.constant 176 : index
      %c0_35 = arith.constant 0 : index
      %49 = vector.load %arg4[%c176, %c0_35] : memref<368x128xf32, #tpu.memory_space<vmem>>, vector<32x32xf32>
      %cst_36 = arith.constant dense<0.000000e+00> : vector<8x32xf32>
      %50 = tpu.matmul %11, %49, %cst_36 {dimension_numbers = #tpu.dot_dimension_numbers<[1], [0], [0], [1], [0, 0, 1, 1], [], []>} : vector<8x32xf32>, vector<32x32xf32>, vector<8x32xf32> -> vector<8x32xf32>
      %51 = arith.addf %48, %50 : vector<8x32xf32>
      %c3 = arith.constant 3 : index
      %c0_37 = arith.constant 0 : index
      %52 = vector.load %arg5[%c3, %c0_37] : memref<8x128xf32, #tpu.memory_space<vmem>>, vector<1x32xf32>
      %53 = vector.broadcast %52 : vector<1x32xf32> to vector<8x32xf32>
      %54 = arith.addf %51, %53 : vector<8x32xf32>
      %55 = arith.negf %54 : vector<8x32xf32>
      %56 = math.exp %55 : vector<8x32xf32>
      %cst_38 = arith.constant 1.000000e+00 : f32
      %57 = vector.broadcast %cst_38 : f32 to vector<8x32xf32>
      %58 = arith.addf %57, %56 : vector<8x32xf32>
      %59 = arith.divf %57, %58 : vector<8x32xf32>
      %c208 = arith.constant 208 : index
      %c0_39 = arith.constant 0 : index
      %60 = vector.load %arg4[%c208, %c0_39] : memref<368x128xf32, #tpu.memory_space<vmem>>, vector<32x32xf32>
      %cst_40 = arith.constant dense<0.000000e+00> : vector<8x32xf32>
      %61 = tpu.matmul %46, %60, %cst_40 {dimension_numbers = #tpu.dot_dimension_numbers<[1], [0], [0], [1], [0, 0, 1, 1], [], []>} : vector<8x32xf32>, vector<32x32xf32>, vector<8x32xf32> -> vector<8x32xf32>
      %c240 = arith.constant 240 : index
      %c0_41 = arith.constant 0 : index
      %62 = vector.load %arg4[%c240, %c0_41] : memref<368x128xf32, #tpu.memory_space<vmem>>, vector<32x32xf32>
      %cst_42 = arith.constant dense<0.000000e+00> : vector<8x32xf32>
      %63 = tpu.matmul %11, %62, %cst_42 {dimension_numbers = #tpu.dot_dimension_numbers<[1], [0], [0], [1], [0, 0, 1, 1], [], []>} : vector<8x32xf32>, vector<32x32xf32>, vector<8x32xf32> -> vector<8x32xf32>
      %64 = arith.addf %61, %63 : vector<8x32xf32>
      %c4 = arith.constant 4 : index
      %c0_43 = arith.constant 0 : index
      %65 = vector.load %arg5[%c4, %c0_43] : memref<8x128xf32, #tpu.memory_space<vmem>>, vector<1x32xf32>
      %66 = vector.broadcast %65 : vector<1x32xf32> to vector<8x32xf32>
      %67 = arith.addf %64, %66 : vector<8x32xf32>
      %68 = arith.negf %67 : vector<8x32xf32>
      %69 = math.exp %68 : vector<8x32xf32>
      %cst_44 = arith.constant 1.000000e+00 : f32
      %70 = vector.broadcast %cst_44 : f32 to vector<8x32xf32>
      %71 = arith.addf %70, %69 : vector<8x32xf32>
      %72 = arith.divf %70, %71 : vector<8x32xf32>
      %c272 = arith.constant 272 : index
      %c0_45 = arith.constant 0 : index
      %73 = vector.load %arg4[%c272, %c0_45] : memref<368x128xf32, #tpu.memory_space<vmem>>, vector<32x32xf32>
      %cst_46 = arith.constant dense<0.000000e+00> : vector<8x32xf32>
      %74 = tpu.matmul %46, %73, %cst_46 {dimension_numbers = #tpu.dot_dimension_numbers<[1], [0], [0], [1], [0, 0, 1, 1], [], []>} : vector<8x32xf32>, vector<32x32xf32>, vector<8x32xf32> -> vector<8x32xf32>
      %c5 = arith.constant 5 : index
      %c0_47 = arith.constant 0 : index
      %75 = vector.load %arg5[%c5, %c0_47] : memref<8x128xf32, #tpu.memory_space<vmem>>, vector<1x32xf32>
      %76 = vector.broadcast %75 : vector<1x32xf32> to vector<8x32xf32>
      %77 = arith.addf %74, %76 : vector<8x32xf32>
      %c304 = arith.constant 304 : index
      %c0_48 = arith.constant 0 : index
      %78 = vector.load %arg4[%c304, %c0_48] : memref<368x128xf32, #tpu.memory_space<vmem>>, vector<32x32xf32>
      %cst_49 = arith.constant dense<0.000000e+00> : vector<8x32xf32>
      %79 = tpu.matmul %11, %78, %cst_49 {dimension_numbers = #tpu.dot_dimension_numbers<[1], [0], [0], [1], [0, 0, 1, 1], [], []>} : vector<8x32xf32>, vector<32x32xf32>, vector<8x32xf32> -> vector<8x32xf32>
      %c6 = arith.constant 6 : index
      %c0_50 = arith.constant 0 : index
      %80 = vector.load %arg5[%c6, %c0_50] : memref<8x128xf32, #tpu.memory_space<vmem>>, vector<1x32xf32>
      %81 = vector.broadcast %80 : vector<1x32xf32> to vector<8x32xf32>
      %82 = arith.addf %79, %81 : vector<8x32xf32>
      %83 = arith.mulf %59, %82 : vector<8x32xf32>
      %84 = arith.addf %77, %83 : vector<8x32xf32>
      %85 = math.tanh %84 : vector<8x32xf32>
      %cst_51 = arith.constant 1.000000e+00 : f32
      %86 = vector.broadcast %cst_51 : f32 to vector<8x32xf32>
      %87 = arith.subf %86, %72 : vector<8x32xf32>
      %88 = arith.mulf %87, %85 : vector<8x32xf32>
      %89 = arith.mulf %72, %11 : vector<8x32xf32>
      %90 = arith.addf %88, %89 : vector<8x32xf32>
      %c336 = arith.constant 336 : index
      %c0_52 = arith.constant 0 : index
      %91 = vector.load %arg4[%c336, %c0_52] : memref<368x128xf32, #tpu.memory_space<vmem>>, vector<32x16xf32>
      %cst_53 = arith.constant dense<0.000000e+00> : vector<8x16xf32>
      %92 = tpu.matmul %90, %91, %cst_53 {dimension_numbers = #tpu.dot_dimension_numbers<[1], [0], [0], [1], [0, 0, 1, 1], [], []>} : vector<8x32xf32>, vector<32x16xf32>, vector<8x16xf32> -> vector<8x16xf32>
      %c7 = arith.constant 7 : index
      %c0_54 = arith.constant 0 : index
      %93 = vector.load %arg5[%c7, %c0_54] : memref<8x128xf32, #tpu.memory_space<vmem>>, vector<1x16xf32>
      %94 = vector.broadcast %93 : vector<1x16xf32> to vector<8x16xf32>
      %95 = arith.addf %92, %94 : vector<8x16xf32>
      %c0_55 = arith.constant 0 : index
      %c0_56 = arith.constant 0 : index
      %96 = vector.load %arg9[%c0_55, %c0_56] : memref<8x32xf32, #tpu.memory_space<vmem>>, vector<8x32xf32>
      tpu.vector_store %arg9[%c0_55, %c0_56], %90 {strides = array<i32>} : memref<8x32xf32, #tpu.memory_space<vmem>>, vector<8x32xf32>,
      %c0_57 = arith.constant 0 : index
      %c0_58 = arith.constant 0 : index
      %97 = vector.load %arg10[%c0_57, %c0_58] : memref<8x20xf32, #tpu.memory_space<vmem>>, vector<8x20xf32>
      tpu.vector_store %arg10[%c0_57, %c0_58], %34 {strides = array<i32>} : memref<8x20xf32, #tpu.memory_space<vmem>>, vector<8x20xf32>,
      %c0_59 = arith.constant 0 : index
      %c0_60 = arith.constant 0 : index
      %98 = vector.load %arg11[%c0_59, %c0_60] : memref<8x16xf32, #tpu.memory_space<vmem>>, vector<8x16xf32>
      tpu.vector_store %arg11[%c0_59, %c0_60], %95 {strides = array<i32>} : memref<8x16xf32, #tpu.memory_space<vmem>>, vector<8x16xf32>,
    } else {
    }
    %c0 = arith.constant 0 : index
    %c0_1 = arith.constant 0 : index
    %3 = vector.load %arg11[%c0, %c0_1] : memref<8x16xf32, #tpu.memory_space<vmem>>, vector<8x16xf32>
    %c0_2 = arith.constant 0 : index
    %c0_3 = arith.constant 0 : index
    %4 = vector.load %arg6[%c0_2, %c0_3] : memref<16x5120xf32, #tpu.memory_space<vmem>>, vector<16x5120xf32>
    %cst = arith.constant dense<0.000000e+00> : vector<8x5120xf32>
    %5 = tpu.matmul %3, %4, %cst {dimension_numbers = #tpu.dot_dimension_numbers<[1], [0], [0], [1], [0, 0, 1, 1], [], []>} : vector<8x16xf32>, vector<16x5120xf32>, vector<8x5120xf32> -> vector<8x5120xf32>
    %c0_4 = arith.constant 0 : index
    %c0_5 = arith.constant 0 : index
    %6 = vector.load %arg7[%c0_4, %c0_5] : memref<1x5120xf32, #tpu.memory_space<vmem>>, vector<1x5120xf32>
    %7 = vector.broadcast %6 : vector<1x5120xf32> to vector<8x5120xf32>
    %8 = arith.addf %5, %7 : vector<8x5120xf32>
    %c0_6 = arith.constant 0 : index
    %c0_7 = arith.constant 0 : index
    %9 = vector.load %arg8[%c0_6, %c0_7] : memref<8x5120xf32, #tpu.memory_space<vmem>>, vector<8x5120xf32>
    tpu.vector_store %arg8[%c0_6, %c0_7], %8 {strides = array<i32>} : memref<8x5120xf32, #tpu.memory_space<vmem>>, vector<8x5120xf32>,
    return
  }
  func.func @transform_0(%arg0: i32) -> (i32, i32) {
    %c0_i32 = arith.constant 0 : i32
    %c0_i32_0 = arith.constant 0 : i32
    %c0_i32_1 = arith.constant 0 : i32
    return %c0_i32, %c0_i32_0 : i32, i32
  }
  func.func @transform_1(%arg0: i32) -> (i32, i32) {
    %c0_i32 = arith.constant 0 : i32
    %c0_i32_0 = arith.constant 0 : i32
    %c0_i32_1 = arith.constant 0 : i32
    return %c0_i32, %c0_i32_0 : i32, i32
  }
  func.func @transform_2(%arg0: i32) -> (i32, i32) {
    %c0_i32 = arith.constant 0 : i32
    %c0_i32_0 = arith.constant 0 : i32
    %c0_i32_1 = arith.constant 0 : i32
    return %c0_i32, %c0_i32_0 : i32, i32
  }
  func.func @transform_3(%arg0: i32) -> (i32, i32) {
    %c0_i32 = arith.constant 0 : i32
    %c0_i32_0 = arith.constant 0 : i32
    %c0_i32_1 = arith.constant 0 : i32
    return %c0_i32, %c0_i32_0 : i32, i32
  }
  func.func @transform_4(%arg0: i32) -> (i32, i32) {
    %c0_i32 = arith.constant 0 : i32
    %c0_i32_0 = arith.constant 0 : i32
    %c0_i32_1 = arith.constant 0 : i32
    return %c0_i32, %c0_i32_0 : i32, i32
  }
  func.func @transform_5(%arg0: i32) -> (i32, i32) {
    %c0_i32 = arith.constant 0 : i32
    %c0_i32_0 = arith.constant 0 : i32
    return %c0_i32, %arg0 : i32, i32
  }
  func.func @transform_6(%arg0: i32) -> (i32, i32) {
    %c0_i32 = arith.constant 0 : i32
    %c0_i32_0 = arith.constant 0 : i32
    return %c0_i32, %arg0 : i32, i32
  }
  func.func @transform_7(%arg0: i32) -> (i32, i32) {
    %c0_i32 = arith.constant 0 : i32
    %c0_i32_0 = arith.constant 0 : i32
    return %c0_i32, %arg0 : i32, i32
  }
  func.func @transform_8(%arg0: i32) -> (i32, i32) {
    %c0_i32 = arith.constant 0 : i32
    %c0_i32_0 = arith.constant 0 : i32
    %c0_i32_1 = arith.constant 0 : i32
    return %c0_i32, %c0_i32_0 : i32, i32
  }
  func.func @transform_9(%arg0: i32) -> (i32, i32) {
    %c0_i32 = arith.constant 0 : i32
    %c0_i32_0 = arith.constant 0 : i32
    %c0_i32_1 = arith.constant 0 : i32
    return %c0_i32, %c0_i32_0 : i32, i32
  }
}

</mosaic_0001>

<llo_original>
// kernel: tpu_custom_call.1
$region0: #{tpu_custom_call.1}
  #allocation0 [shape = 'u32[]', space=smem, size = 0x4, offset = 0x4, fixed_abs, tag = 'smem constant byte address 0x4 - core index']
  #allocation1 [shape = 'u32[144,128]{1,0:T(1,128)}', space=vmem, size = 0x12000, scoped, tag = 'internal scratch']
  #allocation2 [shape = 'f32[8,16]{1,0:T(8,128)}', space=vmem, size = 0x1000, scoped, tag = 'scratch operand']
  %s0 = inlined_call_operand.hbm [shape: f32[8,16], index: 0, kind: input, shape index: {}]
  %s1 = inlined_call_operand.hbm [shape: f32[8,32], index: 1, kind: input, shape index: {}]
  %s2 = inlined_call_operand.hbm [shape: f32[20,32], index: 2, kind: input, shape index: {}]
  %s3 = inlined_call_operand.hbm [shape: f32[368,128], index: 3, kind: input, shape index: {}]
  %s4 = inlined_call_operand.vmem [shape: f32[8,128], index: 4, kind: input, shape index: {}]
  %s5 = inlined_call_operand.hbm [shape: f32[16,10240], index: 5, kind: input, shape index: {}]
  %s6 = inlined_call_operand.hbm [shape: f32[1,10240], index: 6, kind: input, shape index: {}]
  %s7 = inlined_call_operand.hbm [shape: f32[8,9775], index: 7, kind: output, shape index: {0}]
  %s8 = inlined_call_operand.hbm [shape: f32[8,32], index: 8, kind: output, shape index: {1}]
  %s9 = inlined_call_operand.hbm [shape: f32[8,20], index: 9, kind: output, shape index: {2}]
  %10 = xla_tuple %s7, %s8, %s9
  %s11 = sld [smem:[#allocation0]]
  $region105: #{tpu_custom_call.1} parent=0
    _
  %s13 = ssub.s32 1, %s11
  %s14 = scalar_select 0, %s13, %s11
  $region1: #{tpu_custom_call.1} parent=0
    #allocation3 [shape = 'u8[4096]{0}', space=vmem, size = 0x1000, scoped, tag = 'input window, operand 0, single buffered']
    #allocation4 [shape = 's32[2]{0}', space=sflag, size = 0x8, scoped, tag = 'scoped memory for tpu_custom_call.1']
    #allocation5 [shape = 's32[2]{0}', space=sflag, size = 0x8, scoped, tag = 'scoped memory for tpu_custom_call.1']
    #allocation6 [shape = 'u8[4096]{0}', space=vmem, size = 0x1000, scoped, tag = 'input window, operand 1, single buffered']
    #allocation7 [shape = 's32[1]{0}', space=sflag, size = 0x4, scoped, tag = 'scoped memory for tpu_custom_call.1']
    #allocation8 [shape = 'u8[12288]{0}', space=vmem, size = 0x3000, scoped, tag = 'input window, operand 2, single buffered']
    #allocation9 [shape = 'u8[188416]{0}', space=vmem, size = 0x2e000, scoped, tag = 'input window, operand 3, single buffered']
    #allocation10 [shape = 's32[1]{0}', space=sflag, size = 0x4, scoped, tag = 'scoped memory for tpu_custom_call.1']
    #allocation11 [shape = 'u8[655360]{0}', space=vmem, size = 0xa0000, scoped, tag = 'input window, operand 5']
    #allocation12 [shape = 'u8[40960]{0}', space=vmem, size = 0xa000, scoped, tag = 'input window, operand 6']
    #allocation13 [shape = 'u8[327680]{0}', space=vmem, size = 0x50000, scoped, tag = 'output window, operand 0']
    #allocation14 [shape = 'u8[4096]{0}', space=vmem, size = 0x1000, scoped, tag = 'output window, operand 1, single buffered']
    #allocation15 [shape = 's32[1]{0}', space=sflag, size = 0x4, scoped, tag = 'scoped memory for tpu_custom_call.1']
    #allocation16 [shape = 'u8[4096]{0}', space=vmem, size = 0x1000, scoped, tag = 'output window, operand 2, single buffered']
    %15 = vsyncpa [#allocation4], 0
    %16 = vsyncpa [#allocation7], 0
    %17 = vsyncpa [#allocation10], 0
    %18 = vsyncpa [#allocation5], 0
    %s19 = scalar_lea.sflag [#allocation5], 1
    %20 = vsyncpa %s19, 0
    %21 = vsyncpa [#allocation15], 0
    loop: start=0, step=1, limit=4
    $region2: #{tpu_custom_call.1} parent=1 // loop_pre_header
      _
    $region3: #{tpu_custom_call.1} parent=1 // loop_header
      %s23 = sphi 0, %s27
      %p24 = scmp.ge.s32.totalorder %s23, 4
      %s31 = sphi 0, %s31
      %s33 = sphi 0, %s31
      %s34 = sphi 0, %s33
      %s48 = sphi 0, %s34
      %s52 = sphi 0, %s52
      %s54 = sphi 0, %s52
      %s55 = sphi 0, %s54
      %s69 = sphi 0, %s55
      %s73 = sphi 0, %s73
      %s75 = sphi 0, %s73
      %s76 = sphi 0, %s75
      %s90 = sphi 0, %s76
      %s94 = sphi 0, %s94
      %s96 = sphi 0, %s94
      %s97 = sphi 0, %s96
      %s111 = sphi 0, %s97
      %s115 = sphi 0, %s115
      %s117 = sphi 0, %s115
      %s118 = sphi 0, %s117
      %s132 = sphi 0, %s118
      %s138 = sphi 0, %s140
      %s141 = sphi 0, %s138
      %s142 = sphi 0, %s141
      %s158 = sphi 0, %s142
      %s164 = sphi 0, %s166
      %s167 = sphi 0, %s164
      %s168 = sphi 0, %s167
      %s184 = sphi 0, %s168
      %s190 = sphi 0, %s192
      %s193 = sphi 0, %s190
      %s194 = sphi 0, %s193
      %s210 = sphi 0, %s194
      %s214 = sphi 0, %s214
      %s216 = sphi 0, %s214
      %s217 = sphi 0, %s216
      %s231 = sphi 0, %s217
      %s235 = sphi 0, %s235
      %s237 = sphi 0, %s235
      %s238 = sphi 0, %s237
      %s252 = sphi 0, %s238
    $region4: #{tpu_custom_call.1} parent=1 // loop_header_branch
      %26 = sbr.rel (%p24) target = $region8
    $region5: #{tpu_custom_call.1} parent=1 // loop_body
      %s28 = ssub.s32 %s23, 1
      %s29 = ssub.s32 %s23, 2
      %s30 = sadd.s32 %s23, 1
      %s32 = sadd.s32 %s31, 1
      %p35 = scmp.eq.s32.totalorder %s23, 1
      %p36 = scmp.ne.s32.totalorder %s31, %s33
      %p37 = scmp.eq.s32.totalorder %s23, 0
      %p38 = por %p36, %p37
      %p39 = scmp.ne.s32.totalorder %s31, %s33
      %p40 = scmp.eq.s32.totalorder %s28, 1
      %p41 = por %p39, %p40
      %p42 = scmp.ne.s32.totalorder %s33, %s34
      %p43 = scmp.eq.s32.totalorder %s28, 0
      %p44 = por %p42, %p43
      %p45 = scmp.ne.s32.totalorder %s33, %s34
      %p46 = scmp.eq.s32.totalorder %s29, 1
      %p47 = por %p45, %p46
      %p49 = scmp.ne.s32.totalorder %s34, %s48
      %p50 = scmp.eq.s32.totalorder %s29, 0
      %p51 = por %p49, %p50
      %s53 = sadd.s32 %s52, 1
      %p56 = scmp.eq.s32.totalorder %s23, 1
      %p57 = scmp.ne.s32.totalorder %s52, %s54
      %p58 = scmp.eq.s32.totalorder %s23, 0
      %p59 = por %p57, %p58
      %p60 = scmp.ne.s32.totalorder %s52, %s54
      %p61 = scmp.eq.s32.totalorder %s28, 1
      %p62 = por %p60, %p61
      %p63 = scmp.ne.s32.totalorder %s54, %s55
      %p64 = scmp.eq.s32.totalorder %s28, 0
      %p65 = por %p63, %p64
      %p66 = scmp.ne.s32.totalorder %s54, %s55
      %p67 = scmp.eq.s32.totalorder %s29, 1
      %p68 = por %p66, %p67
      %p70 = scmp.ne.s32.totalorder %s55, %s69
      %p71 = scmp.eq.s32.totalorder %s29, 0
      %p72 = por %p70, %p71
      %s74 = sadd.s32 %s73, 1
      %p77 = scmp.eq.s32.totalorder %s23, 1
      %p78 = scmp.ne.s32.totalorder %s73, %s75
      %p79 = scmp.eq.s32.totalorder %s23, 0
      %p80 = por %p78, %p79
      %p81 = scmp.ne.s32.totalorder %s73, %s75
      %p82 = scmp.eq.s32.totalorder %s28, 1
      %p83 = por %p81, %p82
      %p84 = scmp.ne.s32.totalorder %s75, %s76
      %p85 = scmp.eq.s32.totalorder %s28, 0
      %p86 = por %p84, %p85
      %p87 = scmp.ne.s32.totalorder %s75, %s76
      %p88 = scmp.eq.s32.totalorder %s29, 1
      %p89 = por %p87, %p88
      %p91 = scmp.ne.s32.totalorder %s76, %s90
      %p92 = scmp.eq.s32.totalorder %s29, 0
      %p93 = por %p91, %p92
      %s95 = sadd.s32 %s94, 1
      %p98 = scmp.eq.s32.totalorder %s23, 1
      %p99 = scmp.ne.s32.totalorder %s94, %s96
      %p100 = scmp.eq.s32.totalorder %s23, 0
      %p101 = por %p99, %p100
      %p102 = scmp.ne.s32.totalorder %s94, %s96
      %p103 = scmp.eq.s32.totalorder %s28, 1
      %p104 = por %p102, %p103
      %p105 = scmp.ne.s32.totalorder %s96, %s97
      %p106 = scmp.eq.s32.totalorder %s28, 0
      %p107 = por %p105, %p106
      %p108 = scmp.ne.s32.totalorder %s96, %s97
      %p109 = scmp.eq.s32.totalorder %s29, 1
      %p110 = por %p108, %p109
      %p112 = scmp.ne.s32.totalorder %s97, %s111
      %p113 = scmp.eq.s32.totalorder %s29, 0
      %p114 = por %p112, %p113
      %s116 = sadd.s32 %s115, 1
      %p119 = scmp.eq.s32.totalorder %s23, 1
      %p120 = scmp.ne.s32.totalorder %s115, %s117
      %p121 = scmp.eq.s32.totalorder %s23, 0
      %p122 = por %p120, %p121
      %p123 = scmp.ne.s32.totalorder %s115, %s117
      %p124 = scmp.eq.s32.totalorder %s28, 1
      %p125 = por %p123, %p124
      %p126 = scmp.ne.s32.totalorder %s117, %s118
      %p127 = scmp.eq.s32.totalorder %s28, 0
      %p128 = por %p126, %p127
      %p129 = scmp.ne.s32.totalorder %s117, %s118
      %p130 = scmp.eq.s32.totalorder %s29, 1
      %p131 = por %p129, %p130
      %p133 = scmp.ne.s32.totalorder %s118, %s132
      %p134 = scmp.eq.s32.totalorder %s29, 0
      %p135 = por %p133, %p134
      %s136 = ssub.s32 %s23, %s30
      %p137 = scmp.eq.s32.totalorder %s136, 0
      %s139 = sadd.s32 %s138, 1
      %s140 = scalar_select %p137, %s138, %s139
      %p143 = pneg %p137
      %p144 = scmp.eq.s32.totalorder %s23, 1
      %p145 = por %p143, %p144
      %p146 = scmp.ne.s32.totalorder %s138, %s141
      %p147 = scmp.eq.s32.totalorder %s23, 0
      %p148 = por %p146, %p147
      %p149 = scmp.ne.s32.totalorder %s138, %s141
      %p150 = scmp.eq.s32.totalorder %s28, 1
      %p151 = por %p149, %p150
      %p152 = scmp.ne.s32.totalorder %s141, %s142
      %p153 = scmp.eq.s32.totalorder %s28, 0
      %p154 = por %p152, %p153
      %p155 = scmp.ne.s32.totalorder %s141, %s142
      %p156 = scmp.eq.s32.totalorder %s29, 1
      %p157 = por %p155, %p156
      %p159 = scmp.ne.s32.totalorder %s142, %s158
      %p160 = scmp.eq.s32.totalorder %s29, 0
      %p161 = por %p159, %p160
      %s162 = ssub.s32 %s23, %s30
      %p163 = scmp.eq.s32.totalorder %s162, 0
      %s165 = sadd.s32 %s164, 1
      %s166 = scalar_select %p163, %s164, %s165
      %p169 = pneg %p163
      %p170 = scmp.eq.s32.totalorder %s23, 1
      %p171 = por %p169, %p170
      %p172 = scmp.ne.s32.totalorder %s164, %s167
      %p173 = scmp.eq.s32.totalorder %s23, 0
      %p174 = por %p172, %p173
      %p175 = scmp.ne.s32.totalorder %s164, %s167
      %p176 = scmp.eq.s32.totalorder %s28, 1
      %p177 = por %p175, %p176
      %p178 = scmp.ne.s32.totalorder %s167, %s168
      %p179 = scmp.eq.s32.totalorder %s28, 0
      %p180 = por %p178, %p179
      %p181 = scmp.ne.s32.totalorder %s167, %s168
      %p182 = scmp.eq.s32.totalorder %s29, 1
      %p183 = por %p181, %p182
      %p185 = scmp.ne.s32.totalorder %s168, %s184
      %p186 = scmp.eq.s32.totalorder %s29, 0
      %p187 = por %p185, %p186
      %s188 = ssub.s32 %s23, %s30
      %p189 = scmp.eq.s32.totalorder %s188, 0
      %s191 = sadd.s32 %s190, 1
      %s192 = scalar_select %p189, %s190, %s191
      %p195 = pneg %p189
      %p196 = scmp.eq.s32.totalorder %s23, 1
      %p197 = por %p195, %p196
      %p198 = scmp.ne.s32.totalorder %s190, %s193
      %p199 = scmp.eq.s32.totalorder %s23, 0
      %p200 = por %p198, %p199
      %p201 = scmp.ne.s32.totalorder %s190, %s193
      %p202 = scmp.eq.s32.totalorder %s28, 1
      %p203 = por %p201, %p202
      %p204 = scmp.ne.s32.totalorder %s193, %s194
      %p205 = scmp.eq.s32.totalorder %s28, 0
      %p206 = por %p204, %p205
      %p207 = scmp.ne.s32.totalorder %s193, %s194
      %p208 = scmp.eq.s32.totalorder %s29, 1
      %p209 = por %p207, %p208
      %p211 = scmp.ne.s32.totalorder %s194, %s210
      %p212 = scmp.eq.s32.totalorder %s29, 0
      %p213 = por %p211, %p212
      %s215 = sadd.s32 %s214, 1
      %p218 = scmp.eq.s32.totalorder %s23, 1
      %p219 = scmp.ne.s32.totalorder %s214, %s216
      %p220 = scmp.eq.s32.totalorder %s23, 0
      %p221 = por %p219, %p220
      %p222 = scmp.ne.s32.totalorder %s214, %s216
      %p223 = scmp.eq.s32.totalorder %s28, 1
      %p224 = por %p222, %p223
      %p225 = scmp.ne.s32.totalorder %s216, %s217
      %p226 = scmp.eq.s32.totalorder %s28, 0
      %p227 = por %p225, %p226
      %p228 = scmp.ne.s32.totalorder %s216, %s217
      %p229 = scmp.eq.s32.totalorder %s29, 1
      %p230 = por %p228, %p229
      %p232 = scmp.ne.s32.totalorder %s217, %s231
      %p233 = scmp.eq.s32.totalorder %s29, 0
      %p234 = por %p232, %p233
      %s236 = sadd.s32 %s235, 1
      %p239 = scmp.eq.s32.totalorder %s23, 1
      %p240 = scmp.ne.s32.totalorder %s235, %s237
      %p241 = scmp.eq.s32.totalorder %s23, 0
      %p242 = por %p240, %p241
      %p243 = scmp.ne.s32.totalorder %s235, %s237
      %p244 = scmp.eq.s32.totalorder %s28, 1
      %p245 = por %p243, %p244
      %p246 = scmp.ne.s32.totalorder %s237, %s238
      %p247 = scmp.eq.s32.totalorder %s28, 0
      %p248 = por %p246, %p247
      %p249 = scmp.ne.s32.totalorder %s237, %s238
      %p250 = scmp.eq.s32.totalorder %s29, 1
      %p251 = por %p249, %p250
      %p253 = scmp.ne.s32.totalorder %s238, %s252
      %p254 = scmp.eq.s32.totalorder %s29, 0
      %p255 = por %p253, %p254
      %p256 = scmp.le.s32.totalorder 1, %s23
      %p257 = scmp.lt.s32.totalorder %s23, 3
      %p258 = pnand %p256, %p257
      %p259 = pneg %p258
      // Predicated region
      $region9: #{tpu_custom_call.1} parent=5 // pred_check
        _
      $region10: #{tpu_custom_call.1} parent=5 // pred_check_branch
        %261 = sbr.rel (%p258) target = $region12
      $region11: #{tpu_custom_call.1} parent=5 // pred_region
        %s262 = ssub.s32 %s23, 1
        // Predicated region
        $region13: #{tpu_custom_call.1} parent=11 // pred_check
          %p263 = pneg %p44
        $region14: #{tpu_custom_call.1} parent=11 // pred_check_branch
          %265 = sbr.rel (%p263) target = $region16
        $region15: #{tpu_custom_call.1} parent=11 // pred_region
          %s267 = ssub.s32 128, 128
          %268 = vsyncadd [#allocation4], %s267
          %s270 = sshll.u32 [#allocation3], 4
          %s271 = int_to_ptr.vmem [resolvable:$true] %s270
          %273 = dma.hbm_to_vmem [thread:$0]  %s0, 128, %s271, [#allocation4]
        $region16: #{tpu_custom_call.1} parent=11 // pred_fallthru
          _
        // Predicated region
        $region17: #{tpu_custom_call.1} parent=11 // pred_check
          %p274 = pneg %p65
        $region18: #{tpu_custom_call.1} parent=11 // pred_check_branch
          %276 = sbr.rel (%p274) target = $region20
        $region19: #{tpu_custom_call.1} parent=11 // pred_region
          %s278 = ssub.s32 128, 128
          %279 = vsyncadd [#allocation7], %s278
          %s281 = sshll.u32 [#allocation6], 4
          %s282 = int_to_ptr.vmem [resolvable:$true] %s281
          %284 = dma.hbm_to_vmem [thread:$0]  %s1, 128, %s282, [#allocation7]
        $region20: #{tpu_custom_call.1} parent=11 // pred_fallthru
          _
        // Predicated region
        $region21: #{tpu_custom_call.1} parent=11 // pred_check
          %p285 = pneg %p86
        $region22: #{tpu_custom_call.1} parent=11 // pred_check_branch
          %287 = sbr.rel (%p285) target = $region24
        $region23: #{tpu_custom_call.1} parent=11 // pred_region
          %s289 = ssub.s32 384, 384
          %290 = vsyncadd [#allocation7], %s289
          %s291 = sshll.u32 [#allocation8], 4
          %s292 = int_to_ptr.vmem [resolvable:$true] %s291
          %297 = dma.hbm_to_vmem [thread:$0]  %s2, 384, %s292, [#allocation7], 128, 128, 8
        $region24: #{tpu_custom_call.1} parent=11 // pred_fallthru
          _
        // Predicated region
        $region25: #{tpu_custom_call.1} parent=11 // pred_check
          %p298 = pneg %p107
        $region26: #{tpu_custom_call.1} parent=11 // pred_check_branch
          %300 = sbr.rel (%p298) target = $region28
        $region27: #{tpu_custom_call.1} parent=11 // pred_region
          %s302 = ssub.s32 5888, 5888
          %303 = vsyncadd [#allocation10], %s302
          %s304 = sshll.u32 [#allocation9], 4
          %s305 = int_to_ptr.vmem [resolvable:$true] %s304
          %310 = dma.hbm_to_vmem [thread:$0]  %s3, 5888, %s305, [#allocation10], 128, 128, 8
        $region28: #{tpu_custom_call.1} parent=11 // pred_fallthru
          _
        // Predicated region
        $region29: #{tpu_custom_call.1} parent=11 // pred_check
          %p311 = pneg %p128
        $region30: #{tpu_custom_call.1} parent=11 // pred_check_branch
          %313 = sbr.rel (%p311) target = $region32
        $region31: #{tpu_custom_call.1} parent=11 // pred_region
          _
        $region32: #{tpu_custom_call.1} parent=11 // pred_fallthru
          _
      $region12: #{tpu_custom_call.1} parent=5 // pred_fallthru
        _
      %p314 = scmp.lt.s32.totalorder %s23, 2
      // Predicated region
      $region33: #{tpu_custom_call.1} parent=5 // pred_check
        %p315 = pneg %p314
      $region34: #{tpu_custom_call.1} parent=5 // pred_check_branch
        %317 = sbr.rel (%p315) target = $region36
      $region35: #{tpu_custom_call.1} parent=5 // pred_region
        // Predicated region
        $region37: #{tpu_custom_call.1} parent=35 // pred_check
          %p318 = pneg %p148
        $region38: #{tpu_custom_call.1} parent=35 // pred_check_branch
          %320 = sbr.rel (%p318) target = $region40
        $region39: #{tpu_custom_call.1} parent=35 // pred_region
          %s321 = sand.u32 %s23, 1
          %s322 = scalar_lea.sflag [#allocation4], %s321
          %s323 = sand.u32 %s138, 1
          %s324 = smul.addr %s323, 640
          %s325 = scalar_lea.vmem [#allocation11], %s324
          %s326 = smul.u32 40, %s23
          %s328 = ssub.s32 10240, 10240
          %329 = vsyncadd %s322, %s328
          %s330 = smul.addr %s326, 128
          %s331 = scalar_lea.hbm %s5, %s330
          %s332 = sshll.u32 %s325, 4
          %s333 = int_to_ptr.vmem [resolvable:$true] %s332
          %338 = dma.hbm_to_vmem [thread:$0]  %s331, 10240, %s333, %s322, 10240, 5120, 320
        $region40: #{tpu_custom_call.1} parent=35 // pred_fallthru
          _
        // Predicated region
        $region41: #{tpu_custom_call.1} parent=35 // pred_check
          %p339 = pneg %p174
        $region42: #{tpu_custom_call.1} parent=35 // pred_check_branch
          %341 = sbr.rel (%p339) target = $region44
        $region43: #{tpu_custom_call.1} parent=35 // pred_region
          %s342 = sand.u32 %s23, 1
          %s343 = scalar_lea.sflag [#allocation4], %s342
          %s344 = sand.u32 %s164, 1
          %s345 = smul.addr %s344, 40
          %s346 = scalar_lea.vmem [#allocation12], %s345
          %s347 = smul.u32 40, %s23
          %s349 = ssub.s32 640, 640
          %350 = vsyncadd %s343, %s349
          %s351 = smul.addr %s347, 16
          %s352 = scalar_lea.hbm %s6, %s351
          %s354 = sshll.u32 %s346, 4
          %s355 = int_to_ptr.vmem [resolvable:$true] %s354
          %357 = dma.hbm_to_vmem [thread:$0]  %s352, 640, %s355, %s343
        $region44: #{tpu_custom_call.1} parent=35 // pred_fallthru
          _
      $region36: #{tpu_custom_call.1} parent=5 // pred_fallthru
        _
      %p358 = scmp.le.s32.totalorder 1, %s23
      %p359 = scmp.lt.s32.totalorder %s23, 3
      %p360 = pnand %p358, %p359
      %p361 = pneg %p360
      // Predicated region
      $region45: #{tpu_custom_call.1} parent=5 // pred_check
        _
      $region46: #{tpu_custom_call.1} parent=5 // pred_check_branch
        %363 = sbr.rel (%p360) target = $region48
      $region47: #{tpu_custom_call.1} parent=5 // pred_region
        %s364 = ssub.s32 %s23, 1
        // Predicated region
        $region49: #{tpu_custom_call.1} parent=47 // pred_check
          %p365 = pneg %p44
        $region50: #{tpu_custom_call.1} parent=47 // pred_check_branch
          %367 = sbr.rel (%p365) target = $region52
        $region51: #{tpu_custom_call.1} parent=47 // pred_region
          %368 = dma.done [#allocation4], 128
        $region52: #{tpu_custom_call.1} parent=47 // pred_fallthru
          _
        // Predicated region
        $region53: #{tpu_custom_call.1} parent=47 // pred_check
          %p369 = pneg %p65
        $region54: #{tpu_custom_call.1} parent=47 // pred_check_branch
          %371 = sbr.rel (%p369) target = $region56
        $region55: #{tpu_custom_call.1} parent=47 // pred_region
          %372 = dma.done [#allocation7], 128
        $region56: #{tpu_custom_call.1} parent=47 // pred_fallthru
          _
        // Predicated region
        $region57: #{tpu_custom_call.1} parent=47 // pred_check
          %p373 = pneg %p86
        $region58: #{tpu_custom_call.1} parent=47 // pred_check_branch
          %375 = sbr.rel (%p373) target = $region60
        $region59: #{tpu_custom_call.1} parent=47 // pred_region
          %376 = dma.done [#allocation7], 384
        $region60: #{tpu_custom_call.1} parent=47 // pred_fallthru
          _
        // Predicated region
        $region61: #{tpu_custom_call.1} parent=47 // pred_check
          %p377 = pneg %p107
        $region62: #{tpu_custom_call.1} parent=47 // pred_check_branch
          %379 = sbr.rel (%p377) target = $region64
        $region63: #{tpu_custom_call.1} parent=47 // pred_region
          %380 = dma.done [#allocation10], 5888
        $region64: #{tpu_custom_call.1} parent=47 // pred_fallthru
          _
        %s381 = sand.u32 %s28, 1
        %s382 = scalar_lea.sflag [#allocation4], %s381
        %s383 = sand.u32 %s141, 1
        %s384 = smul.addr %s383, 640
        %s385 = scalar_lea.vmem [#allocation11], %s384
        // Predicated region
        $region65: #{tpu_custom_call.1} parent=47 // pred_check
          %p386 = pneg %p154
        $region66: #{tpu_custom_call.1} parent=47 // pred_check_branch
          %388 = sbr.rel (%p386) target = $region68
        $region67: #{tpu_custom_call.1} parent=47 // pred_region
          %389 = dma.done %s382, 10240
        $region68: #{tpu_custom_call.1} parent=47 // pred_fallthru
          _
        %s390 = sand.u32 %s28, 1
        %s391 = scalar_lea.sflag [#allocation4], %s390
        %s392 = sand.u32 %s167, 1
        %s393 = smul.addr %s392, 40
        %s394 = scalar_lea.vmem [#allocation12], %s393
        // Predicated region
        $region69: #{tpu_custom_call.1} parent=47 // pred_check
          %p395 = pneg %p180
        $region70: #{tpu_custom_call.1} parent=47 // pred_check_branch
          %397 = sbr.rel (%p395) target = $region72
        $region71: #{tpu_custom_call.1} parent=47 // pred_region
          %398 = dma.done %s391, 640
        $region72: #{tpu_custom_call.1} parent=47 // pred_fallthru
          _
        %p399 = pneg %p44
        %p400 = pneg %p41
        %p401 = pneg %p65
        %p402 = pneg %p62
        %p403 = pneg %p86
        %p404 = pneg %p83
        %p405 = pneg %p107
        %p406 = pneg %p104
        %p407 = pneg %p128
        %p408 = pneg %p125
        %s409 = sand.u32 %s28, 1
        %s410 = scalar_lea.sflag [#allocation4], %s409
        %s411 = sand.u32 %s141, 1
        %s412 = smul.addr %s411, 640
        %s413 = scalar_lea.vmem [#allocation11], %s412
        %p414 = pneg %p154
        %p415 = pneg %p151
        %s416 = sand.u32 %s28, 1
        %s417 = scalar_lea.sflag [#allocation4], %s416
        %s418 = sand.u32 %s167, 1
        %s419 = smul.addr %s418, 40
        %s420 = scalar_lea.vmem [#allocation12], %s419
        %p421 = pneg %p180
        %p422 = pneg %p177
        %p423 = pneg %p206
        %p424 = pneg %p203
        %s425 = sand.u32 %s193, 1
        %s426 = scalar_lea.sflag [#allocation5], %s425
        %s427 = sand.u32 %s193, 1
        %s428 = smul.addr %s427, 320
        %s429 = scalar_lea.vmem [#allocation13], %s428
        %p430 = pneg %p227
        %p431 = pneg %p224
        %p432 = pneg %p248
        %p433 = pneg %p245
        %s434 = smul.u32 40, %s28
        %s435 = smul.u32 40, %s28
        %s436 = smul.u32 40, %s28
        %s437 = ssub.s32 77, %s436
        %p438 = scmp.lt.s32.totalorder %s437, 40
        %s439 = scalar_select %p438, %s437, 40
        %s440 = smul.u32 128, %s439
        %p441 = scmp.eq.s32.totalorder %s28, 0
        // Predicated region
        $region73: #{tpu_custom_call.1} parent=47 // pred_check
          %p442 = pneg %p441
        $region74: #{tpu_custom_call.1} parent=47 // pred_check_branch
          %444 = sbr.rel (%p442) target = $region76
        $region75: #{tpu_custom_call.1} parent=47 // pred_region
          %v445 = vld [vmem:[#allocation3] sm:$0xff]
          %v446 = vld [vmem:[#allocation6] sm:$0xff]
          %v447 = vld [vmem:[#allocation9] sm:$0xff]
          %v448 = vld [vmem:[#allocation9 + $0x8] sm:$0xff]
          %v449 = vld [vmem:[%s4] sm:$0x1]
          %v450 = vlaneseq
          %v451 = vshrl.u32 %v450, 7
          %v452 = vsub.s32 0, %v451
          %v453 = vrot.slane %v449, %v452
          %vm454 = vcmask 130048
          %v456 = vsel %vm454, %v445, 0
          %458 = vmatprep.subr.mxu0 0.0
          %459 = vmatpush1.msra.mxu0 %v447
          %460 = vmatprep.subr.mxu0 0.0
          %461 = vmatpush1.msra.mxu0 %v448
          %462 = vmatprep.subr.mxu0 0.0
          %463 = vmatpush1.msra.mxu0 0.0
          %464 = vmatprep.subr.mxu0 0.0
          %465 = vmatpush1.msra.mxu0 0.0
          %466 = vmatprep.subr.mxu0 0.0
          %467 = vmatpush1.msra.mxu0 0.0
          %468 = vmatprep.subr.mxu0 0.0
          %469 = vmatpush1.msra.mxu0 0.0
          %470 = vmatprep.subr.mxu0 0.0
          %471 = vmatpush1.msra.mxu0 0.0
          %472 = vmatprep.subr.mxu0 0.0
          %473 = vmatpush1.msra.mxu0 0.0
          %474 = vmatprep.subr.mxu0 0.0
          %475 = vmatpush1.msra.mxu0 0.0
          %476 = vmatprep.subr.mxu0 0.0
          %477 = vmatpush1.msra.mxu0 0.0
          %478 = vmatprep.subr.mxu0 0.0
          %479 = vmatpush1.msra.mxu0 0.0
          %480 = vmatprep.subr.mxu0 0.0
          %481 = vmatpush1.msra.mxu0 0.0
          %482 = vmatprep.subr.mxu0 0.0
          %483 = vmatpush1.msra.mxu0 0.0
          %484 = vmatprep.subr.mxu0 0.0
          %485 = vmatpush1.msra.mxu0 0.0
          %486 = vmatprep.subr.mxu0 0.0
          %487 = vmatpush1.msra.mxu0 0.0
          %488 = vmatprep.subr.mxu0 0.0
          %489 = vmatpush1.msra.mxu0 0.0
          %490 = vmatprep.subr.mxu0 0.0
          %491 = vmatpush1.msra.mxu0 0.0
          %492 = vmatprep.subr.mxu0 0.0
          %493 = vmatpush1.msra.mxu0 0.0
          %494 = vmatprep.subr.mxu0 0.0
          %495 = vmatpush1.msra.mxu0 0.0
          %496 = vmatprep.subr.mxu0 0.0
          %497 = vmatpush1.msra.mxu0 0.0
          %498 = vmatprep.subr.mxu0 0.0
          %499 = vmatpush1.msra.mxu0 0.0
          %500 = vmatprep.subr.mxu0 0.0
          %501 = vmatpush1.msra.mxu0 0.0
          %502 = vmatprep.subr.mxu0 0.0
          %503 = vmatpush1.msra.mxu0 0.0
          %504 = vmatprep.subr.mxu0 0.0
          %505 = vmatpush1.msra.mxu0 0.0
          %506 = vmatprep.subr.mxu0 0.0
          %507 = vmatpush1.msra.mxu0 0.0
          %508 = vmatprep.subr.mxu0 0.0
          %509 = vmatpush1.msra.mxu0 0.0
          %510 = vmatprep.subr.mxu0 0.0
          %511 = vmatpush1.msra.mxu0 0.0
          %512 = vmatprep.subr.mxu0 0.0
          %513 = vmatpush1.msra.mxu0 0.0
          %514 = vmatprep.subr.mxu0 0.0
          %515 = vmatpush1.msra.mxu0 0.0
          %516 = vmatprep.subr.mxu0 0.0
          %517 = vmatpush1.msra.mxu0 0.0
          %518 = vmatprep.subr.mxu0 0.0
          %519 = vmatpush1.msra.mxu0 0.0
          %520 = vmatprep.subr.mxu0 0.0
          %521 = vmatpush1.msra.mxu0 0.0
          %522 = vmatprep.mubr.f32.mxu0 0.0
          %523 = vmatmul.mubr.f32.gmra.mrb[0].mxu0 %v456
          %v524 = vpop.f32.mrb[0].mxu0
          %v525 = vadd.f32 %v453, %v524
          %v526 = vpop.f32.mrb[0].mxu0
          %527 = vdwg.mxu0
          %v528 = vld [vmem:[#allocation9 + $0x10] sm:$0xff]
          %v529 = vld [vmem:[#allocation9 + $0x18] sm:$0xff]
          %v530 = vld [vmem:[#allocation9 + $0x20] sm:$0xff]
          %v531 = vld [vmem:[#allocation9 + $0x28] sm:$0xff]
          %v532 = vld [vmem:[#allocation9 + $0x30] sm:$0xff]
          %v533 = vld [vmem:[#allocation9 + $0x38] sm:$0xff]
          %v534 = vld [vmem:[#allocation9 + $0x40] sm:$0xff]
          %v535 = vld [vmem:[#allocation9 + $0x48] sm:$0xff]
          %vm536 = vcmask 261120
          %v538 = vsel %vm536, %v446, 0
          %540 = vmatprep.subr.mxu0 0.0
          %541 = vmatpush1.msra.mxu0 %v532
          %542 = vmatprep.subr.mxu0 0.0
          %543 = vmatpush1.msra.mxu0 %v533
          %544 = vmatprep.subr.mxu0 0.0
          %545 = vmatpush1.msra.mxu0 %v534
          %546 = vmatprep.subr.mxu0 0.0
          %547 = vmatpush1.msra.mxu0 %v535
          %548 = vmatprep.subr.mxu0 0.0
          %549 = vmatpush1.msra.mxu0 0.0
          %550 = vmatprep.subr.mxu0 0.0
          %551 = vmatpush1.msra.mxu0 0.0
          %552 = vmatprep.subr.mxu0 0.0
          %553 = vmatpush1.msra.mxu0 0.0
          %554 = vmatprep.subr.mxu0 0.0
          %555 = vmatpush1.msra.mxu0 0.0
          %556 = vmatprep.subr.mxu0 0.0
          %557 = vmatpush1.msra.mxu0 0.0
          %558 = vmatprep.subr.mxu0 0.0
          %559 = vmatpush1.msra.mxu0 0.0
          %560 = vmatprep.subr.mxu0 0.0
          %561 = vmatpush1.msra.mxu0 0.0
          %562 = vmatprep.subr.mxu0 0.0
          %563 = vmatpush1.msra.mxu0 0.0
          %564 = vmatprep.subr.mxu0 0.0
          %565 = vmatpush1.msra.mxu0 0.0
          %566 = vmatprep.subr.mxu0 0.0
          %567 = vmatpush1.msra.mxu0 0.0
          %568 = vmatprep.subr.mxu0 0.0
          %569 = vmatpush1.msra.mxu0 0.0
          %570 = vmatprep.subr.mxu0 0.0
          %571 = vmatpush1.msra.mxu0 0.0
          %572 = vmatprep.subr.mxu0 0.0
          %573 = vmatpush1.msra.mxu0 0.0
          %574 = vmatprep.subr.mxu0 0.0
          %575 = vmatpush1.msra.mxu0 0.0
          %576 = vmatprep.subr.mxu0 0.0
          %577 = vmatpush1.msra.mxu0 0.0
          %578 = vmatprep.subr.mxu0 0.0
          %579 = vmatpush1.msra.mxu0 0.0
          %580 = vmatprep.subr.mxu0 0.0
          %581 = vmatpush1.msra.mxu0 0.0
          %582 = vmatprep.subr.mxu0 0.0
          %583 = vmatpush1.msra.mxu0 0.0
          %584 = vmatprep.subr.mxu0 0.0
          %585 = vmatpush1.msra.mxu0 0.0
          %586 = vmatprep.subr.mxu0 0.0
          %587 = vmatpush1.msra.mxu0 0.0
          %588 = vmatprep.subr.mxu0 0.0
          %589 = vmatpush1.msra.mxu0 0.0
          %590 = vmatprep.subr.mxu0 0.0
          %591 = vmatpush1.msra.mxu0 0.0
          %592 = vmatprep.subr.mxu0 0.0
          %593 = vmatpush1.msra.mxu0 0.0
          %594 = vmatprep.subr.mxu0 0.0
          %595 = vmatpush1.msra.mxu0 0.0
          %596 = vmatprep.subr.mxu0 0.0
          %597 = vmatpush1.msra.mxu0 0.0
          %598 = vmatprep.subr.mxu0 0.0
          %599 = vmatpush1.msra.mxu0 0.0
          %600 = vmatprep.subr.mxu0 0.0
          %601 = vmatpush1.msra.mxu0 0.0
          %602 = vmatprep.subr.mxu0 0.0
          %603 = vmatpush1.msra.mxu0 0.0
          %604 = vmatprep.mubr.f32.mxu0 0.0
          %605 = vmatmul.mubr.f32.gmra.mrb[0].mxu0 %v538
          %v606 = vpop.f32.mrb[0].mxu0
          %v607 = vadd.f32 0.0, %v606
          %v608 = vpop.f32.mrb[0].mxu0
          %609 = vdwg.mxu0
          %v611 = vsel %vm536, %v525, 0
          %613 = vmatprep.subr.mxu0 0.0
          %614 = vmatpush1.msra.mxu0 %v528
          %615 = vmatprep.subr.mxu0 0.0
          %616 = vmatpush1.msra.mxu0 %v529
          %617 = vmatprep.subr.mxu0 0.0
          %618 = vmatpush1.msra.mxu0 %v530
          %619 = vmatprep.subr.mxu0 0.0
          %620 = vmatpush1.msra.mxu0 %v531
          %621 = vmatprep.subr.mxu0 0.0
          %622 = vmatpush1.msra.mxu0 0.0
          %623 = vmatprep.subr.mxu0 0.0
          %624 = vmatpush1.msra.mxu0 0.0
          %625 = vmatprep.subr.mxu0 0.0
          %626 = vmatpush1.msra.mxu0 0.0
          %627 = vmatprep.subr.mxu0 0.0
          %628 = vmatpush1.msra.mxu0 0.0
          %629 = vmatprep.subr.mxu0 0.0
          %630 = vmatpush1.msra.mxu0 0.0
          %631 = vmatprep.subr.mxu0 0.0
          %632 = vmatpush1.msra.mxu0 0.0
          %633 = vmatprep.subr.mxu0 0.0
          %634 = vmatpush1.msra.mxu0 0.0
          %635 = vmatprep.subr.mxu0 0.0
          %636 = vmatpush1.msra.mxu0 0.0
          %637 = vmatprep.subr.mxu0 0.0
          %638 = vmatpush1.msra.mxu0 0.0
          %639 = vmatprep.subr.mxu0 0.0
          %640 = vmatpush1.msra.mxu0 0.0
          %641 = vmatprep.subr.mxu0 0.0
          %642 = vmatpush1.msra.mxu0 0.0
          %643 = vmatprep.subr.mxu0 0.0
          %644 = vmatpush1.msra.mxu0 0.0
          %645 = vmatprep.subr.mxu0 0.0
          %646 = vmatpush1.msra.mxu0 0.0
          %647 = vmatprep.subr.mxu0 0.0
          %648 = vmatpush1.msra.mxu0 0.0
          %649 = vmatprep.subr.mxu0 0.0
          %650 = vmatpush1.msra.mxu0 0.0
          %651 = vmatprep.subr.mxu0 0.0
          %652 = vmatpush1.msra.mxu0 0.0
          %653 = vmatprep.subr.mxu0 0.0
          %654 = vmatpush1.msra.mxu0 0.0
          %655 = vmatprep.subr.mxu0 0.0
          %656 = vmatpush1.msra.mxu0 0.0
          %657 = vmatprep.subr.mxu0 0.0
          %658 = vmatpush1.msra.mxu0 0.0
          %659 = vmatprep.subr.mxu0 0.0
          %660 = vmatpush1.msra.mxu0 0.0
          %661 = vmatprep.subr.mxu0 0.0
          %662 = vmatpush1.msra.mxu0 0.0
          %663 = vmatprep.subr.mxu0 0.0
          %664 = vmatpush1.msra.mxu0 0.0
          %665 = vmatprep.subr.mxu0 0.0
          %666 = vmatpush1.msra.mxu0 0.0
          %667 = vmatprep.subr.mxu0 0.0
          %668 = vmatpush1.msra.mxu0 0.0
          %669 = vmatprep.subr.mxu0 0.0
          %670 = vmatpush1.msra.mxu0 0.0
          %671 = vmatprep.subr.mxu0 0.0
          %672 = vmatpush1.msra.mxu0 0.0
          %673 = vmatprep.subr.mxu0 0.0
          %674 = vmatpush1.msra.mxu0 0.0
          %675 = vmatprep.subr.mxu0 0.0
          %676 = vmatpush1.msra.mxu0 0.0
          %677 = vmatprep.mubr.f32.mxu0 0.0
          %678 = vmatmul.mubr.f32.gmra.mrb[0].mxu0 %v611
          %v679 = vpop.f32.mrb[0].mxu0
          %v680 = vadd.f32 %v607, %v679
          %v681 = vpop.f32.mrb[0].mxu0
          %682 = vdwg.mxu0
          %v683 = vld [vmem:[%s4 + $0x1] sm:$0x1]
          %v684 = vlaneseq
          %v685 = vshrl.u32 %v684, 7
          %v686 = vsub.s32 0, %v685
          %v687 = vrot.slane %v683, %v686
          %v688 = vadd.f32 %v680, %v687
          %vm689 = vcmask 162816
          %v690 = vsel %vm689, %v688, -inf
          %691 = vmax.xlane.f32.xlu0 %v690
          %v692 = vpop.xlane.xlu0 %691
          %v693 = vsub.f32 %v688, %v692
          %v694 = vmul.f32 %v693, 1.442695
          %v695 = vpow.pop %v694
          %v696 = vsel %vm689, %v695, 0.0
          %697 = vadd.xlane.f32.xlu0 %v696
          %v698 = vpop.xlane.xlu0 %697
          %v699 = vrcp.pop %v698
          %v700 = vmul.f32 %v695, %v699
          %v701 = vld [vmem:[#allocation8] sm:$0xff]
          %v702 = vld [vmem:[#allocation8 + $0x8] sm:$0xff]
          %v703 = vld [vmem:[#allocation8 + $0x10] sm:$0xf]
          %v705 = vsel %vm689, %v700, 0
          %vm707 = vcmask 1043456
          %v709 = vsel %vm707, %v703, 0
          %711 = vmatprep.subr.mxu0 0.0
          %712 = vmatpush1.msra.mxu0 %v701
          %713 = vmatprep.subr.mxu0 0.0
          %714 = vmatpush1.msra.mxu0 %v702
          %715 = vmatprep.subr.mxu0 0.0
          %716 = vmatpush1.msra.mxu0 %v709
          %717 = vmatprep.subr.mxu0 0.0
          %718 = vmatpush1.msra.mxu0 0.0
          %719 = vmatprep.subr.mxu0 0.0
          %720 = vmatpush1.msra.mxu0 0.0
          %721 = vmatprep.subr.mxu0 0.0
          %722 = vmatpush1.msra.mxu0 0.0
          %723 = vmatprep.subr.mxu0 0.0
          %724 = vmatpush1.msra.mxu0 0.0
          %725 = vmatprep.subr.mxu0 0.0
          %726 = vmatpush1.msra.mxu0 0.0
          %727 = vmatprep.subr.mxu0 0.0
          %728 = vmatpush1.msra.mxu0 0.0
          %729 = vmatprep.subr.mxu0 0.0
          %730 = vmatpush1.msra.mxu0 0.0
          %731 = vmatprep.subr.mxu0 0.0
          %732 = vmatpush1.msra.mxu0 0.0
          %733 = vmatprep.subr.mxu0 0.0
          %734 = vmatpush1.msra.mxu0 0.0
          %735 = vmatprep.subr.mxu0 0.0
          %736 = vmatpush1.msra.mxu0 0.0
          %737 = vmatprep.subr.mxu0 0.0
          %738 = vmatpush1.msra.mxu0 0.0
          %739 = vmatprep.subr.mxu0 0.0
          %740 = vmatpush1.msra.mxu0 0.0
          %741 = vmatprep.subr.mxu0 0.0
          %742 = vmatpush1.msra.mxu0 0.0
          %743 = vmatprep.subr.mxu0 0.0
          %744 = vmatpush1.msra.mxu0 0.0
          %745 = vmatprep.subr.mxu0 0.0
          %746 = vmatpush1.msra.mxu0 0.0
          %747 = vmatprep.subr.mxu0 0.0
          %748 = vmatpush1.msra.mxu0 0.0
          %749 = vmatprep.subr.mxu0 0.0
          %750 = vmatpush1.msra.mxu0 0.0
          %751 = vmatprep.subr.mxu0 0.0
          %752 = vmatpush1.msra.mxu0 0.0
          %753 = vmatprep.subr.mxu0 0.0
          %754 = vmatpush1.msra.mxu0 0.0
          %755 = vmatprep.subr.mxu0 0.0
          %756 = vmatpush1.msra.mxu0 0.0
          %757 = vmatprep.subr.mxu0 0.0
          %758 = vmatpush1.msra.mxu0 0.0
          %759 = vmatprep.subr.mxu0 0.0
          %760 = vmatpush1.msra.mxu0 0.0
          %761 = vmatprep.subr.mxu0 0.0
          %762 = vmatpush1.msra.mxu0 0.0
          %763 = vmatprep.subr.mxu0 0.0
          %764 = vmatpush1.msra.mxu0 0.0
          %765 = vmatprep.subr.mxu0 0.0
          %766 = vmatpush1.msra.mxu0 0.0
          %767 = vmatprep.subr.mxu0 0.0
          %768 = vmatpush1.msra.mxu0 0.0
          %769 = vmatprep.subr.mxu0 0.0
          %770 = vmatpush1.msra.mxu0 0.0
          %771 = vmatprep.subr.mxu0 0.0
          %772 = vmatpush1.msra.mxu0 0.0
          %773 = vmatprep.subr.mxu0 0.0
          %774 = vmatpush1.msra.mxu0 0.0
          %775 = vmatprep.mubr.f32.mxu0 0.0
          %776 = vmatmul.mubr.f32.gmra.mrb[0].mxu0 %v705
          %v777 = vpop.f32.mrb[0].mxu0
          %v778 = vadd.f32 0.0, %v777
          %v779 = vpop.f32.mrb[0].mxu0
          %780 = vdwg.mxu0
          %v781 = vld [vmem:[#allocation9 + $0x50] sm:$0xff]
          %v782 = vld [vmem:[#allocation9 + $0x58] sm:$0xff]
          %v783 = vld [vmem:[#allocation9 + $0x60] sm:$0xff]
          %v784 = vld [vmem:[#allocation9 + $0x68] sm:$0xff]
          %v785 = vld [vmem:[#allocation9 + $0x70] sm:$0xff]
          %v786 = vld [vmem:[#allocation9 + $0x78] sm:$0xff]
          %v787 = vld [vmem:[#allocation9 + $0x80] sm:$0xff]
          %v788 = vld [vmem:[#allocation9 + $0x88] sm:$0xff]
          %v790 = vsel %vm536, %v778, 0
          %792 = vmatprep.subr.mxu0 0.0
          %793 = vmatpush1.msra.mxu0 %v785
          %794 = vmatprep.subr.mxu0 0.0
          %795 = vmatpush1.msra.mxu0 %v786
          %796 = vmatprep.subr.mxu0 0.0
          %797 = vmatpush1.msra.mxu0 %v787
          %798 = vmatprep.subr.mxu0 0.0
          %799 = vmatpush1.msra.mxu0 %v788
          %800 = vmatprep.subr.mxu0 0.0
          %801 = vmatpush1.msra.mxu0 0.0
          %802 = vmatprep.subr.mxu0 0.0
          %803 = vmatpush1.msra.mxu0 0.0
          %804 = vmatprep.subr.mxu0 0.0
          %805 = vmatpush1.msra.mxu0 0.0
          %806 = vmatprep.subr.mxu0 0.0
          %807 = vmatpush1.msra.mxu0 0.0
          %808 = vmatprep.subr.mxu0 0.0
          %809 = vmatpush1.msra.mxu0 0.0
          %810 = vmatprep.subr.mxu0 0.0
          %811 = vmatpush1.msra.mxu0 0.0
          %812 = vmatprep.subr.mxu0 0.0
          %813 = vmatpush1.msra.mxu0 0.0
          %814 = vmatprep.subr.mxu0 0.0
          %815 = vmatpush1.msra.mxu0 0.0
          %816 = vmatprep.subr.mxu0 0.0
          %817 = vmatpush1.msra.mxu0 0.0
          %818 = vmatprep.subr.mxu0 0.0
          %819 = vmatpush1.msra.mxu0 0.0
          %820 = vmatprep.subr.mxu0 0.0
          %821 = vmatpush1.msra.mxu0 0.0
          %822 = vmatprep.subr.mxu0 0.0
          %823 = vmatpush1.msra.mxu0 0.0
          %824 = vmatprep.subr.mxu0 0.0
          %825 = vmatpush1.msra.mxu0 0.0
          %826 = vmatprep.subr.mxu0 0.0
          %827 = vmatpush1.msra.mxu0 0.0
          %828 = vmatprep.subr.mxu0 0.0
          %829 = vmatpush1.msra.mxu0 0.0
          %830 = vmatprep.subr.mxu0 0.0
          %831 = vmatpush1.msra.mxu0 0.0
          %832 = vmatprep.subr.mxu0 0.0
          %833 = vmatpush1.msra.mxu0 0.0
          %834 = vmatprep.subr.mxu0 0.0
          %835 = vmatpush1.msra.mxu0 0.0
          %836 = vmatprep.subr.mxu0 0.0
          %837 = vmatpush1.msra.mxu0 0.0
          %838 = vmatprep.subr.mxu0 0.0
          %839 = vmatpush1.msra.mxu0 0.0
          %840 = vmatprep.subr.mxu0 0.0
          %841 = vmatpush1.msra.mxu0 0.0
          %842 = vmatprep.subr.mxu0 0.0
          %843 = vmatpush1.msra.mxu0 0.0
          %844 = vmatprep.subr.mxu0 0.0
          %845 = vmatpush1.msra.mxu0 0.0
          %846 = vmatprep.subr.mxu0 0.0
          %847 = vmatpush1.msra.mxu0 0.0
          %848 = vmatprep.subr.mxu0 0.0
          %849 = vmatpush1.msra.mxu0 0.0
          %850 = vmatprep.subr.mxu0 0.0
          %851 = vmatpush1.msra.mxu0 0.0
          %852 = vmatprep.subr.mxu0 0.0
          %853 = vmatpush1.msra.mxu0 0.0
          %854 = vmatprep.subr.mxu0 0.0
          %855 = vmatpush1.msra.mxu0 0.0
          %856 = vmatprep.mubr.f32.mxu0 0.0
          %857 = vmatmul.mubr.f32.gmra.mrb[0].mxu0 %v790
          %v858 = vpop.f32.mrb[0].mxu0
          %v859 = vadd.f32 0.0, %v858
          %v860 = vpop.f32.mrb[0].mxu0
          %861 = vdwg.mxu0
          %862 = vmatprep.subr.mxu0 0.0
          %863 = vmatpush1.msra.mxu0 %v781
          %864 = vmatprep.subr.mxu0 0.0
          %865 = vmatpush1.msra.mxu0 %v782
          %866 = vmatprep.subr.mxu0 0.0
          %867 = vmatpush1.msra.mxu0 %v783
          %868 = vmatprep.subr.mxu0 0.0
          %869 = vmatpush1.msra.mxu0 %v784
          %870 = vmatprep.subr.mxu0 0.0
          %871 = vmatpush1.msra.mxu0 0.0
          %872 = vmatprep.subr.mxu0 0.0
          %873 = vmatpush1.msra.mxu0 0.0
          %874 = vmatprep.subr.mxu0 0.0
          %875 = vmatpush1.msra.mxu0 0.0
          %876 = vmatprep.subr.mxu0 0.0
          %877 = vmatpush1.msra.mxu0 0.0
          %878 = vmatprep.subr.mxu0 0.0
          %879 = vmatpush1.msra.mxu0 0.0
          %880 = vmatprep.subr.mxu0 0.0
          %881 = vmatpush1.msra.mxu0 0.0
          %882 = vmatprep.subr.mxu0 0.0
          %883 = vmatpush1.msra.mxu0 0.0
          %884 = vmatprep.subr.mxu0 0.0
          %885 = vmatpush1.msra.mxu0 0.0
          %886 = vmatprep.subr.mxu0 0.0
          %887 = vmatpush1.msra.mxu0 0.0
          %888 = vmatprep.subr.mxu0 0.0
          %889 = vmatpush1.msra.mxu0 0.0
          %890 = vmatprep.subr.mxu0 0.0
          %891 = vmatpush1.msra.mxu0 0.0
          %892 = vmatprep.subr.mxu0 0.0
          %893 = vmatpush1.msra.mxu0 0.0
          %894 = vmatprep.subr.mxu0 0.0
          %895 = vmatpush1.msra.mxu0 0.0
          %896 = vmatprep.subr.mxu0 0.0
          %897 = vmatpush1.msra.mxu0 0.0
          %898 = vmatprep.subr.mxu0 0.0
          %899 = vmatpush1.msra.mxu0 0.0
          %900 = vmatprep.subr.mxu0 0.0
          %901 = vmatpush1.msra.mxu0 0.0
          %902 = vmatprep.subr.mxu0 0.0
          %903 = vmatpush1.msra.mxu0 0.0
          %904 = vmatprep.subr.mxu0 0.0
          %905 = vmatpush1.msra.mxu0 0.0
          %906 = vmatprep.subr.mxu0 0.0
          %907 = vmatpush1.msra.mxu0 0.0
          %908 = vmatprep.subr.mxu0 0.0
          %909 = vmatpush1.msra.mxu0 0.0
          %910 = vmatprep.subr.mxu0 0.0
          %911 = vmatpush1.msra.mxu0 0.0
          %912 = vmatprep.subr.mxu0 0.0
          %913 = vmatpush1.msra.mxu0 0.0
          %914 = vmatprep.subr.mxu0 0.0
          %915 = vmatpush1.msra.mxu0 0.0
          %916 = vmatprep.subr.mxu0 0.0
          %917 = vmatpush1.msra.mxu0 0.0
          %918 = vmatprep.subr.mxu0 0.0
          %919 = vmatpush1.msra.mxu0 0.0
          %920 = vmatprep.subr.mxu0 0.0
          %921 = vmatpush1.msra.mxu0 0.0
          %922 = vmatprep.subr.mxu0 0.0
          %923 = vmatpush1.msra.mxu0 0.0
          %924 = vmatprep.subr.mxu0 0.0
          %925 = vmatpush1.msra.mxu0 0.0
          %926 = vmatprep.mubr.f32.mxu0 0.0
          %927 = vmatmul.mubr.f32.gmra.mrb[0].mxu0 %v611
          %v928 = vpop.f32.mrb[0].mxu0
          %v929 = vadd.f32 %v859, %v928
          %v930 = vpop.f32.mrb[0].mxu0
          %931 = vdwg.mxu0
          %v932 = vld [vmem:[%s4 + $0x2] sm:$0x1]
          %v933 = vlaneseq
          %v934 = vshrl.u32 %v933, 7
          %v935 = vsub.s32 0, %v934
          %v936 = vrot.slane %v932, %v935
          %v937 = vadd.f32 %v929, %v936
          %v938 = vmax.f32 %v937, 0.0
          %v939 = vld [vmem:[#allocation9 + $0x90] sm:$0xff]
          %v940 = vld [vmem:[#allocation9 + $0x98] sm:$0xff]
          %v941 = vld [vmem:[#allocation9 + $0xa0] sm:$0xff]
          %v942 = vld [vmem:[#allocation9 + $0xa8] sm:$0xff]
          %v943 = vld [vmem:[#allocation9 + $0xb0] sm:$0xff]
          %v944 = vld [vmem:[#allocation9 + $0xb8] sm:$0xff]
          %v945 = vld [vmem:[#allocation9 + $0xc0] sm:$0xff]
          %v946 = vld [vmem:[#allocation9 + $0xc8] sm:$0xff]
          %947 = vmatprep.subr.mxu0 0.0
          %948 = vmatpush1.msra.mxu0 %v943
          %949 = vmatprep.subr.mxu0 0.0
          %950 = vmatpush1.msra.mxu0 %v944
          %951 = vmatprep.subr.mxu0 0.0
          %952 = vmatpush1.msra.mxu0 %v945
          %953 = vmatprep.subr.mxu0 0.0
          %954 = vmatpush1.msra.mxu0 %v946
          %955 = vmatprep.subr.mxu0 0.0
          %956 = vmatpush1.msra.mxu0 0.0
          %957 = vmatprep.subr.mxu0 0.0
          %958 = vmatpush1.msra.mxu0 0.0
          %959 = vmatprep.subr.mxu0 0.0
          %960 = vmatpush1.msra.mxu0 0.0
          %961 = vmatprep.subr.mxu0 0.0
          %962 = vmatpush1.msra.mxu0 0.0
          %963 = vmatprep.subr.mxu0 0.0
          %964 = vmatpush1.msra.mxu0 0.0
          %965 = vmatprep.subr.mxu0 0.0
          %966 = vmatpush1.msra.mxu0 0.0
          %967 = vmatprep.subr.mxu0 0.0
          %968 = vmatpush1.msra.mxu0 0.0
          %969 = vmatprep.subr.mxu0 0.0
          %970 = vmatpush1.msra.mxu0 0.0
          %971 = vmatprep.subr.mxu0 0.0
          %972 = vmatpush1.msra.mxu0 0.0
          %973 = vmatprep.subr.mxu0 0.0
          %974 = vmatpush1.msra.mxu0 0.0
          %975 = vmatprep.subr.mxu0 0.0
          %976 = vmatpush1.msra.mxu0 0.0
          %977 = vmatprep.subr.mxu0 0.0
          %978 = vmatpush1.msra.mxu0 0.0
          %979 = vmatprep.subr.mxu0 0.0
          %980 = vmatpush1.msra.mxu0 0.0
          %981 = vmatprep.subr.mxu0 0.0
          %982 = vmatpush1.msra.mxu0 0.0
          %983 = vmatprep.subr.mxu0 0.0
          %984 = vmatpush1.msra.mxu0 0.0
          %985 = vmatprep.subr.mxu0 0.0
          %986 = vmatpush1.msra.mxu0 0.0
          %987 = vmatprep.subr.mxu0 0.0
          %988 = vmatpush1.msra.mxu0 0.0
          %989 = vmatprep.subr.mxu0 0.0
          %990 = vmatpush1.msra.mxu0 0.0
          %991 = vmatprep.subr.mxu0 0.0
          %992 = vmatpush1.msra.mxu0 0.0
          %993 = vmatprep.subr.mxu0 0.0
          %994 = vmatpush1.msra.mxu0 0.0
          %995 = vmatprep.subr.mxu0 0.0
          %996 = vmatpush1.msra.mxu0 0.0
          %997 = vmatprep.subr.mxu0 0.0
          %998 = vmatpush1.msra.mxu0 0.0
          %999 = vmatprep.subr.mxu0 0.0
          %1000 = vmatpush1.msra.mxu0 0.0
          %1001 = vmatprep.subr.mxu0 0.0
          %1002 = vmatpush1.msra.mxu0 0.0
          %1003 = vmatprep.subr.mxu0 0.0
          %1004 = vmatpush1.msra.mxu0 0.0
          %1005 = vmatprep.subr.mxu0 0.0
          %1006 = vmatpush1.msra.mxu0 0.0
          %1007 = vmatprep.subr.mxu0 0.0
          %1008 = vmatpush1.msra.mxu0 0.0
          %1009 = vmatprep.subr.mxu0 0.0
          %1010 = vmatpush1.msra.mxu0 0.0
          %1011 = vmatprep.mubr.f32.mxu0 0.0
          %1012 = vmatmul.mubr.f32.gmra.mrb[0].mxu0 %v538
          %v1013 = vpop.f32.mrb[0].mxu0
          %v1014 = vadd.f32 0.0, %v1013
          %v1015 = vpop.f32.mrb[0].mxu0
          %1016 = vdwg.mxu0
          %v1018 = vsel %vm536, %v938, 0
          %1020 = vmatprep.subr.mxu0 0.0
          %1021 = vmatpush1.msra.mxu0 %v939
          %1022 = vmatprep.subr.mxu0 0.0
          %1023 = vmatpush1.msra.mxu0 %v940
          %1024 = vmatprep.subr.mxu0 0.0
          %1025 = vmatpush1.msra.mxu0 %v941
          %1026 = vmatprep.subr.mxu0 0.0
          %1027 = vmatpush1.msra.mxu0 %v942
          %1028 = vmatprep.subr.mxu0 0.0
          %1029 = vmatpush1.msra.mxu0 0.0
          %1030 = vmatprep.subr.mxu0 0.0
          %1031 = vmatpush1.msra.mxu0 0.0
          %1032 = vmatprep.subr.mxu0 0.0
          %1033 = vmatpush1.msra.mxu0 0.0
          %1034 = vmatprep.subr.mxu0 0.0
          %1035 = vmatpush1.msra.mxu0 0.0
          %1036 = vmatprep.subr.mxu0 0.0
          %1037 = vmatpush1.msra.mxu0 0.0
          %1038 = vmatprep.subr.mxu0 0.0
          %1039 = vmatpush1.msra.mxu0 0.0
          %1040 = vmatprep.subr.mxu0 0.0
          %1041 = vmatpush1.msra.mxu0 0.0
          %1042 = vmatprep.subr.mxu0 0.0
          %1043 = vmatpush1.msra.mxu0 0.0
          %1044 = vmatprep.subr.mxu0 0.0
          %1045 = vmatpush1.msra.mxu0 0.0
          %1046 = vmatprep.subr.mxu0 0.0
          %1047 = vmatpush1.msra.mxu0 0.0
          %1048 = vmatprep.subr.mxu0 0.0
          %1049 = vmatpush1.msra.mxu0 0.0
          %1050 = vmatprep.subr.mxu0 0.0
          %1051 = vmatpush1.msra.mxu0 0.0
          %1052 = vmatprep.subr.mxu0 0.0
          %1053 = vmatpush1.msra.mxu0 0.0
          %1054 = vmatprep.subr.mxu0 0.0
          %1055 = vmatpush1.msra.mxu0 0.0
          %1056 = vmatprep.subr.mxu0 0.0
          %1057 = vmatpush1.msra.mxu0 0.0
          %1058 = vmatprep.subr.mxu0 0.0
          %1059 = vmatpush1.msra.mxu0 0.0
          %1060 = vmatprep.subr.mxu0 0.0
          %1061 = vmatpush1.msra.mxu0 0.0
          %1062 = vmatprep.subr.mxu0 0.0
          %1063 = vmatpush1.msra.mxu0 0.0
          %1064 = vmatprep.subr.mxu0 0.0
          %1065 = vmatpush1.msra.mxu0 0.0
          %1066 = vmatprep.subr.mxu0 0.0
          %1067 = vmatpush1.msra.mxu0 0.0
          %1068 = vmatprep.subr.mxu0 0.0
          %1069 = vmatpush1.msra.mxu0 0.0
          %1070 = vmatprep.subr.mxu0 0.0
          %1071 = vmatpush1.msra.mxu0 0.0
          %1072 = vmatprep.subr.mxu0 0.0
          %1073 = vmatpush1.msra.mxu0 0.0
          %1074 = vmatprep.subr.mxu0 0.0
          %1075 = vmatpush1.msra.mxu0 0.0
          %1076 = vmatprep.subr.mxu0 0.0
          %1077 = vmatpush1.msra.mxu0 0.0
          %1078 = vmatprep.subr.mxu0 0.0
          %1079 = vmatpush1.msra.mxu0 0.0
          %1080 = vmatprep.subr.mxu0 0.0
          %1081 = vmatpush1.msra.mxu0 0.0
          %1082 = vmatprep.subr.mxu0 0.0
          %1083 = vmatpush1.msra.mxu0 0.0
          %1084 = vmatprep.mubr.f32.mxu0 0.0
          %1085 = vmatmul.mubr.f32.gmra.mrb[0].mxu0 %v1018
          %v1086 = vpop.f32.mrb[0].mxu0
          %v1087 = vadd.f32 %v1014, %v1086
          %v1088 = vpop.f32.mrb[0].mxu0
          %1089 = vdwg.mxu0
          %v1090 = vld [vmem:[%s4 + $0x3] sm:$0x1]
          %v1091 = vlaneseq
          %v1092 = vshrl.u32 %v1091, 7
          %v1093 = vsub.s32 0, %v1092
          %v1094 = vrot.slane %v1090, %v1093
          %v1095 = vadd.f32 %v1087, %v1094
          %v1096 = vxor.u32 %v1095, 2147483648
          %v1097 = vmul.f32 %v1096, 1.442695
          %v1098 = vpow.pop %v1097
          %v1099 = vadd.f32 %v1098, 1.0
          %v1100 = vrcp.pop %v1099
          %v1101 = vmul.f32 1.0, %v1100
          %v1102 = vld [vmem:[#allocation9 + $0xd0] sm:$0xff]
          %v1103 = vld [vmem:[#allocation9 + $0xd8] sm:$0xff]
          %v1104 = vld [vmem:[#allocation9 + $0xe0] sm:$0xff]
          %v1105 = vld [vmem:[#allocation9 + $0xe8] sm:$0xff]
          %v1106 = vld [vmem:[#allocation9 + $0xf0] sm:$0xff]
          %v1107 = vld [vmem:[#allocation9 + $0xf8] sm:$0xff]
          %v1108 = vld [vmem:[#allocation9 + $0x100] sm:$0xff]
          %v1109 = vld [vmem:[#allocation9 + $0x108] sm:$0xff]
          %1110 = vmatprep.subr.mxu0 0.0
          %1111 = vmatpush1.msra.mxu0 %v1106
          %1112 = vmatprep.subr.mxu0 0.0
          %1113 = vmatpush1.msra.mxu0 %v1107
          %1114 = vmatprep.subr.mxu0 0.0
          %1115 = vmatpush1.msra.mxu0 %v1108
          %1116 = vmatprep.subr.mxu0 0.0
          %1117 = vmatpush1.msra.mxu0 %v1109
          %1118 = vmatprep.subr.mxu0 0.0
          %1119 = vmatpush1.msra.mxu0 0.0
          %1120 = vmatprep.subr.mxu0 0.0
          %1121 = vmatpush1.msra.mxu0 0.0
          %1122 = vmatprep.subr.mxu0 0.0
          %1123 = vmatpush1.msra.mxu0 0.0
          %1124 = vmatprep.subr.mxu0 0.0
          %1125 = vmatpush1.msra.mxu0 0.0
          %1126 = vmatprep.subr.mxu0 0.0
          %1127 = vmatpush1.msra.mxu0 0.0
          %1128 = vmatprep.subr.mxu0 0.0
          %1129 = vmatpush1.msra.mxu0 0.0
          %1130 = vmatprep.subr.mxu0 0.0
          %1131 = vmatpush1.msra.mxu0 0.0
          %1132 = vmatprep.subr.mxu0 0.0
          %1133 = vmatpush1.msra.mxu0 0.0
          %1134 = vmatprep.subr.mxu0 0.0
          %1135 = vmatpush1.msra.mxu0 0.0
          %1136 = vmatprep.subr.mxu0 0.0
          %1137 = vmatpush1.msra.mxu0 0.0
          %1138 = vmatprep.subr.mxu0 0.0
          %1139 = vmatpush1.msra.mxu0 0.0
          %1140 = vmatprep.subr.mxu0 0.0
          %1141 = vmatpush1.msra.mxu0 0.0
          %1142 = vmatprep.subr.mxu0 0.0
          %1143 = vmatpush1.msra.mxu0 0.0
          %1144 = vmatprep.subr.mxu0 0.0
          %1145 = vmatpush1.msra.mxu0 0.0
          %1146 = vmatprep.subr.mxu0 0.0
          %1147 = vmatpush1.msra.mxu0 0.0
          %1148 = vmatprep.subr.mxu0 0.0
          %1149 = vmatpush1.msra.mxu0 0.0
          %1150 = vmatprep.subr.mxu0 0.0
          %1151 = vmatpush1.msra.mxu0 0.0
          %1152 = vmatprep.subr.mxu0 0.0
          %1153 = vmatpush1.msra.mxu0 0.0
          %1154 = vmatprep.subr.mxu0 0.0
          %1155 = vmatpush1.msra.mxu0 0.0
          %1156 = vmatprep.subr.mxu0 0.0
          %1157 = vmatpush1.msra.mxu0 0.0
          %1158 = vmatprep.subr.mxu0 0.0
          %1159 = vmatpush1.msra.mxu0 0.0
          %1160 = vmatprep.subr.mxu0 0.0
          %1161 = vmatpush1.msra.mxu0 0.0
          %1162 = vmatprep.subr.mxu0 0.0
          %1163 = vmatpush1.msra.mxu0 0.0
          %1164 = vmatprep.subr.mxu0 0.0
          %1165 = vmatpush1.msra.mxu0 0.0
          %1166 = vmatprep.subr.mxu0 0.0
          %1167 = vmatpush1.msra.mxu0 0.0
          %1168 = vmatprep.subr.mxu0 0.0
          %1169 = vmatpush1.msra.mxu0 0.0
          %1170 = vmatprep.subr.mxu0 0.0
          %1171 = vmatpush1.msra.mxu0 0.0
          %1172 = vmatprep.subr.mxu0 0.0
          %1173 = vmatpush1.msra.mxu0 0.0
          %1174 = vmatprep.mubr.f32.mxu0 0.0
          %1175 = vmatmul.mubr.f32.gmra.mrb[0].mxu0 %v538
          %v1176 = vpop.f32.mrb[0].mxu0
          %v1177 = vadd.f32 0.0, %v1176
          %v1178 = vpop.f32.mrb[0].mxu0
          %1179 = vdwg.mxu0
          %1180 = vmatprep.subr.mxu0 0.0
          %1181 = vmatpush1.msra.mxu0 %v1102
          %1182 = vmatprep.subr.mxu0 0.0
          %1183 = vmatpush1.msra.mxu0 %v1103
          %1184 = vmatprep.subr.mxu0 0.0
          %1185 = vmatpush1.msra.mxu0 %v1104
          %1186 = vmatprep.subr.mxu0 0.0
          %1187 = vmatpush1.msra.mxu0 %v1105
          %1188 = vmatprep.subr.mxu0 0.0
          %1189 = vmatpush1.msra.mxu0 0.0
          %1190 = vmatprep.subr.mxu0 0.0
          %1191 = vmatpush1.msra.mxu0 0.0
          %1192 = vmatprep.subr.mxu0 0.0
          %1193 = vmatpush1.msra.mxu0 0.0
          %1194 = vmatprep.subr.mxu0 0.0
          %1195 = vmatpush1.msra.mxu0 0.0
          %1196 = vmatprep.subr.mxu0 0.0
          %1197 = vmatpush1.msra.mxu0 0.0
          %1198 = vmatprep.subr.mxu0 0.0
          %1199 = vmatpush1.msra.mxu0 0.0
          %1200 = vmatprep.subr.mxu0 0.0
          %1201 = vmatpush1.msra.mxu0 0.0
          %1202 = vmatprep.subr.mxu0 0.0
          %1203 = vmatpush1.msra.mxu0 0.0
          %1204 = vmatprep.subr.mxu0 0.0
          %1205 = vmatpush1.msra.mxu0 0.0
          %1206 = vmatprep.subr.mxu0 0.0
          %1207 = vmatpush1.msra.mxu0 0.0
          %1208 = vmatprep.subr.mxu0 0.0
          %1209 = vmatpush1.msra.mxu0 0.0
          %1210 = vmatprep.subr.mxu0 0.0
          %1211 = vmatpush1.msra.mxu0 0.0
          %1212 = vmatprep.subr.mxu0 0.0
          %1213 = vmatpush1.msra.mxu0 0.0
          %1214 = vmatprep.subr.mxu0 0.0
          %1215 = vmatpush1.msra.mxu0 0.0
          %1216 = vmatprep.subr.mxu0 0.0
          %1217 = vmatpush1.msra.mxu0 0.0
          %1218 = vmatprep.subr.mxu0 0.0
          %1219 = vmatpush1.msra.mxu0 0.0
          %1220 = vmatprep.subr.mxu0 0.0
          %1221 = vmatpush1.msra.mxu0 0.0
          %1222 = vmatprep.subr.mxu0 0.0
          %1223 = vmatpush1.msra.mxu0 0.0
          %1224 = vmatprep.subr.mxu0 0.0
          %1225 = vmatpush1.msra.mxu0 0.0
          %1226 = vmatprep.subr.mxu0 0.0
          %1227 = vmatpush1.msra.mxu0 0.0
          %1228 = vmatprep.subr.mxu0 0.0
          %1229 = vmatpush1.msra.mxu0 0.0
          %1230 = vmatprep.subr.mxu0 0.0
          %1231 = vmatpush1.msra.mxu0 0.0
          %1232 = vmatprep.subr.mxu0 0.0
          %1233 = vmatpush1.msra.mxu0 0.0
          %1234 = vmatprep.subr.mxu0 0.0
          %1235 = vmatpush1.msra.mxu0 0.0
          %1236 = vmatprep.subr.mxu0 0.0
          %1237 = vmatpush1.msra.mxu0 0.0
          %1238 = vmatprep.subr.mxu0 0.0
          %1239 = vmatpush1.msra.mxu0 0.0
          %1240 = vmatprep.subr.mxu0 0.0
          %1241 = vmatpush1.msra.mxu0 0.0
          %1242 = vmatprep.subr.mxu0 0.0
          %1243 = vmatpush1.msra.mxu0 0.0
          %1244 = vmatprep.mubr.f32.mxu0 0.0
          %1245 = vmatmul.mubr.f32.gmra.mrb[0].mxu0 %v1018
          %v1246 = vpop.f32.mrb[0].mxu0
          %v1247 = vadd.f32 %v1177, %v1246
          %v1248 = vpop.f32.mrb[0].mxu0
          %1249 = vdwg.mxu0
          %v1250 = vld [vmem:[%s4 + $0x4] sm:$0x1]
          %v1251 = vlaneseq
          %v1252 = vshrl.u32 %v1251, 7
          %v1253 = vsub.s32 0, %v1252
          %v1254 = vrot.slane %v1250, %v1253
          %v1255 = vadd.f32 %v1247, %v1254
          %v1256 = vxor.u32 %v1255, 2147483648
          %v1257 = vmul.f32 %v1256, 1.442695
          %v1258 = vpow.pop %v1257
          %v1259 = vadd.f32 %v1258, 1.0
          %v1260 = vrcp.pop %v1259
          %v1261 = vmul.f32 1.0, %v1260
          %v1262 = vld [vmem:[#allocation9 + $0x110] sm:$0xff]
          %v1263 = vld [vmem:[#allocation9 + $0x118] sm:$0xff]
          %v1264 = vld [vmem:[#allocation9 + $0x120] sm:$0xff]
          %v1265 = vld [vmem:[#allocation9 + $0x128] sm:$0xff]
          %v1266 = vld [vmem:[%s4 + $0x5] sm:$0x1]
          %v1267 = vlaneseq
          %v1268 = vshrl.u32 %v1267, 7
          %v1269 = vsub.s32 0, %v1268
          %v1270 = vrot.slane %v1266, %v1269
          %1271 = vmatprep.subr.mxu0 0.0
          %1272 = vmatpush1.msra.mxu0 %v1262
          %1273 = vmatprep.subr.mxu0 0.0
          %1274 = vmatpush1.msra.mxu0 %v1263
          %1275 = vmatprep.subr.mxu0 0.0
          %1276 = vmatpush1.msra.mxu0 %v1264
          %1277 = vmatprep.subr.mxu0 0.0
          %1278 = vmatpush1.msra.mxu0 %v1265
          %1279 = vmatprep.subr.mxu0 0.0
          %1280 = vmatpush1.msra.mxu0 0.0
          %1281 = vmatprep.subr.mxu0 0.0
          %1282 = vmatpush1.msra.mxu0 0.0
          %1283 = vmatprep.subr.mxu0 0.0
          %1284 = vmatpush1.msra.mxu0 0.0
          %1285 = vmatprep.subr.mxu0 0.0
          %1286 = vmatpush1.msra.mxu0 0.0
          %1287 = vmatprep.subr.mxu0 0.0
          %1288 = vmatpush1.msra.mxu0 0.0
          %1289 = vmatprep.subr.mxu0 0.0
          %1290 = vmatpush1.msra.mxu0 0.0
          %1291 = vmatprep.subr.mxu0 0.0
          %1292 = vmatpush1.msra.mxu0 0.0
          %1293 = vmatprep.subr.mxu0 0.0
          %1294 = vmatpush1.msra.mxu0 0.0
          %1295 = vmatprep.subr.mxu0 0.0
          %1296 = vmatpush1.msra.mxu0 0.0
          %1297 = vmatprep.subr.mxu0 0.0
          %1298 = vmatpush1.msra.mxu0 0.0
          %1299 = vmatprep.subr.mxu0 0.0
          %1300 = vmatpush1.msra.mxu0 0.0
          %1301 = vmatprep.subr.mxu0 0.0
          %1302 = vmatpush1.msra.mxu0 0.0
          %1303 = vmatprep.subr.mxu0 0.0
          %1304 = vmatpush1.msra.mxu0 0.0
          %1305 = vmatprep.subr.mxu0 0.0
          %1306 = vmatpush1.msra.mxu0 0.0
          %1307 = vmatprep.subr.mxu0 0.0
          %1308 = vmatpush1.msra.mxu0 0.0
          %1309 = vmatprep.subr.mxu0 0.0
          %1310 = vmatpush1.msra.mxu0 0.0
          %1311 = vmatprep.subr.mxu0 0.0
          %1312 = vmatpush1.msra.mxu0 0.0
          %1313 = vmatprep.subr.mxu0 0.0
          %1314 = vmatpush1.msra.mxu0 0.0
          %1315 = vmatprep.subr.mxu0 0.0
          %1316 = vmatpush1.msra.mxu0 0.0
          %1317 = vmatprep.subr.mxu0 0.0
          %1318 = vmatpush1.msra.mxu0 0.0
          %1319 = vmatprep.subr.mxu0 0.0
          %1320 = vmatpush1.msra.mxu0 0.0
          %1321 = vmatprep.subr.mxu0 0.0
          %1322 = vmatpush1.msra.mxu0 0.0
          %1323 = vmatprep.subr.mxu0 0.0
          %1324 = vmatpush1.msra.mxu0 0.0
          %1325 = vmatprep.subr.mxu0 0.0
          %1326 = vmatpush1.msra.mxu0 0.0
          %1327 = vmatprep.subr.mxu0 0.0
          %1328 = vmatpush1.msra.mxu0 0.0
          %1329 = vmatprep.subr.mxu0 0.0
          %1330 = vmatpush1.msra.mxu0 0.0
          %1331 = vmatprep.subr.mxu0 0.0
          %1332 = vmatpush1.msra.mxu0 0.0
          %1333 = vmatprep.subr.mxu0 0.0
          %1334 = vmatpush1.msra.mxu0 0.0
          %1335 = vmatprep.mubr.f32.mxu0 0.0
          %1336 = vmatmul.mubr.f32.gmra.mrb[0].mxu0 %v1018
          %v1337 = vpop.f32.mrb[0].mxu0
          %v1338 = vadd.f32 %v1270, %v1337
          %v1339 = vpop.f32.mrb[0].mxu0
          %1340 = vdwg.mxu0
          %v1341 = vld [vmem:[#allocation9 + $0x130] sm:$0xff]
          %v1342 = vld [vmem:[#allocation9 + $0x138] sm:$0xff]
          %v1343 = vld [vmem:[#allocation9 + $0x140] sm:$0xff]
          %v1344 = vld [vmem:[#allocation9 + $0x148] sm:$0xff]
          %v1345 = vld [vmem:[%s4 + $0x6] sm:$0x1]
          %v1346 = vlaneseq
          %v1347 = vshrl.u32 %v1346, 7
          %v1348 = vsub.s32 0, %v1347
          %v1349 = vrot.slane %v1345, %v1348
          %1350 = vmatprep.subr.mxu0 0.0
          %1351 = vmatpush1.msra.mxu0 %v1341
          %1352 = vmatprep.subr.mxu0 0.0
          %1353 = vmatpush1.msra.mxu0 %v1342
          %1354 = vmatprep.subr.mxu0 0.0
          %1355 = vmatpush1.msra.mxu0 %v1343
          %1356 = vmatprep.subr.mxu0 0.0
          %1357 = vmatpush1.msra.mxu0 %v1344
          %1358 = vmatprep.subr.mxu0 0.0
          %1359 = vmatpush1.msra.mxu0 0.0
          %1360 = vmatprep.subr.mxu0 0.0
          %1361 = vmatpush1.msra.mxu0 0.0
          %1362 = vmatprep.subr.mxu0 0.0
          %1363 = vmatpush1.msra.mxu0 0.0
          %1364 = vmatprep.subr.mxu0 0.0
          %1365 = vmatpush1.msra.mxu0 0.0
          %1366 = vmatprep.subr.mxu0 0.0
          %1367 = vmatpush1.msra.mxu0 0.0
          %1368 = vmatprep.subr.mxu0 0.0
          %1369 = vmatpush1.msra.mxu0 0.0
          %1370 = vmatprep.subr.mxu0 0.0
          %1371 = vmatpush1.msra.mxu0 0.0
          %1372 = vmatprep.subr.mxu0 0.0
          %1373 = vmatpush1.msra.mxu0 0.0
          %1374 = vmatprep.subr.mxu0 0.0
          %1375 = vmatpush1.msra.mxu0 0.0
          %1376 = vmatprep.subr.mxu0 0.0
          %1377 = vmatpush1.msra.mxu0 0.0
          %1378 = vmatprep.subr.mxu0 0.0
          %1379 = vmatpush1.msra.mxu0 0.0
          %1380 = vmatprep.subr.mxu0 0.0
          %1381 = vmatpush1.msra.mxu0 0.0
          %1382 = vmatprep.subr.mxu0 0.0
          %1383 = vmatpush1.msra.mxu0 0.0
          %1384 = vmatprep.subr.mxu0 0.0
          %1385 = vmatpush1.msra.mxu0 0.0
          %1386 = vmatprep.subr.mxu0 0.0
          %1387 = vmatpush1.msra.mxu0 0.0
          %1388 = vmatprep.subr.mxu0 0.0
          %1389 = vmatpush1.msra.mxu0 0.0
          %1390 = vmatprep.subr.mxu0 0.0
          %1391 = vmatpush1.msra.mxu0 0.0
          %1392 = vmatprep.subr.mxu0 0.0
          %1393 = vmatpush1.msra.mxu0 0.0
          %1394 = vmatprep.subr.mxu0 0.0
          %1395 = vmatpush1.msra.mxu0 0.0
          %1396 = vmatprep.subr.mxu0 0.0
          %1397 = vmatpush1.msra.mxu0 0.0
          %1398 = vmatprep.subr.mxu0 0.0
          %1399 = vmatpush1.msra.mxu0 0.0
          %1400 = vmatprep.subr.mxu0 0.0
          %1401 = vmatpush1.msra.mxu0 0.0
          %1402 = vmatprep.subr.mxu0 0.0
          %1403 = vmatpush1.msra.mxu0 0.0
          %1404 = vmatprep.subr.mxu0 0.0
          %1405 = vmatpush1.msra.mxu0 0.0
          %1406 = vmatprep.subr.mxu0 0.0
          %1407 = vmatpush1.msra.mxu0 0.0
          %1408 = vmatprep.subr.mxu0 0.0
          %1409 = vmatpush1.msra.mxu0 0.0
          %1410 = vmatprep.subr.mxu0 0.0
          %1411 = vmatpush1.msra.mxu0 0.0
          %1412 = vmatprep.subr.mxu0 0.0
          %1413 = vmatpush1.msra.mxu0 0.0
          %1414 = vmatprep.mubr.f32.mxu0 0.0
          %1415 = vmatmul.mubr.f32.gmra.mrb[0].mxu0 %v538
          %v1416 = vpop.f32.mrb[0].mxu0
          %v1417 = vadd.f32 %v1349, %v1416
          %v1418 = vpop.f32.mrb[0].mxu0
          %1419 = vdwg.mxu0
          %v1420 = vmul.f32 %v1101, %v1417
          %v1421 = vadd.f32 %v1338, %v1420
          %v1422 = vtanh.pop %v1421
          %v1423 = vsub.f32 1.0, %v1261
          %v1424 = vmul.f32 %v1423, %v1422
          %v1425 = vmul.f32 %v1261, %v446
          %v1426 = vadd.f32 %v1424, %v1425
          %v1427 = vld [vmem:[#allocation9 + $0x150] sm:$0xff]
          %v1428 = vld [vmem:[#allocation9 + $0x158] sm:$0xff]
          %v1429 = vld [vmem:[#allocation9 + $0x160] sm:$0xff]
          %v1430 = vld [vmem:[#allocation9 + $0x168] sm:$0xff]
          %v1431 = vld [vmem:[%s4 + $0x7] sm:$0x1]
          %v1432 = vlaneseq
          %v1433 = vshrl.u32 %v1432, 7
          %v1434 = vsub.s32 0, %v1433
          %v1435 = vrot.slane %v1431, %v1434
          %v1437 = vsel %vm536, %v1426, 0
          %1439 = vmatprep.subr.mxu0 0.0
          %1440 = vmatpush1.msra.mxu0 %v1427
          %1441 = vmatprep.subr.mxu0 0.0
          %1442 = vmatpush1.msra.mxu0 %v1428
          %1443 = vmatprep.subr.mxu0 0.0
          %1444 = vmatpush1.msra.mxu0 %v1429
          %1445 = vmatprep.subr.mxu0 0.0
          %1446 = vmatpush1.msra.mxu0 %v1430
          %1447 = vmatprep.subr.mxu0 0.0
          %1448 = vmatpush1.msra.mxu0 0.0
          %1449 = vmatprep.subr.mxu0 0.0
          %1450 = vmatpush1.msra.mxu0 0.0
          %1451 = vmatprep.subr.mxu0 0.0
          %1452 = vmatpush1.msra.mxu0 0.0
          %1453 = vmatprep.subr.mxu0 0.0
          %1454 = vmatpush1.msra.mxu0 0.0
          %1455 = vmatprep.subr.mxu0 0.0
          %1456 = vmatpush1.msra.mxu0 0.0
          %1457 = vmatprep.subr.mxu0 0.0
          %1458 = vmatpush1.msra.mxu0 0.0
          %1459 = vmatprep.subr.mxu0 0.0
          %1460 = vmatpush1.msra.mxu0 0.0
          %1461 = vmatprep.subr.mxu0 0.0
          %1462 = vmatpush1.msra.mxu0 0.0
          %1463 = vmatprep.subr.mxu0 0.0
          %1464 = vmatpush1.msra.mxu0 0.0
          %1465 = vmatprep.subr.mxu0 0.0
          %1466 = vmatpush1.msra.mxu0 0.0
          %1467 = vmatprep.subr.mxu0 0.0
          %1468 = vmatpush1.msra.mxu0 0.0
          %1469 = vmatprep.subr.mxu0 0.0
          %1470 = vmatpush1.msra.mxu0 0.0
          %1471 = vmatprep.subr.mxu0 0.0
          %1472 = vmatpush1.msra.mxu0 0.0
          %1473 = vmatprep.subr.mxu0 0.0
          %1474 = vmatpush1.msra.mxu0 0.0
          %1475 = vmatprep.subr.mxu0 0.0
          %1476 = vmatpush1.msra.mxu0 0.0
          %1477 = vmatprep.subr.mxu0 0.0
          %1478 = vmatpush1.msra.mxu0 0.0
          %1479 = vmatprep.subr.mxu0 0.0
          %1480 = vmatpush1.msra.mxu0 0.0
          %1481 = vmatprep.subr.mxu0 0.0
          %1482 = vmatpush1.msra.mxu0 0.0
          %1483 = vmatprep.subr.mxu0 0.0
          %1484 = vmatpush1.msra.mxu0 0.0
          %1485 = vmatprep.subr.mxu0 0.0
          %1486 = vmatpush1.msra.mxu0 0.0
          %1487 = vmatprep.subr.mxu0 0.0
          %1488 = vmatpush1.msra.mxu0 0.0
          %1489 = vmatprep.subr.mxu0 0.0
          %1490 = vmatpush1.msra.mxu0 0.0
          %1491 = vmatprep.subr.mxu0 0.0
          %1492 = vmatpush1.msra.mxu0 0.0
          %1493 = vmatprep.subr.mxu0 0.0
          %1494 = vmatpush1.msra.mxu0 0.0
          %1495 = vmatprep.subr.mxu0 0.0
          %1496 = vmatpush1.msra.mxu0 0.0
          %1497 = vmatprep.subr.mxu0 0.0
          %1498 = vmatpush1.msra.mxu0 0.0
          %1499 = vmatprep.subr.mxu0 0.0
          %1500 = vmatpush1.msra.mxu0 0.0
          %1501 = vmatprep.subr.mxu0 0.0
          %1502 = vmatpush1.msra.mxu0 0.0
          %1503 = vmatprep.mubr.f32.mxu0 0.0
          %1504 = vmatmul.mubr.f32.gmra.mrb[0].mxu0 %v1437
          %v1505 = vpop.f32.mrb[0].mxu0
          %v1506 = vadd.f32 %v1435, %v1505
          %v1507 = vpop.f32.mrb[0].mxu0
          %1508 = vdwg.mxu0
          %1509 = vst.msk [vmem:[#allocation14] sm:$0xff] %vm536, %v1426
          %1510 = vst.msk [vmem:[#allocation16] sm:$0xff] %vm689, %v700
          %1511 = vst.msk [vmem:[#allocation2] sm:$0xff] %vm454, %v1506
        $region76: #{tpu_custom_call.1} parent=47 // pred_fallthru
          _
        %v1512 = vld [vmem:[#allocation2] sm:$0xff]
        %v1513 = vld [vmem:[%s385] sm:$0xff]
        %v1514 = vld [vmem:[%s385 + $0x8] sm:$0xff]
        %v1515 = vld [vmem:[%s385 + $0x10] sm:$0xff]
        %v1516 = vld [vmem:[%s385 + $0x18] sm:$0xff]
        %v1517 = vld [vmem:[%s385 + $0x20] sm:$0xff]
        %v1518 = vld [vmem:[%s385 + $0x28] sm:$0xff]
        %v1519 = vld [vmem:[%s385 + $0x30] sm:$0xff]
        %v1520 = vld [vmem:[%s385 + $0x38] sm:$0xff]
        %v1521 = vld [vmem:[%s385 + $0x40] sm:$0xff]
        %v1522 = vld [vmem:[%s385 + $0x48] sm:$0xff]
        %v1523 = vld [vmem:[%s385 + $0x50] sm:$0xff]
        %v1524 = vld [vmem:[%s385 + $0x58] sm:$0xff]
        %v1525 = vld [vmem:[%s385 + $0x60] sm:$0xff]
        %v1526 = vld [vmem:[%s385 + $0x68] sm:$0xff]
        %v1527 = vld [vmem:[%s385 + $0x70] sm:$0xff]
        %v1528 = vld [vmem:[%s385 + $0x78] sm:$0xff]
        %v1529 = vld [vmem:[%s385 + $0x80] sm:$0xff]
        %v1530 = vld [vmem:[%s385 + $0x88] sm:$0xff]
        %v1531 = vld [vmem:[%s385 + $0x90] sm:$0xff]
        %v1532 = vld [vmem:[%s385 + $0x98] sm:$0xff]
        %v1533 = vld [vmem:[%s385 + $0xa0] sm:$0xff]
        %v1534 = vld [vmem:[%s385 + $0xa8] sm:$0xff]
        %v1535 = vld [vmem:[%s385 + $0xb0] sm:$0xff]
        %v1536 = vld [vmem:[%s385 + $0xb8] sm:$0xff]
        %v1537 = vld [vmem:[%s385 + $0xc0] sm:$0xff]
        %v1538 = vld [vmem:[%s385 + $0xc8] sm:$0xff]
        %v1539 = vld [vmem:[%s385 + $0xd0] sm:$0xff]
        %v1540 = vld [vmem:[%s385 + $0xd8] sm:$0xff]
        %v1541 = vld [vmem:[%s385 + $0xe0] sm:$0xff]
        %v1542 = vld [vmem:[%s385 + $0xe8] sm:$0xff]
        %v1543 = vld [vmem:[%s385 + $0xf0] sm:$0xff]
        %v1544 = vld [vmem:[%s385 + $0xf8] sm:$0xff]
        %v1545 = vld [vmem:[%s385 + $0x100] sm:$0xff]
        %v1546 = vld [vmem:[%s385 + $0x108] sm:$0xff]
        %v1547 = vld [vmem:[%s385 + $0x110] sm:$0xff]
        %v1548 = vld [vmem:[%s385 + $0x118] sm:$0xff]
        %v1549 = vld [vmem:[%s385 + $0x120] sm:$0xff]
        %v1550 = vld [vmem:[%s385 + $0x128] sm:$0xff]
        %v1551 = vld [vmem:[%s385 + $0x130] sm:$0xff]
        %v1552 = vld [vmem:[%s385 + $0x138] sm:$0xff]
        %v1553 = vld [vmem:[%s385 + $0x140] sm:$0xff]
        %v1554 = vld [vmem:[%s385 + $0x148] sm:$0xff]
        %v1555 = vld [vmem:[%s385 + $0x150] sm:$0xff]
        %v1556 = vld [vmem:[%s385 + $0x158] sm:$0xff]
        %v1557 = vld [vmem:[%s385 + $0x160] sm:$0xff]
        %v1558 = vld [vmem:[%s385 + $0x168] sm:$0xff]
        %v1559 = vld [vmem:[%s385 + $0x170] sm:$0xff]
        %v1560 = vld [vmem:[%s385 + $0x178] sm:$0xff]
        %v1561 = vld [vmem:[%s385 + $0x180] sm:$0xff]
        %v1562 = vld [vmem:[%s385 + $0x188] sm:$0xff]
        %v1563 = vld [vmem:[%s385 + $0x190] sm:$0xff]
        %v1564 = vld [vmem:[%s385 + $0x198] sm:$0xff]
        %v1565 = vld [vmem:[%s385 + $0x1a0] sm:$0xff]
        %v1566 = vld [vmem:[%s385 + $0x1a8] sm:$0xff]
        %v1567 = vld [vmem:[%s385 + $0x1b0] sm:$0xff]
        %v1568 = vld [vmem:[%s385 + $0x1b8] sm:$0xff]
        %v1569 = vld [vmem:[%s385 + $0x1c0] sm:$0xff]
        %v1570 = vld [vmem:[%s385 + $0x1c8] sm:$0xff]
        %v1571 = vld [vmem:[%s385 + $0x1d0] sm:$0xff]
        %v1572 = vld [vmem:[%s385 + $0x1d8] sm:$0xff]
        %v1573 = vld [vmem:[%s385 + $0x1e0] sm:$0xff]
        %v1574 = vld [vmem:[%s385 + $0x1e8] sm:$0xff]
        %v1575 = vld [vmem:[%s385 + $0x1f0] sm:$0xff]
        %v1576 = vld [vmem:[%s385 + $0x1f8] sm:$0xff]
        %v1577 = vld [vmem:[%s385 + $0x200] sm:$0xff]
        %v1578 = vld [vmem:[%s385 + $0x208] sm:$0xff]
        %v1579 = vld [vmem:[%s385 + $0x210] sm:$0xff]
        %v1580 = vld [vmem:[%s385 + $0x218] sm:$0xff]
        %v1581 = vld [vmem:[%s385 + $0x220] sm:$0xff]
        %v1582 = vld [vmem:[%s385 + $0x228] sm:$0xff]
        %v1583 = vld [vmem:[%s385 + $0x230] sm:$0xff]
        %v1584 = vld [vmem:[%s385 + $0x238] sm:$0xff]
        %v1585 = vld [vmem:[%s385 + $0x240] sm:$0xff]
        %v1586 = vld [vmem:[%s385 + $0x248] sm:$0xff]
        %v1587 = vld [vmem:[%s385 + $0x250] sm:$0xff]
        %v1588 = vld [vmem:[%s385 + $0x258] sm:$0xff]
        %v1589 = vld [vmem:[%s385 + $0x260] sm:$0xff]
        %v1590 = vld [vmem:[%s385 + $0x268] sm:$0xff]
        %v1591 = vld [vmem:[%s385 + $0x270] sm:$0xff]
        %v1592 = vld [vmem:[%s385 + $0x278] sm:$0xff]
        %v1593 = vld [vmem:[%s394] sm:$0xff]
        %v1594 = vld [vmem:[%s394 + $0x8] sm:$0xff]
        %v1595 = vld [vmem:[%s394 + $0x10] sm:$0xff]
        %v1596 = vld [vmem:[%s394 + $0x18] sm:$0xff]
        %v1597 = vld [vmem:[%s394 + $0x20] sm:$0xff]
        %v1603 = vlaneseq
        %v1604 = vshrl.u32 %v1603, 7
        %v1605 = vsub.s32 0, %v1604
        %v1606 = vrot.slane %v1593, %v1605
        %v1607 = vlaneseq
        %v1608 = vshrl.u32 %v1607, 7
        %v1609 = vsub.s32 1, %v1608
        %v1610 = vrot.slane %v1593, %v1609
        %v1611 = vlaneseq
        %v1612 = vshrl.u32 %v1611, 7
        %v1613 = vsub.s32 2, %v1612
        %v1614 = vrot.slane %v1593, %v1613
        %v1615 = vlaneseq
        %v1616 = vshrl.u32 %v1615, 7
        %v1617 = vsub.s32 3, %v1616
        %v1618 = vrot.slane %v1593, %v1617
        %v1619 = vlaneseq
        %v1620 = vshrl.u32 %v1619, 7
        %v1621 = vsub.s32 4, %v1620
        %v1622 = vrot.slane %v1593, %v1621
        %v1623 = vlaneseq
        %v1624 = vshrl.u32 %v1623, 7
        %v1625 = vsub.s32 5, %v1624
        %v1626 = vrot.slane %v1593, %v1625
        %v1627 = vlaneseq
        %v1628 = vshrl.u32 %v1627, 7
        %v1629 = vsub.s32 6, %v1628
        %v1630 = vrot.slane %v1593, %v1629
        %v1631 = vlaneseq
        %v1632 = vshrl.u32 %v1631, 7
        %v1633 = vsub.s32 7, %v1632
        %v1634 = vrot.slane %v1593, %v1633
        %v1635 = vlaneseq
        %v1636 = vshrl.u32 %v1635, 7
        %v1637 = vsub.s32 0, %v1636
        %v1638 = vrot.slane %v1594, %v1637
        %v1639 = vlaneseq
        %v1640 = vshrl.u32 %v1639, 7
        %v1641 = vsub.s32 1, %v1640
        %v1642 = vrot.slane %v1594, %v1641
        %v1643 = vlaneseq
        %v1644 = vshrl.u32 %v1643, 7
        %v1645 = vsub.s32 2, %v1644
        %v1646 = vrot.slane %v1594, %v1645
        %v1647 = vlaneseq
        %v1648 = vshrl.u32 %v1647, 7
        %v1649 = vsub.s32 3, %v1648
        %v1650 = vrot.slane %v1594, %v1649
        %v1651 = vlaneseq
        %v1652 = vshrl.u32 %v1651, 7
        %v1653 = vsub.s32 4, %v1652
        %v1654 = vrot.slane %v1594, %v1653
        %v1655 = vlaneseq
        %v1656 = vshrl.u32 %v1655, 7
        %v1657 = vsub.s32 5, %v1656
        %v1658 = vrot.slane %v1594, %v1657
        %v1659 = vlaneseq
        %v1660 = vshrl.u32 %v1659, 7
        %v1661 = vsub.s32 6, %v1660
        %v1662 = vrot.slane %v1594, %v1661
        %v1663 = vlaneseq
        %v1664 = vshrl.u32 %v1663, 7
        %v1665 = vsub.s32 7, %v1664
        %v1666 = vrot.slane %v1594, %v1665
        %v1667 = vlaneseq
        %v1668 = vshrl.u32 %v1667, 7
        %v1669 = vsub.s32 0, %v1668
        %v1670 = vrot.slane %v1595, %v1669
        %v1671 = vlaneseq
        %v1672 = vshrl.u32 %v1671, 7
        %v1673 = vsub.s32 1, %v1672
        %v1674 = vrot.slane %v1595, %v1673
        %v1675 = vlaneseq
        %v1676 = vshrl.u32 %v1675, 7
        %v1677 = vsub.s32 2, %v1676
        %v1678 = vrot.slane %v1595, %v1677
        %v1679 = vlaneseq
        %v1680 = vshrl.u32 %v1679, 7
        %v1681 = vsub.s32 3, %v1680
        %v1682 = vrot.slane %v1595, %v1681
        %v1683 = vlaneseq
        %v1684 = vshrl.u32 %v1683, 7
        %v1685 = vsub.s32 4, %v1684
        %v1686 = vrot.slane %v1595, %v1685
        %v1687 = vlaneseq
        %v1688 = vshrl.u32 %v1687, 7
        %v1689 = vsub.s32 5, %v1688
        %v1690 = vrot.slane %v1595, %v1689
        %v1691 = vlaneseq
        %v1692 = vshrl.u32 %v1691, 7
        %v1693 = vsub.s32 6, %v1692
        %v1694 = vrot.slane %v1595, %v1693
        %v1695 = vlaneseq
        %v1696 = vshrl.u32 %v1695, 7
        %v1697 = vsub.s32 7, %v1696
        %v1698 = vrot.slane %v1595, %v1697
        %v1699 = vlaneseq
        %v1700 = vshrl.u32 %v1699, 7
        %v1701 = vsub.s32 0, %v1700
        %v1702 = vrot.slane %v1596, %v1701
        %v1703 = vlaneseq
        %v1704 = vshrl.u32 %v1703, 7
        %v1705 = vsub.s32 1, %v1704
        %v1706 = vrot.slane %v1596, %v1705
        %v1707 = vlaneseq
        %v1708 = vshrl.u32 %v1707, 7
        %v1709 = vsub.s32 2, %v1708
        %v1710 = vrot.slane %v1596, %v1709
        %v1711 = vlaneseq
        %v1712 = vshrl.u32 %v1711, 7
        %v1713 = vsub.s32 3, %v1712
        %v1714 = vrot.slane %v1596, %v1713
        %v1715 = vlaneseq
        %v1716 = vshrl.u32 %v1715, 7
        %v1717 = vsub.s32 4, %v1716
        %v1718 = vrot.slane %v1596, %v1717
        %v1719 = vlaneseq
        %v1720 = vshrl.u32 %v1719, 7
        %v1721 = vsub.s32 5, %v1720
        %v1722 = vrot.slane %v1596, %v1721
        %v1723 = vlaneseq
        %v1724 = vshrl.u32 %v1723, 7
        %v1725 = vsub.s32 6, %v1724
        %v1726 = vrot.slane %v1596, %v1725
        %v1727 = vlaneseq
        %v1728 = vshrl.u32 %v1727, 7
        %v1729 = vsub.s32 7, %v1728
        %v1730 = vrot.slane %v1596, %v1729
        %v1731 = vlaneseq
        %v1732 = vshrl.u32 %v1731, 7
        %v1733 = vsub.s32 0, %v1732
        %v1734 = vrot.slane %v1597, %v1733
        %v1735 = vlaneseq
        %v1736 = vshrl.u32 %v1735, 7
        %v1737 = vsub.s32 1, %v1736
        %v1738 = vrot.slane %v1597, %v1737
        %v1739 = vlaneseq
        %v1740 = vshrl.u32 %v1739, 7
        %v1741 = vsub.s32 2, %v1740
        %v1742 = vrot.slane %v1597, %v1741
        %v1743 = vlaneseq
        %v1744 = vshrl.u32 %v1743, 7
        %v1745 = vsub.s32 3, %v1744
        %v1746 = vrot.slane %v1597, %v1745
        %v1747 = vlaneseq
        %v1748 = vshrl.u32 %v1747, 7
        %v1749 = vsub.s32 4, %v1748
        %v1750 = vrot.slane %v1597, %v1749
        %v1751 = vlaneseq
        %v1752 = vshrl.u32 %v1751, 7
        %v1753 = vsub.s32 5, %v1752
        %v1754 = vrot.slane %v1597, %v1753
        %v1755 = vlaneseq
        %v1756 = vshrl.u32 %v1755, 7
        %v1757 = vsub.s32 6, %v1756
        %v1758 = vrot.slane %v1597, %v1757
        %v1759 = vlaneseq
        %v1760 = vshrl.u32 %v1759, 7
        %v1761 = vsub.s32 7, %v1760
        %v1762 = vrot.slane %v1597, %v1761
        %vm1803 = vcmask 130048
        %v1805 = vsel %vm1803, %v1512, 0
        %1807 = vmatprep.subr.mxu0 %v1514
        %1808 = vmatpush1.msra.mxu0 %v1513
        %1809 = vmatprep.subr.mxu0 %v1554
        %1810 = vmatpush1.msra.mxu0 %v1553
        %1811 = vmatprep.subr.mxu0 0.0
        %1812 = vmatpush1.msra.mxu0 0.0
        %1813 = vmatprep.subr.mxu0 0.0
        %1814 = vmatpush1.msra.mxu0 0.0
        %1815 = vmatprep.subr.mxu0 0.0
        %1816 = vmatpush1.msra.mxu0 0.0
        %1817 = vmatprep.subr.mxu0 0.0
        %1818 = vmatpush1.msra.mxu0 0.0
        %1819 = vmatprep.subr.mxu0 0.0
        %1820 = vmatpush1.msra.mxu0 0.0
        %1821 = vmatprep.subr.mxu0 0.0
        %1822 = vmatpush1.msra.mxu0 0.0
        %1823 = vmatprep.subr.mxu0 0.0
        %1824 = vmatpush1.msra.mxu0 0.0
        %1825 = vmatprep.subr.mxu0 0.0
        %1826 = vmatpush1.msra.mxu0 0.0
        %1827 = vmatprep.subr.mxu0 0.0
        %1828 = vmatpush1.msra.mxu0 0.0
        %1829 = vmatprep.subr.mxu0 0.0
        %1830 = vmatpush1.msra.mxu0 0.0
        %1831 = vmatprep.subr.mxu0 0.0
        %1832 = vmatpush1.msra.mxu0 0.0
        %1833 = vmatprep.subr.mxu0 0.0
        %1834 = vmatpush1.msra.mxu0 0.0
        %1835 = vmatprep.subr.mxu0 0.0
        %1836 = vmatpush1.msra.mxu0 0.0
        %1837 = vmatprep.subr.mxu0 0.0
        %1838 = vmatpush1.msra.mxu0 0.0
        %1839 = vmatprep.subr.mxu0 0.0
        %1840 = vmatpush1.msra.mxu0 0.0
        %1841 = vmatprep.subr.mxu0 0.0
        %1842 = vmatpush1.msra.mxu0 0.0
        %1843 = vmatprep.subr.mxu0 0.0
        %1844 = vmatpush1.msra.mxu0 0.0
        %1845 = vmatprep.subr.mxu0 0.0
        %1846 = vmatpush1.msra.mxu0 0.0
        %1847 = vmatprep.subr.mxu0 0.0
        %1848 = vmatpush1.msra.mxu0 0.0
        %1849 = vmatprep.subr.mxu0 0.0
        %1850 = vmatpush1.msra.mxu0 0.0
        %1851 = vmatprep.subr.mxu0 0.0
        %1852 = vmatpush1.msra.mxu0 0.0
        %1853 = vmatprep.subr.mxu0 0.0
        %1854 = vmatpush1.msra.mxu0 0.0
        %1855 = vmatprep.subr.mxu0 0.0
        %1856 = vmatpush1.msra.mxu0 0.0
        %1857 = vmatprep.subr.mxu0 0.0
        %1858 = vmatpush1.msra.mxu0 0.0
        %1859 = vmatprep.subr.mxu0 0.0
        %1860 = vmatpush1.msra.mxu0 0.0
        %1861 = vmatprep.subr.mxu0 0.0
        %1862 = vmatpush1.msra.mxu0 0.0
        %1863 = vmatprep.subr.mxu0 0.0
        %1864 = vmatpush1.msra.mxu0 0.0
        %1865 = vmatprep.subr.mxu0 0.0
        %1866 = vmatpush1.msra.mxu0 0.0
        %1867 = vmatprep.subr.mxu0 0.0
        %1868 = vmatpush1.msra.mxu0 0.0
        %1869 = vmatprep.subr.mxu0 0.0
        %1870 = vmatpush1.msra.mxu0 0.0
        %1871 = vmatprep.mubr.f32.mxu0 0.0
        %1872 = vmatmul.mubr.f32.gmra.mrb[0].mxu0 %v1805
        %v1873 = vpop.f32.mrb[0].mxu0
        %v1874 = vadd.f32 %v1606, %v1873
        %v1875 = vpop.f32.mrb[0].mxu0
        %v1876 = vadd.f32 %v1610, %v1875
        %1877 = vdwg.mxu0
        %1878 = vmatprep.subr.mxu0 %v1516
        %1879 = vmatpush1.msra.mxu0 %v1515
        %1880 = vmatprep.subr.mxu0 %v1556
        %1881 = vmatpush1.msra.mxu0 %v1555
        %1882 = vmatprep.subr.mxu0 0.0
        %1883 = vmatpush1.msra.mxu0 0.0
        %1884 = vmatprep.subr.mxu0 0.0
        %1885 = vmatpush1.msra.mxu0 0.0
        %1886 = vmatprep.subr.mxu0 0.0
        %1887 = vmatpush1.msra.mxu0 0.0
        %1888 = vmatprep.subr.mxu0 0.0
        %1889 = vmatpush1.msra.mxu0 0.0
        %1890 = vmatprep.subr.mxu0 0.0
        %1891 = vmatpush1.msra.mxu0 0.0
        %1892 = vmatprep.subr.mxu0 0.0
        %1893 = vmatpush1.msra.mxu0 0.0
        %1894 = vmatprep.subr.mxu0 0.0
        %1895 = vmatpush1.msra.mxu0 0.0
        %1896 = vmatprep.subr.mxu0 0.0
        %1897 = vmatpush1.msra.mxu0 0.0
        %1898 = vmatprep.subr.mxu0 0.0
        %1899 = vmatpush1.msra.mxu0 0.0
        %1900 = vmatprep.subr.mxu0 0.0
        %1901 = vmatpush1.msra.mxu0 0.0
        %1902 = vmatprep.subr.mxu0 0.0
        %1903 = vmatpush1.msra.mxu0 0.0
        %1904 = vmatprep.subr.mxu0 0.0
        %1905 = vmatpush1.msra.mxu0 0.0
        %1906 = vmatprep.subr.mxu0 0.0
        %1907 = vmatpush1.msra.mxu0 0.0
        %1908 = vmatprep.subr.mxu0 0.0
        %1909 = vmatpush1.msra.mxu0 0.0
        %1910 = vmatprep.subr.mxu0 0.0
        %1911 = vmatpush1.msra.mxu0 0.0
        %1912 = vmatprep.subr.mxu0 0.0
        %1913 = vmatpush1.msra.mxu0 0.0
        %1914 = vmatprep.subr.mxu0 0.0
        %1915 = vmatpush1.msra.mxu0 0.0
        %1916 = vmatprep.subr.mxu0 0.0
        %1917 = vmatpush1.msra.mxu0 0.0
        %1918 = vmatprep.subr.mxu0 0.0
        %1919 = vmatpush1.msra.mxu0 0.0
        %1920 = vmatprep.subr.mxu0 0.0
        %1921 = vmatpush1.msra.mxu0 0.0
        %1922 = vmatprep.subr.mxu0 0.0
        %1923 = vmatpush1.msra.mxu0 0.0
        %1924 = vmatprep.subr.mxu0 0.0
        %1925 = vmatpush1.msra.mxu0 0.0
        %1926 = vmatprep.subr.mxu0 0.0
        %1927 = vmatpush1.msra.mxu0 0.0
        %1928 = vmatprep.subr.mxu0 0.0
        %1929 = vmatpush1.msra.mxu0 0.0
        %1930 = vmatprep.subr.mxu0 0.0
        %1931 = vmatpush1.msra.mxu0 0.0
        %1932 = vmatprep.subr.mxu0 0.0
        %1933 = vmatpush1.msra.mxu0 0.0
        %1934 = vmatprep.subr.mxu0 0.0
        %1935 = vmatpush1.msra.mxu0 0.0
        %1936 = vmatprep.subr.mxu0 0.0
        %1937 = vmatpush1.msra.mxu0 0.0
        %1938 = vmatprep.subr.mxu0 0.0
        %1939 = vmatpush1.msra.mxu0 0.0
        %1940 = vmatprep.subr.mxu0 0.0
        %1941 = vmatpush1.msra.mxu0 0.0
        %1942 = vmatprep.mubr.f32.mxu0 0.0
        %1943 = vmatmul.mubr.f32.gmra.mrb[0].mxu0 %v1805
        %v1944 = vpop.f32.mrb[0].mxu0
        %v1945 = vadd.f32 %v1614, %v1944
        %v1946 = vpop.f32.mrb[0].mxu0
        %v1947 = vadd.f32 %v1618, %v1946
        %1948 = vdwg.mxu0
        %1949 = vmatprep.subr.mxu0 %v1518
        %1950 = vmatpush1.msra.mxu0 %v1517
        %1951 = vmatprep.subr.mxu0 %v1558
        %1952 = vmatpush1.msra.mxu0 %v1557
        %1953 = vmatprep.subr.mxu0 0.0
        %1954 = vmatpush1.msra.mxu0 0.0
        %1955 = vmatprep.subr.mxu0 0.0
        %1956 = vmatpush1.msra.mxu0 0.0
        %1957 = vmatprep.subr.mxu0 0.0
        %1958 = vmatpush1.msra.mxu0 0.0
        %1959 = vmatprep.subr.mxu0 0.0
        %1960 = vmatpush1.msra.mxu0 0.0
        %1961 = vmatprep.subr.mxu0 0.0
        %1962 = vmatpush1.msra.mxu0 0.0
        %1963 = vmatprep.subr.mxu0 0.0
        %1964 = vmatpush1.msra.mxu0 0.0
        %1965 = vmatprep.subr.mxu0 0.0
        %1966 = vmatpush1.msra.mxu0 0.0
        %1967 = vmatprep.subr.mxu0 0.0
        %1968 = vmatpush1.msra.mxu0 0.0
        %1969 = vmatprep.subr.mxu0 0.0
        %1970 = vmatpush1.msra.mxu0 0.0
        %1971 = vmatprep.subr.mxu0 0.0
        %1972 = vmatpush1.msra.mxu0 0.0
        %1973 = vmatprep.subr.mxu0 0.0
        %1974 = vmatpush1.msra.mxu0 0.0
        %1975 = vmatprep.subr.mxu0 0.0
        %1976 = vmatpush1.msra.mxu0 0.0
        %1977 = vmatprep.subr.mxu0 0.0
        %1978 = vmatpush1.msra.mxu0 0.0
        %1979 = vmatprep.subr.mxu0 0.0
        %1980 = vmatpush1.msra.mxu0 0.0
        %1981 = vmatprep.subr.mxu0 0.0
        %1982 = vmatpush1.msra.mxu0 0.0
        %1983 = vmatprep.subr.mxu0 0.0
        %1984 = vmatpush1.msra.mxu0 0.0
        %1985 = vmatprep.subr.mxu0 0.0
        %1986 = vmatpush1.msra.mxu0 0.0
        %1987 = vmatprep.subr.mxu0 0.0
        %1988 = vmatpush1.msra.mxu0 0.0
        %1989 = vmatprep.subr.mxu0 0.0
        %1990 = vmatpush1.msra.mxu0 0.0
        %1991 = vmatprep.subr.mxu0 0.0
        %1992 = vmatpush1.msra.mxu0 0.0
        %1993 = vmatprep.subr.mxu0 0.0
        %1994 = vmatpush1.msra.mxu0 0.0
        %1995 = vmatprep.subr.mxu0 0.0
        %1996 = vmatpush1.msra.mxu0 0.0
        %1997 = vmatprep.subr.mxu0 0.0
        %1998 = vmatpush1.msra.mxu0 0.0
        %1999 = vmatprep.subr.mxu0 0.0
        %2000 = vmatpush1.msra.mxu0 0.0
        %2001 = vmatprep.subr.mxu0 0.0
        %2002 = vmatpush1.msra.mxu0 0.0
        %2003 = vmatprep.subr.mxu0 0.0
        %2004 = vmatpush1.msra.mxu0 0.0
        %2005 = vmatprep.subr.mxu0 0.0
        %2006 = vmatpush1.msra.mxu0 0.0
        %2007 = vmatprep.subr.mxu0 0.0
        %2008 = vmatpush1.msra.mxu0 0.0
        %2009 = vmatprep.subr.mxu0 0.0
        %2010 = vmatpush1.msra.mxu0 0.0
        %2011 = vmatprep.subr.mxu0 0.0
        %2012 = vmatpush1.msra.mxu0 0.0
        %2013 = vmatprep.mubr.f32.mxu0 0.0
        %2014 = vmatmul.mubr.f32.gmra.mrb[0].mxu0 %v1805
        %v2015 = vpop.f32.mrb[0].mxu0
        %v2016 = vadd.f32 %v1622, %v2015
        %v2017 = vpop.f32.mrb[0].mxu0
        %v2018 = vadd.f32 %v1626, %v2017
        %2019 = vdwg.mxu0
        %2020 = vmatprep.subr.mxu0 %v1520
        %2021 = vmatpush1.msra.mxu0 %v1519
        %2022 = vmatprep.subr.mxu0 %v1560
        %2023 = vmatpush1.msra.mxu0 %v1559
        %2024 = vmatprep.subr.mxu0 0.0
        %2025 = vmatpush1.msra.mxu0 0.0
        %2026 = vmatprep.subr.mxu0 0.0
        %2027 = vmatpush1.msra.mxu0 0.0
        %2028 = vmatprep.subr.mxu0 0.0
        %2029 = vmatpush1.msra.mxu0 0.0
        %2030 = vmatprep.subr.mxu0 0.0
        %2031 = vmatpush1.msra.mxu0 0.0
        %2032 = vmatprep.subr.mxu0 0.0
        %2033 = vmatpush1.msra.mxu0 0.0
        %2034 = vmatprep.subr.mxu0 0.0
        %2035 = vmatpush1.msra.mxu0 0.0
        %2036 = vmatprep.subr.mxu0 0.0
        %2037 = vmatpush1.msra.mxu0 0.0
        %2038 = vmatprep.subr.mxu0 0.0
        %2039 = vmatpush1.msra.mxu0 0.0
        %2040 = vmatprep.subr.mxu0 0.0
        %2041 = vmatpush1.msra.mxu0 0.0
        %2042 = vmatprep.subr.mxu0 0.0
        %2043 = vmatpush1.msra.mxu0 0.0
        %2044 = vmatprep.subr.mxu0 0.0
        %2045 = vmatpush1.msra.mxu0 0.0
        %2046 = vmatprep.subr.mxu0 0.0
        %2047 = vmatpush1.msra.mxu0 0.0
        %2048 = vmatprep.subr.mxu0 0.0
        %2049 = vmatpush1.msra.mxu0 0.0
        %2050 = vmatprep.subr.mxu0 0.0
        %2051 = vmatpush1.msra.mxu0 0.0
        %2052 = vmatprep.subr.mxu0 0.0
        %2053 = vmatpush1.msra.mxu0 0.0
        %2054 = vmatprep.subr.mxu0 0.0
        %2055 = vmatpush1.msra.mxu0 0.0
        %2056 = vmatprep.subr.mxu0 0.0
        %2057 = vmatpush1.msra.mxu0 0.0
        %2058 = vmatprep.subr.mxu0 0.0
        %2059 = vmatpush1.msra.mxu0 0.0
        %2060 = vmatprep.subr.mxu0 0.0
        %2061 = vmatpush1.msra.mxu0 0.0
        %2062 = vmatprep.subr.mxu0 0.0
        %2063 = vmatpush1.msra.mxu0 0.0
        %2064 = vmatprep.subr.mxu0 0.0
        %2065 = vmatpush1.msra.mxu0 0.0
        %2066 = vmatprep.subr.mxu0 0.0
        %2067 = vmatpush1.msra.mxu0 0.0
        %2068 = vmatprep.subr.mxu0 0.0
        %2069 = vmatpush1.msra.mxu0 0.0
        %2070 = vmatprep.subr.mxu0 0.0
        %2071 = vmatpush1.msra.mxu0 0.0
        %2072 = vmatprep.subr.mxu0 0.0
        %2073 = vmatpush1.msra.mxu0 0.0
        %2074 = vmatprep.subr.mxu0 0.0
        %2075 = vmatpush1.msra.mxu0 0.0
        %2076 = vmatprep.subr.mxu0 0.0
        %2077 = vmatpush1.msra.mxu0 0.0
        %2078 = vmatprep.subr.mxu0 0.0
        %2079 = vmatpush1.msra.mxu0 0.0
        %2080 = vmatprep.subr.mxu0 0.0
        %2081 = vmatpush1.msra.mxu0 0.0
        %2082 = vmatprep.subr.mxu0 0.0
        %2083 = vmatpush1.msra.mxu0 0.0
        %2084 = vmatprep.mubr.f32.mxu0 0.0
        %2085 = vmatmul.mubr.f32.gmra.mrb[0].mxu0 %v1805
        %v2086 = vpop.f32.mrb[0].mxu0
        %v2087 = vadd.f32 %v1630, %v2086
        %v2088 = vpop.f32.mrb[0].mxu0
        %v2089 = vadd.f32 %v1634, %v2088
        %2090 = vdwg.mxu0
        %2091 = vmatprep.subr.mxu0 %v1522
        %2092 = vmatpush1.msra.mxu0 %v1521
        %2093 = vmatprep.subr.mxu0 %v1562
        %2094 = vmatpush1.msra.mxu0 %v1561
        %2095 = vmatprep.subr.mxu0 0.0
        %2096 = vmatpush1.msra.mxu0 0.0
        %2097 = vmatprep.subr.mxu0 0.0
        %2098 = vmatpush1.msra.mxu0 0.0
        %2099 = vmatprep.subr.mxu0 0.0
        %2100 = vmatpush1.msra.mxu0 0.0
        %2101 = vmatprep.subr.mxu0 0.0
        %2102 = vmatpush1.msra.mxu0 0.0
        %2103 = vmatprep.subr.mxu0 0.0
        %2104 = vmatpush1.msra.mxu0 0.0
        %2105 = vmatprep.subr.mxu0 0.0
        %2106 = vmatpush1.msra.mxu0 0.0
        %2107 = vmatprep.subr.mxu0 0.0
        %2108 = vmatpush1.msra.mxu0 0.0
        %2109 = vmatprep.subr.mxu0 0.0
        %2110 = vmatpush1.msra.mxu0 0.0
        %2111 = vmatprep.subr.mxu0 0.0
        %2112 = vmatpush1.msra.mxu0 0.0
        %2113 = vmatprep.subr.mxu0 0.0
        %2114 = vmatpush1.msra.mxu0 0.0
        %2115 = vmatprep.subr.mxu0 0.0
        %2116 = vmatpush1.msra.mxu0 0.0
        %2117 = vmatprep.subr.mxu0 0.0
        %2118 = vmatpush1.msra.mxu0 0.0
        %2119 = vmatprep.subr.mxu0 0.0
        %2120 = vmatpush1.msra.mxu0 0.0
        %2121 = vmatprep.subr.mxu0 0.0
        %2122 = vmatpush1.msra.mxu0 0.0
        %2123 = vmatprep.subr.mxu0 0.0
        %2124 = vmatpush1.msra.mxu0 0.0
        %2125 = vmatprep.subr.mxu0 0.0
        %2126 = vmatpush1.msra.mxu0 0.0
        %2127 = vmatprep.subr.mxu0 0.0
        %2128 = vmatpush1.msra.mxu0 0.0
        %2129 = vmatprep.subr.mxu0 0.0
        %2130 = vmatpush1.msra.mxu0 0.0
        %2131 = vmatprep.subr.mxu0 0.0
        %2132 = vmatpush1.msra.mxu0 0.0
        %2133 = vmatprep.subr.mxu0 0.0
        %2134 = vmatpush1.msra.mxu0 0.0
        %2135 = vmatprep.subr.mxu0 0.0
        %2136 = vmatpush1.msra.mxu0 0.0
        %2137 = vmatprep.subr.mxu0 0.0
        %2138 = vmatpush1.msra.mxu0 0.0
        %2139 = vmatprep.subr.mxu0 0.0
        %2140 = vmatpush1.msra.mxu0 0.0
        %2141 = vmatprep.subr.mxu0 0.0
        %2142 = vmatpush1.msra.mxu0 0.0
        %2143 = vmatprep.subr.mxu0 0.0
        %2144 = vmatpush1.msra.mxu0 0.0
        %2145 = vmatprep.subr.mxu0 0.0
        %2146 = vmatpush1.msra.mxu0 0.0
        %2147 = vmatprep.subr.mxu0 0.0
        %2148 = vmatpush1.msra.mxu0 0.0
        %2149 = vmatprep.subr.mxu0 0.0
        %2150 = vmatpush1.msra.mxu0 0.0
        %2151 = vmatprep.subr.mxu0 0.0
        %2152 = vmatpush1.msra.mxu0 0.0
        %2153 = vmatprep.subr.mxu0 0.0
        %2154 = vmatpush1.msra.mxu0 0.0
        %2155 = vmatprep.mubr.f32.mxu0 0.0
        %2156 = vmatmul.mubr.f32.gmra.mrb[0].mxu0 %v1805
        %v2157 = vpop.f32.mrb[0].mxu0
        %v2158 = vadd.f32 %v1638, %v2157
        %v2159 = vpop.f32.mrb[0].mxu0
        %v2160 = vadd.f32 %v1642, %v2159
        %2161 = vdwg.mxu0
        %2162 = vmatprep.subr.mxu0 %v1524
        %2163 = vmatpush1.msra.mxu0 %v1523
        %2164 = vmatprep.subr.mxu0 %v1564
        %2165 = vmatpush1.msra.mxu0 %v1563
        %2166 = vmatprep.subr.mxu0 0.0
        %2167 = vmatpush1.msra.mxu0 0.0
        %2168 = vmatprep.subr.mxu0 0.0
        %2169 = vmatpush1.msra.mxu0 0.0
        %2170 = vmatprep.subr.mxu0 0.0
        %2171 = vmatpush1.msra.mxu0 0.0
        %2172 = vmatprep.subr.mxu0 0.0
        %2173 = vmatpush1.msra.mxu0 0.0
        %2174 = vmatprep.subr.mxu0 0.0
        %2175 = vmatpush1.msra.mxu0 0.0
        %2176 = vmatprep.subr.mxu0 0.0
        %2177 = vmatpush1.msra.mxu0 0.0
        %2178 = vmatprep.subr.mxu0 0.0
        %2179 = vmatpush1.msra.mxu0 0.0
        %2180 = vmatprep.subr.mxu0 0.0
        %2181 = vmatpush1.msra.mxu0 0.0
        %2182 = vmatprep.subr.mxu0 0.0
        %2183 = vmatpush1.msra.mxu0 0.0
        %2184 = vmatprep.subr.mxu0 0.0
        %2185 = vmatpush1.msra.mxu0 0.0
        %2186 = vmatprep.subr.mxu0 0.0
        %2187 = vmatpush1.msra.mxu0 0.0
        %2188 = vmatprep.subr.mxu0 0.0
        %2189 = vmatpush1.msra.mxu0 0.0
        %2190 = vmatprep.subr.mxu0 0.0
        %2191 = vmatpush1.msra.mxu0 0.0
        %2192 = vmatprep.subr.mxu0 0.0
        %2193 = vmatpush1.msra.mxu0 0.0
        %2194 = vmatprep.subr.mxu0 0.0
        %2195 = vmatpush1.msra.mxu0 0.0
        %2196 = vmatprep.subr.mxu0 0.0
        %2197 = vmatpush1.msra.mxu0 0.0
        %2198 = vmatprep.subr.mxu0 0.0
        %2199 = vmatpush1.msra.mxu0 0.0
        %2200 = vmatprep.subr.mxu0 0.0
        %2201 = vmatpush1.msra.mxu0 0.0
        %2202 = vmatprep.subr.mxu0 0.0
        %2203 = vmatpush1.msra.mxu0 0.0
        %2204 = vmatprep.subr.mxu0 0.0
        %2205 = vmatpush1.msra.mxu0 0.0
        %2206 = vmatprep.subr.mxu0 0.0
        %2207 = vmatpush1.msra.mxu0 0.0
        %2208 = vmatprep.subr.mxu0 0.0
        %2209 = vmatpush1.msra.mxu0 0.0
        %2210 = vmatprep.subr.mxu0 0.0
        %2211 = vmatpush1.msra.mxu0 0.0
        %2212 = vmatprep.subr.mxu0 0.0
        %2213 = vmatpush1.msra.mxu0 0.0
        %2214 = vmatprep.subr.mxu0 0.0
        %2215 = vmatpush1.msra.mxu0 0.0
        %2216 = vmatprep.subr.mxu0 0.0
        %2217 = vmatpush1.msra.mxu0 0.0
        %2218 = vmatprep.subr.mxu0 0.0
        %2219 = vmatpush1.msra.mxu0 0.0
        %2220 = vmatprep.subr.mxu0 0.0
        %2221 = vmatpush1.msra.mxu0 0.0
        %2222 = vmatprep.subr.mxu0 0.0
        %2223 = vmatpush1.msra.mxu0 0.0
        %2224 = vmatprep.subr.mxu0 0.0
        %2225 = vmatpush1.msra.mxu0 0.0
        %2226 = vmatprep.mubr.f32.mxu0 0.0
        %2227 = vmatmul.mubr.f32.gmra.mrb[0].mxu0 %v1805
        %v2228 = vpop.f32.mrb[0].mxu0
        %v2229 = vadd.f32 %v1646, %v2228
        %v2230 = vpop.f32.mrb[0].mxu0
        %v2231 = vadd.f32 %v1650, %v2230
        %2232 = vdwg.mxu0
        %2233 = vmatprep.subr.mxu0 %v1526
        %2234 = vmatpush1.msra.mxu0 %v1525
        %2235 = vmatprep.subr.mxu0 %v1566
        %2236 = vmatpush1.msra.mxu0 %v1565
        %2237 = vmatprep.subr.mxu0 0.0
        %2238 = vmatpush1.msra.mxu0 0.0
        %2239 = vmatprep.subr.mxu0 0.0
        %2240 = vmatpush1.msra.mxu0 0.0
        %2241 = vmatprep.subr.mxu0 0.0
        %2242 = vmatpush1.msra.mxu0 0.0
        %2243 = vmatprep.subr.mxu0 0.0
        %2244 = vmatpush1.msra.mxu0 0.0
        %2245 = vmatprep.subr.mxu0 0.0
        %2246 = vmatpush1.msra.mxu0 0.0
        %2247 = vmatprep.subr.mxu0 0.0
        %2248 = vmatpush1.msra.mxu0 0.0
        %2249 = vmatprep.subr.mxu0 0.0
        %2250 = vmatpush1.msra.mxu0 0.0
        %2251 = vmatprep.subr.mxu0 0.0
        %2252 = vmatpush1.msra.mxu0 0.0
        %2253 = vmatprep.subr.mxu0 0.0
        %2254 = vmatpush1.msra.mxu0 0.0
        %2255 = vmatprep.subr.mxu0 0.0
        %2256 = vmatpush1.msra.mxu0 0.0
        %2257 = vmatprep.subr.mxu0 0.0
        %2258 = vmatpush1.msra.mxu0 0.0
        %2259 = vmatprep.subr.mxu0 0.0
        %2260 = vmatpush1.msra.mxu0 0.0
        %2261 = vmatprep.subr.mxu0 0.0
        %2262 = vmatpush1.msra.mxu0 0.0
        %2263 = vmatprep.subr.mxu0 0.0
        %2264 = vmatpush1.msra.mxu0 0.0
        %2265 = vmatprep.subr.mxu0 0.0
        %2266 = vmatpush1.msra.mxu0 0.0
        %2267 = vmatprep.subr.mxu0 0.0
        %2268 = vmatpush1.msra.mxu0 0.0
        %2269 = vmatprep.subr.mxu0 0.0
        %2270 = vmatpush1.msra.mxu0 0.0
        %2271 = vmatprep.subr.mxu0 0.0
        %2272 = vmatpush1.msra.mxu0 0.0
        %2273 = vmatprep.subr.mxu0 0.0
        %2274 = vmatpush1.msra.mxu0 0.0
        %2275 = vmatprep.subr.mxu0 0.0
        %2276 = vmatpush1.msra.mxu0 0.0
        %2277 = vmatprep.subr.mxu0 0.0
        %2278 = vmatpush1.msra.mxu0 0.0
        %2279 = vmatprep.subr.mxu0 0.0
        %2280 = vmatpush1.msra.mxu0 0.0
        %2281 = vmatprep.subr.mxu0 0.0
        %2282 = vmatpush1.msra.mxu0 0.0
        %2283 = vmatprep.subr.mxu0 0.0
        %2284 = vmatpush1.msra.mxu0 0.0
        %2285 = vmatprep.subr.mxu0 0.0
        %2286 = vmatpush1.msra.mxu0 0.0
        %2287 = vmatprep.subr.mxu0 0.0
        %2288 = vmatpush1.msra.mxu0 0.0
        %2289 = vmatprep.subr.mxu0 0.0
        %2290 = vmatpush1.msra.mxu0 0.0
        %2291 = vmatprep.subr.mxu0 0.0
        %2292 = vmatpush1.msra.mxu0 0.0
        %2293 = vmatprep.subr.mxu0 0.0
        %2294 = vmatpush1.msra.mxu0 0.0
        %2295 = vmatprep.subr.mxu0 0.0
        %2296 = vmatpush1.msra.mxu0 0.0
        %2297 = vmatprep.mubr.f32.mxu0 0.0
        %2298 = vmatmul.mubr.f32.gmra.mrb[0].mxu0 %v1805
        %v2299 = vpop.f32.mrb[0].mxu0
        %v2300 = vadd.f32 %v1654, %v2299
        %v2301 = vpop.f32.mrb[0].mxu0
        %v2302 = vadd.f32 %v1658, %v2301
        %2303 = vdwg.mxu0
        %2304 = vmatprep.subr.mxu0 %v1528
        %2305 = vmatpush1.msra.mxu0 %v1527
        %2306 = vmatprep.subr.mxu0 %v1568
        %2307 = vmatpush1.msra.mxu0 %v1567
        %2308 = vmatprep.subr.mxu0 0.0
        %2309 = vmatpush1.msra.mxu0 0.0
        %2310 = vmatprep.subr.mxu0 0.0
        %2311 = vmatpush1.msra.mxu0 0.0
        %2312 = vmatprep.subr.mxu0 0.0
        %2313 = vmatpush1.msra.mxu0 0.0
        %2314 = vmatprep.subr.mxu0 0.0
        %2315 = vmatpush1.msra.mxu0 0.0
        %2316 = vmatprep.subr.mxu0 0.0
        %2317 = vmatpush1.msra.mxu0 0.0
        %2318 = vmatprep.subr.mxu0 0.0
        %2319 = vmatpush1.msra.mxu0 0.0
        %2320 = vmatprep.subr.mxu0 0.0
        %2321 = vmatpush1.msra.mxu0 0.0
        %2322 = vmatprep.subr.mxu0 0.0
        %2323 = vmatpush1.msra.mxu0 0.0
        %2324 = vmatprep.subr.mxu0 0.0
        %2325 = vmatpush1.msra.mxu0 0.0
        %2326 = vmatprep.subr.mxu0 0.0
        %2327 = vmatpush1.msra.mxu0 0.0
        %2328 = vmatprep.subr.mxu0 0.0
        %2329 = vmatpush1.msra.mxu0 0.0
        %2330 = vmatprep.subr.mxu0 0.0
        %2331 = vmatpush1.msra.mxu0 0.0
        %2332 = vmatprep.subr.mxu0 0.0
        %2333 = vmatpush1.msra.mxu0 0.0
        %2334 = vmatprep.subr.mxu0 0.0
        %2335 = vmatpush1.msra.mxu0 0.0
        %2336 = vmatprep.subr.mxu0 0.0
        %2337 = vmatpush1.msra.mxu0 0.0
        %2338 = vmatprep.subr.mxu0 0.0
        %2339 = vmatpush1.msra.mxu0 0.0
        %2340 = vmatprep.subr.mxu0 0.0
        %2341 = vmatpush1.msra.mxu0 0.0
        %2342 = vmatprep.subr.mxu0 0.0
        %2343 = vmatpush1.msra.mxu0 0.0
        %2344 = vmatprep.subr.mxu0 0.0
        %2345 = vmatpush1.msra.mxu0 0.0
        %2346 = vmatprep.subr.mxu0 0.0
        %2347 = vmatpush1.msra.mxu0 0.0
        %2348 = vmatprep.subr.mxu0 0.0
        %2349 = vmatpush1.msra.mxu0 0.0
        %2350 = vmatprep.subr.mxu0 0.0
        %2351 = vmatpush1.msra.mxu0 0.0
        %2352 = vmatprep.subr.mxu0 0.0
        %2353 = vmatpush1.msra.mxu0 0.0
        %2354 = vmatprep.subr.mxu0 0.0
        %2355 = vmatpush1.msra.mxu0 0.0
        %2356 = vmatprep.subr.mxu0 0.0
        %2357 = vmatpush1.msra.mxu0 0.0
        %2358 = vmatprep.subr.mxu0 0.0
        %2359 = vmatpush1.msra.mxu0 0.0
        %2360 = vmatprep.subr.mxu0 0.0
        %2361 = vmatpush1.msra.mxu0 0.0
        %2362 = vmatprep.subr.mxu0 0.0
        %2363 = vmatpush1.msra.mxu0 0.0
        %2364 = vmatprep.subr.mxu0 0.0
        %2365 = vmatpush1.msra.mxu0 0.0
        %2366 = vmatprep.subr.mxu0 0.0
        %2367 = vmatpush1.msra.mxu0 0.0
        %2368 = vmatprep.mubr.f32.mxu0 0.0
        %2369 = vmatmul.mubr.f32.gmra.mrb[0].mxu0 %v1805
        %v2370 = vpop.f32.mrb[0].mxu0
        %v2371 = vadd.f32 %v1662, %v2370
        %v2372 = vpop.f32.mrb[0].mxu0
        %v2373 = vadd.f32 %v1666, %v2372
        %2374 = vdwg.mxu0
        %2375 = vmatprep.subr.mxu0 %v1530
        %2376 = vmatpush1.msra.mxu0 %v1529
        %2377 = vmatprep.subr.mxu0 %v1570
        %2378 = vmatpush1.msra.mxu0 %v1569
        %2379 = vmatprep.subr.mxu0 0.0
        %2380 = vmatpush1.msra.mxu0 0.0
        %2381 = vmatprep.subr.mxu0 0.0
        %2382 = vmatpush1.msra.mxu0 0.0
        %2383 = vmatprep.subr.mxu0 0.0
        %2384 = vmatpush1.msra.mxu0 0.0
        %2385 = vmatprep.subr.mxu0 0.0
        %2386 = vmatpush1.msra.mxu0 0.0
        %2387 = vmatprep.subr.mxu0 0.0
        %2388 = vmatpush1.msra.mxu0 0.0
        %2389 = vmatprep.subr.mxu0 0.0
        %2390 = vmatpush1.msra.mxu0 0.0
        %2391 = vmatprep.subr.mxu0 0.0
        %2392 = vmatpush1.msra.mxu0 0.0
        %2393 = vmatprep.subr.mxu0 0.0
        %2394 = vmatpush1.msra.mxu0 0.0
        %2395 = vmatprep.subr.mxu0 0.0
        %2396 = vmatpush1.msra.mxu0 0.0
        %2397 = vmatprep.subr.mxu0 0.0
        %2398 = vmatpush1.msra.mxu0 0.0
        %2399 = vmatprep.subr.mxu0 0.0
        %2400 = vmatpush1.msra.mxu0 0.0
        %2401 = vmatprep.subr.mxu0 0.0
        %2402 = vmatpush1.msra.mxu0 0.0
        %2403 = vmatprep.subr.mxu0 0.0
        %2404 = vmatpush1.msra.mxu0 0.0
        %2405 = vmatprep.subr.mxu0 0.0
        %2406 = vmatpush1.msra.mxu0 0.0
        %2407 = vmatprep.subr.mxu0 0.0
        %2408 = vmatpush1.msra.mxu0 0.0
        %2409 = vmatprep.subr.mxu0 0.0
        %2410 = vmatpush1.msra.mxu0 0.0
        %2411 = vmatprep.subr.mxu0 0.0
        %2412 = vmatpush1.msra.mxu0 0.0
        %2413 = vmatprep.subr.mxu0 0.0
        %2414 = vmatpush1.msra.mxu0 0.0
        %2415 = vmatprep.subr.mxu0 0.0
        %2416 = vmatpush1.msra.mxu0 0.0
        %2417 = vmatprep.subr.mxu0 0.0
        %2418 = vmatpush1.msra.mxu0 0.0
        %2419 = vmatprep.subr.mxu0 0.0
        %2420 = vmatpush1.msra.mxu0 0.0
        %2421 = vmatprep.subr.mxu0 0.0
        %2422 = vmatpush1.msra.mxu0 0.0
        %2423 = vmatprep.subr.mxu0 0.0
        %2424 = vmatpush1.msra.mxu0 0.0
        %2425 = vmatprep.subr.mxu0 0.0
        %2426 = vmatpush1.msra.mxu0 0.0
        %2427 = vmatprep.subr.mxu0 0.0
        %2428 = vmatpush1.msra.mxu0 0.0
        %2429 = vmatprep.subr.mxu0 0.0
        %2430 = vmatpush1.msra.mxu0 0.0
        %2431 = vmatprep.subr.mxu0 0.0
        %2432 = vmatpush1.msra.mxu0 0.0
        %2433 = vmatprep.subr.mxu0 0.0
        %2434 = vmatpush1.msra.mxu0 0.0
        %2435 = vmatprep.subr.mxu0 0.0
        %2436 = vmatpush1.msra.mxu0 0.0
        %2437 = vmatprep.subr.mxu0 0.0
        %2438 = vmatpush1.msra.mxu0 0.0
        %2439 = vmatprep.mubr.f32.mxu0 0.0
        %2440 = vmatmul.mubr.f32.gmra.mrb[0].mxu0 %v1805
        %v2441 = vpop.f32.mrb[0].mxu0
        %v2442 = vadd.f32 %v1670, %v2441
        %v2443 = vpop.f32.mrb[0].mxu0
        %v2444 = vadd.f32 %v1674, %v2443
        %2445 = vdwg.mxu0
        %2446 = vmatprep.subr.mxu0 %v1532
        %2447 = vmatpush1.msra.mxu0 %v1531
        %2448 = vmatprep.subr.mxu0 %v1572
        %2449 = vmatpush1.msra.mxu0 %v1571
        %2450 = vmatprep.subr.mxu0 0.0
        %2451 = vmatpush1.msra.mxu0 0.0
        %2452 = vmatprep.subr.mxu0 0.0
        %2453 = vmatpush1.msra.mxu0 0.0
        %2454 = vmatprep.subr.mxu0 0.0
        %2455 = vmatpush1.msra.mxu0 0.0
        %2456 = vmatprep.subr.mxu0 0.0
        %2457 = vmatpush1.msra.mxu0 0.0
        %2458 = vmatprep.subr.mxu0 0.0
        %2459 = vmatpush1.msra.mxu0 0.0
        %2460 = vmatprep.subr.mxu0 0.0
        %2461 = vmatpush1.msra.mxu0 0.0
        %2462 = vmatprep.subr.mxu0 0.0
        %2463 = vmatpush1.msra.mxu0 0.0
        %2464 = vmatprep.subr.mxu0 0.0
        %2465 = vmatpush1.msra.mxu0 0.0
        %2466 = vmatprep.subr.mxu0 0.0
        %2467 = vmatpush1.msra.mxu0 0.0
        %2468 = vmatprep.subr.mxu0 0.0
        %2469 = vmatpush1.msra.mxu0 0.0
        %2470 = vmatprep.subr.mxu0 0.0
        %2471 = vmatpush1.msra.mxu0 0.0
        %2472 = vmatprep.subr.mxu0 0.0
        %2473 = vmatpush1.msra.mxu0 0.0
        %2474 = vmatprep.subr.mxu0 0.0
        %2475 = vmatpush1.msra.mxu0 0.0
        %2476 = vmatprep.subr.mxu0 0.0
        %2477 = vmatpush1.msra.mxu0 0.0
        %2478 = vmatprep.subr.mxu0 0.0
        %2479 = vmatpush1.msra.mxu0 0.0
        %2480 = vmatprep.subr.mxu0 0.0
        %2481 = vmatpush1.msra.mxu0 0.0
        %2482 = vmatprep.subr.mxu0 0.0
        %2483 = vmatpush1.msra.mxu0 0.0
        %2484 = vmatprep.subr.mxu0 0.0
        %2485 = vmatpush1.msra.mxu0 0.0
        %2486 = vmatprep.subr.mxu0 0.0
        %2487 = vmatpush1.msra.mxu0 0.0
        %2488 = vmatprep.subr.mxu0 0.0
        %2489 = vmatpush1.msra.mxu0 0.0
        %2490 = vmatprep.subr.mxu0 0.0
        %2491 = vmatpush1.msra.mxu0 0.0
        %2492 = vmatprep.subr.mxu0 0.0
        %2493 = vmatpush1.msra.mxu0 0.0
        %2494 = vmatprep.subr.mxu0 0.0
        %2495 = vmatpush1.msra.mxu0 0.0
        %2496 = vmatprep.subr.mxu0 0.0
        %2497 = vmatpush1.msra.mxu0 0.0
        %2498 = vmatprep.subr.mxu0 0.0
        %2499 = vmatpush1.msra.mxu0 0.0
        %2500 = vmatprep.subr.mxu0 0.0
        %2501 = vmatpush1.msra.mxu0 0.0
        %2502 = vmatprep.subr.mxu0 0.0
        %2503 = vmatpush1.msra.mxu0 0.0
        %2504 = vmatprep.subr.mxu0 0.0
        %2505 = vmatpush1.msra.mxu0 0.0
        %2506 = vmatprep.subr.mxu0 0.0
        %2507 = vmatpush1.msra.mxu0 0.0
        %2508 = vmatprep.subr.mxu0 0.0
        %2509 = vmatpush1.msra.mxu0 0.0
        %2510 = vmatprep.mubr.f32.mxu0 0.0
        %2511 = vmatmul.mubr.f32.gmra.mrb[0].mxu0 %v1805
        %v2512 = vpop.f32.mrb[0].mxu0
        %v2513 = vadd.f32 %v1678, %v2512
        %v2514 = vpop.f32.mrb[0].mxu0
        %v2515 = vadd.f32 %v1682, %v2514
        %2516 = vdwg.mxu0
        %2517 = vmatprep.subr.mxu0 %v1534
        %2518 = vmatpush1.msra.mxu0 %v1533
        %2519 = vmatprep.subr.mxu0 %v1574
        %2520 = vmatpush1.msra.mxu0 %v1573
        %2521 = vmatprep.subr.mxu0 0.0
        %2522 = vmatpush1.msra.mxu0 0.0
        %2523 = vmatprep.subr.mxu0 0.0
        %2524 = vmatpush1.msra.mxu0 0.0
        %2525 = vmatprep.subr.mxu0 0.0
        %2526 = vmatpush1.msra.mxu0 0.0
        %2527 = vmatprep.subr.mxu0 0.0
        %2528 = vmatpush1.msra.mxu0 0.0
        %2529 = vmatprep.subr.mxu0 0.0
        %2530 = vmatpush1.msra.mxu0 0.0
        %2531 = vmatprep.subr.mxu0 0.0
        %2532 = vmatpush1.msra.mxu0 0.0
        %2533 = vmatprep.subr.mxu0 0.0
        %2534 = vmatpush1.msra.mxu0 0.0
        %2535 = vmatprep.subr.mxu0 0.0
        %2536 = vmatpush1.msra.mxu0 0.0
        %2537 = vmatprep.subr.mxu0 0.0
        %2538 = vmatpush1.msra.mxu0 0.0
        %2539 = vmatprep.subr.mxu0 0.0
        %2540 = vmatpush1.msra.mxu0 0.0
        %2541 = vmatprep.subr.mxu0 0.0
        %2542 = vmatpush1.msra.mxu0 0.0
        %2543 = vmatprep.subr.mxu0 0.0
        %2544 = vmatpush1.msra.mxu0 0.0
        %2545 = vmatprep.subr.mxu0 0.0
        %2546 = vmatpush1.msra.mxu0 0.0
        %2547 = vmatprep.subr.mxu0 0.0
        %2548 = vmatpush1.msra.mxu0 0.0
        %2549 = vmatprep.subr.mxu0 0.0
        %2550 = vmatpush1.msra.mxu0 0.0
        %2551 = vmatprep.subr.mxu0 0.0
        %2552 = vmatpush1.msra.mxu0 0.0
        %2553 = vmatprep.subr.mxu0 0.0
        %2554 = vmatpush1.msra.mxu0 0.0
        %2555 = vmatprep.subr.mxu0 0.0
        %2556 = vmatpush1.msra.mxu0 0.0
        %2557 = vmatprep.subr.mxu0 0.0
        %2558 = vmatpush1.msra.mxu0 0.0
        %2559 = vmatprep.subr.mxu0 0.0
        %2560 = vmatpush1.msra.mxu0 0.0
        %2561 = vmatprep.subr.mxu0 0.0
        %2562 = vmatpush1.msra.mxu0 0.0
        %2563 = vmatprep.subr.mxu0 0.0
        %2564 = vmatpush1.msra.mxu0 0.0
        %2565 = vmatprep.subr.mxu0 0.0
        %2566 = vmatpush1.msra.mxu0 0.0
        %2567 = vmatprep.subr.mxu0 0.0
        %2568 = vmatpush1.msra.mxu0 0.0
        %2569 = vmatprep.subr.mxu0 0.0
        %2570 = vmatpush1.msra.mxu0 0.0
        %2571 = vmatprep.subr.mxu0 0.0
        %2572 = vmatpush1.msra.mxu0 0.0
        %2573 = vmatprep.subr.mxu0 0.0
        %2574 = vmatpush1.msra.mxu0 0.0
        %2575 = vmatprep.subr.mxu0 0.0
        %2576 = vmatpush1.msra.mxu0 0.0
        %2577 = vmatprep.subr.mxu0 0.0
        %2578 = vmatpush1.msra.mxu0 0.0
        %2579 = vmatprep.subr.mxu0 0.0
        %2580 = vmatpush1.msra.mxu0 0.0
        %2581 = vmatprep.mubr.f32.mxu0 0.0
        %2582 = vmatmul.mubr.f32.gmra.mrb[0].mxu0 %v1805
        %v2583 = vpop.f32.mrb[0].mxu0
        %v2584 = vadd.f32 %v1686, %v2583
        %v2585 = vpop.f32.mrb[0].mxu0
        %v2586 = vadd.f32 %v1690, %v2585
        %2587 = vdwg.mxu0
        %2588 = vmatprep.subr.mxu0 %v1536
        %2589 = vmatpush1.msra.mxu0 %v1535
        %2590 = vmatprep.subr.mxu0 %v1576
        %2591 = vmatpush1.msra.mxu0 %v1575
        %2592 = vmatprep.subr.mxu0 0.0
        %2593 = vmatpush1.msra.mxu0 0.0
        %2594 = vmatprep.subr.mxu0 0.0
        %2595 = vmatpush1.msra.mxu0 0.0
        %2596 = vmatprep.subr.mxu0 0.0
        %2597 = vmatpush1.msra.mxu0 0.0
        %2598 = vmatprep.subr.mxu0 0.0
        %2599 = vmatpush1.msra.mxu0 0.0
        %2600 = vmatprep.subr.mxu0 0.0
        %2601 = vmatpush1.msra.mxu0 0.0
        %2602 = vmatprep.subr.mxu0 0.0
        %2603 = vmatpush1.msra.mxu0 0.0
        %2604 = vmatprep.subr.mxu0 0.0
        %2605 = vmatpush1.msra.mxu0 0.0
        %2606 = vmatprep.subr.mxu0 0.0
        %2607 = vmatpush1.msra.mxu0 0.0
        %2608 = vmatprep.subr.mxu0 0.0
        %2609 = vmatpush1.msra.mxu0 0.0
        %2610 = vmatprep.subr.mxu0 0.0
        %2611 = vmatpush1.msra.mxu0 0.0
        %2612 = vmatprep.subr.mxu0 0.0
        %2613 = vmatpush1.msra.mxu0 0.0
        %2614 = vmatprep.subr.mxu0 0.0
        %2615 = vmatpush1.msra.mxu0 0.0
        %2616 = vmatprep.subr.mxu0 0.0
        %2617 = vmatpush1.msra.mxu0 0.0
        %2618 = vmatprep.subr.mxu0 0.0
        %2619 = vmatpush1.msra.mxu0 0.0
        %2620 = vmatprep.subr.mxu0 0.0
        %2621 = vmatpush1.msra.mxu0 0.0
        %2622 = vmatprep.subr.mxu0 0.0
        %2623 = vmatpush1.msra.mxu0 0.0
        %2624 = vmatprep.subr.mxu0 0.0
        %2625 = vmatpush1.msra.mxu0 0.0
        %2626 = vmatprep.subr.mxu0 0.0
        %2627 = vmatpush1.msra.mxu0 0.0
        %2628 = vmatprep.subr.mxu0 0.0
        %2629 = vmatpush1.msra.mxu0 0.0
        %2630 = vmatprep.subr.mxu0 0.0
        %2631 = vmatpush1.msra.mxu0 0.0
        %2632 = vmatprep.subr.mxu0 0.0
        %2633 = vmatpush1.msra.mxu0 0.0
        %2634 = vmatprep.subr.mxu0 0.0
        %2635 = vmatpush1.msra.mxu0 0.0
        %2636 = vmatprep.subr.mxu0 0.0
        %2637 = vmatpush1.msra.mxu0 0.0
        %2638 = vmatprep.subr.mxu0 0.0
        %2639 = vmatpush1.msra.mxu0 0.0
        %2640 = vmatprep.subr.mxu0 0.0
        %2641 = vmatpush1.msra.mxu0 0.0
        %2642 = vmatprep.subr.mxu0 0.0
        %2643 = vmatpush1.msra.mxu0 0.0
        %2644 = vmatprep.subr.mxu0 0.0
        %2645 = vmatpush1.msra.mxu0 0.0
        %2646 = vmatprep.subr.mxu0 0.0
        %2647 = vmatpush1.msra.mxu0 0.0
        %2648 = vmatprep.subr.mxu0 0.0
        %2649 = vmatpush1.msra.mxu0 0.0
        %2650 = vmatprep.subr.mxu0 0.0
        %2651 = vmatpush1.msra.mxu0 0.0
        %2652 = vmatprep.mubr.f32.mxu0 0.0
        %2653 = vmatmul.mubr.f32.gmra.mrb[0].mxu0 %v1805
        %v2654 = vpop.f32.mrb[0].mxu0
        %v2655 = vadd.f32 %v1694, %v2654
        %v2656 = vpop.f32.mrb[0].mxu0
        %v2657 = vadd.f32 %v1698, %v2656
        %2658 = vdwg.mxu0
        %2659 = vmatprep.subr.mxu0 %v1538
        %2660 = vmatpush1.msra.mxu0 %v1537
        %2661 = vmatprep.subr.mxu0 %v1578
        %2662 = vmatpush1.msra.mxu0 %v1577
        %2663 = vmatprep.subr.mxu0 0.0
        %2664 = vmatpush1.msra.mxu0 0.0
        %2665 = vmatprep.subr.mxu0 0.0
        %2666 = vmatpush1.msra.mxu0 0.0
        %2667 = vmatprep.subr.mxu0 0.0
        %2668 = vmatpush1.msra.mxu0 0.0
        %2669 = vmatprep.subr.mxu0 0.0
        %2670 = vmatpush1.msra.mxu0 0.0
        %2671 = vmatprep.subr.mxu0 0.0
        %2672 = vmatpush1.msra.mxu0 0.0
        %2673 = vmatprep.subr.mxu0 0.0
        %2674 = vmatpush1.msra.mxu0 0.0
        %2675 = vmatprep.subr.mxu0 0.0
        %2676 = vmatpush1.msra.mxu0 0.0
        %2677 = vmatprep.subr.mxu0 0.0
        %2678 = vmatpush1.msra.mxu0 0.0
        %2679 = vmatprep.subr.mxu0 0.0
        %2680 = vmatpush1.msra.mxu0 0.0
        %2681 = vmatprep.subr.mxu0 0.0
        %2682 = vmatpush1.msra.mxu0 0.0
        %2683 = vmatprep.subr.mxu0 0.0
        %2684 = vmatpush1.msra.mxu0 0.0
        %2685 = vmatprep.subr.mxu0 0.0
        %2686 = vmatpush1.msra.mxu0 0.0
        %2687 = vmatprep.subr.mxu0 0.0
        %2688 = vmatpush1.msra.mxu0 0.0
        %2689 = vmatprep.subr.mxu0 0.0
        %2690 = vmatpush1.msra.mxu0 0.0
        %2691 = vmatprep.subr.mxu0 0.0
        %2692 = vmatpush1.msra.mxu0 0.0
        %2693 = vmatprep.subr.mxu0 0.0
        %2694 = vmatpush1.msra.mxu0 0.0
        %2695 = vmatprep.subr.mxu0 0.0
        %2696 = vmatpush1.msra.mxu0 0.0
        %2697 = vmatprep.subr.mxu0 0.0
        %2698 = vmatpush1.msra.mxu0 0.0
        %2699 = vmatprep.subr.mxu0 0.0
        %2700 = vmatpush1.msra.mxu0 0.0
        %2701 = vmatprep.subr.mxu0 0.0
        %2702 = vmatpush1.msra.mxu0 0.0
        %2703 = vmatprep.subr.mxu0 0.0
        %2704 = vmatpush1.msra.mxu0 0.0
        %2705 = vmatprep.subr.mxu0 0.0
        %2706 = vmatpush1.msra.mxu0 0.0
        %2707 = vmatprep.subr.mxu0 0.0
        %2708 = vmatpush1.msra.mxu0 0.0
        %2709 = vmatprep.subr.mxu0 0.0
        %2710 = vmatpush1.msra.mxu0 0.0
        %2711 = vmatprep.subr.mxu0 0.0
        %2712 = vmatpush1.msra.mxu0 0.0
        %2713 = vmatprep.subr.mxu0 0.0
        %2714 = vmatpush1.msra.mxu0 0.0
        %2715 = vmatprep.subr.mxu0 0.0
        %2716 = vmatpush1.msra.mxu0 0.0
        %2717 = vmatprep.subr.mxu0 0.0
        %2718 = vmatpush1.msra.mxu0 0.0
        %2719 = vmatprep.subr.mxu0 0.0
        %2720 = vmatpush1.msra.mxu0 0.0
        %2721 = vmatprep.subr.mxu0 0.0
        %2722 = vmatpush1.msra.mxu0 0.0
        %2723 = vmatprep.mubr.f32.mxu0 0.0
        %2724 = vmatmul.mubr.f32.gmra.mrb[0].mxu0 %v1805
        %v2725 = vpop.f32.mrb[0].mxu0
        %v2726 = vadd.f32 %v1702, %v2725
        %v2727 = vpop.f32.mrb[0].mxu0
        %v2728 = vadd.f32 %v1706, %v2727
        %2729 = vdwg.mxu0
        %2730 = vmatprep.subr.mxu0 %v1540
        %2731 = vmatpush1.msra.mxu0 %v1539
        %2732 = vmatprep.subr.mxu0 %v1580
        %2733 = vmatpush1.msra.mxu0 %v1579
        %2734 = vmatprep.subr.mxu0 0.0
        %2735 = vmatpush1.msra.mxu0 0.0
        %2736 = vmatprep.subr.mxu0 0.0
        %2737 = vmatpush1.msra.mxu0 0.0
        %2738 = vmatprep.subr.mxu0 0.0
        %2739 = vmatpush1.msra.mxu0 0.0
        %2740 = vmatprep.subr.mxu0 0.0
        %2741 = vmatpush1.msra.mxu0 0.0
        %2742 = vmatprep.subr.mxu0 0.0
        %2743 = vmatpush1.msra.mxu0 0.0
        %2744 = vmatprep.subr.mxu0 0.0
        %2745 = vmatpush1.msra.mxu0 0.0
        %2746 = vmatprep.subr.mxu0 0.0
        %2747 = vmatpush1.msra.mxu0 0.0
        %2748 = vmatprep.subr.mxu0 0.0
        %2749 = vmatpush1.msra.mxu0 0.0
        %2750 = vmatprep.subr.mxu0 0.0
        %2751 = vmatpush1.msra.mxu0 0.0
        %2752 = vmatprep.subr.mxu0 0.0
        %2753 = vmatpush1.msra.mxu0 0.0
        %2754 = vmatprep.subr.mxu0 0.0
        %2755 = vmatpush1.msra.mxu0 0.0
        %2756 = vmatprep.subr.mxu0 0.0
        %2757 = vmatpush1.msra.mxu0 0.0
        %2758 = vmatprep.subr.mxu0 0.0
        %2759 = vmatpush1.msra.mxu0 0.0
        %2760 = vmatprep.subr.mxu0 0.0
        %2761 = vmatpush1.msra.mxu0 0.0
        %2762 = vmatprep.subr.mxu0 0.0
        %2763 = vmatpush1.msra.mxu0 0.0
        %2764 = vmatprep.subr.mxu0 0.0
        %2765 = vmatpush1.msra.mxu0 0.0
        %2766 = vmatprep.subr.mxu0 0.0
        %2767 = vmatpush1.msra.mxu0 0.0
        %2768 = vmatprep.subr.mxu0 0.0
        %2769 = vmatpush1.msra.mxu0 0.0
        %2770 = vmatprep.subr.mxu0 0.0
        %2771 = vmatpush1.msra.mxu0 0.0
        %2772 = vmatprep.subr.mxu0 0.0
        %2773 = vmatpush1.msra.mxu0 0.0
        %2774 = vmatprep.subr.mxu0 0.0
        %2775 = vmatpush1.msra.mxu0 0.0
        %2776 = vmatprep.subr.mxu0 0.0
        %2777 = vmatpush1.msra.mxu0 0.0
        %2778 = vmatprep.subr.mxu0 0.0
        %2779 = vmatpush1.msra.mxu0 0.0
        %2780 = vmatprep.subr.mxu0 0.0
        %2781 = vmatpush1.msra.mxu0 0.0
        %2782 = vmatprep.subr.mxu0 0.0
        %2783 = vmatpush1.msra.mxu0 0.0
        %2784 = vmatprep.subr.mxu0 0.0
        %2785 = vmatpush1.msra.mxu0 0.0
        %2786 = vmatprep.subr.mxu0 0.0
        %2787 = vmatpush1.msra.mxu0 0.0
        %2788 = vmatprep.subr.mxu0 0.0
        %2789 = vmatpush1.msra.mxu0 0.0
        %2790 = vmatprep.subr.mxu0 0.0
        %2791 = vmatpush1.msra.mxu0 0.0
        %2792 = vmatprep.subr.mxu0 0.0
        %2793 = vmatpush1.msra.mxu0 0.0
        %2794 = vmatprep.mubr.f32.mxu0 0.0
        %2795 = vmatmul.mubr.f32.gmra.mrb[0].mxu0 %v1805
        %v2796 = vpop.f32.mrb[0].mxu0
        %v2797 = vadd.f32 %v1710, %v2796
        %v2798 = vpop.f32.mrb[0].mxu0
        %v2799 = vadd.f32 %v1714, %v2798
        %2800 = vdwg.mxu0
        %2801 = vmatprep.subr.mxu0 %v1542
        %2802 = vmatpush1.msra.mxu0 %v1541
        %2803 = vmatprep.subr.mxu0 %v1582
        %2804 = vmatpush1.msra.mxu0 %v1581
        %2805 = vmatprep.subr.mxu0 0.0
        %2806 = vmatpush1.msra.mxu0 0.0
        %2807 = vmatprep.subr.mxu0 0.0
        %2808 = vmatpush1.msra.mxu0 0.0
        %2809 = vmatprep.subr.mxu0 0.0
        %2810 = vmatpush1.msra.mxu0 0.0
        %2811 = vmatprep.subr.mxu0 0.0
        %2812 = vmatpush1.msra.mxu0 0.0
        %2813 = vmatprep.subr.mxu0 0.0
        %2814 = vmatpush1.msra.mxu0 0.0
        %2815 = vmatprep.subr.mxu0 0.0
        %2816 = vmatpush1.msra.mxu0 0.0
        %2817 = vmatprep.subr.mxu0 0.0
        %2818 = vmatpush1.msra.mxu0 0.0
        %2819 = vmatprep.subr.mxu0 0.0
        %2820 = vmatpush1.msra.mxu0 0.0
        %2821 = vmatprep.subr.mxu0 0.0
        %2822 = vmatpush1.msra.mxu0 0.0
        %2823 = vmatprep.subr.mxu0 0.0
        %2824 = vmatpush1.msra.mxu0 0.0
        %2825 = vmatprep.subr.mxu0 0.0
        %2826 = vmatpush1.msra.mxu0 0.0
        %2827 = vmatprep.subr.mxu0 0.0
        %2828 = vmatpush1.msra.mxu0 0.0
        %2829 = vmatprep.subr.mxu0 0.0
        %2830 = vmatpush1.msra.mxu0 0.0
        %2831 = vmatprep.subr.mxu0 0.0
        %2832 = vmatpush1.msra.mxu0 0.0
        %2833 = vmatprep.subr.mxu0 0.0
        %2834 = vmatpush1.msra.mxu0 0.0
        %2835 = vmatprep.subr.mxu0 0.0
        %2836 = vmatpush1.msra.mxu0 0.0
        %2837 = vmatprep.subr.mxu0 0.0
        %2838 = vmatpush1.msra.mxu0 0.0
        %2839 = vmatprep.subr.mxu0 0.0
        %2840 = vmatpush1.msra.mxu0 0.0
        %2841 = vmatprep.subr.mxu0 0.0
        %2842 = vmatpush1.msra.mxu0 0.0
        %2843 = vmatprep.subr.mxu0 0.0
        %2844 = vmatpush1.msra.mxu0 0.0
        %2845 = vmatprep.subr.mxu0 0.0
        %2846 = vmatpush1.msra.mxu0 0.0
        %2847 = vmatprep.subr.mxu0 0.0
        %2848 = vmatpush1.msra.mxu0 0.0
        %2849 = vmatprep.subr.mxu0 0.0
        %2850 = vmatpush1.msra.mxu0 0.0
        %2851 = vmatprep.subr.mxu0 0.0
        %2852 = vmatpush1.msra.mxu0 0.0
        %2853 = vmatprep.subr.mxu0 0.0
        %2854 = vmatpush1.msra.mxu0 0.0
        %2855 = vmatprep.subr.mxu0 0.0
        %2856 = vmatpush1.msra.mxu0 0.0
        %2857 = vmatprep.subr.mxu0 0.0
        %2858 = vmatpush1.msra.mxu0 0.0
        %2859 = vmatprep.subr.mxu0 0.0
        %2860 = vmatpush1.msra.mxu0 0.0
        %2861 = vmatprep.subr.mxu0 0.0
        %2862 = vmatpush1.msra.mxu0 0.0
        %2863 = vmatprep.subr.mxu0 0.0
        %2864 = vmatpush1.msra.mxu0 0.0
        %2865 = vmatprep.mubr.f32.mxu0 0.0
        %2866 = vmatmul.mubr.f32.gmra.mrb[0].mxu0 %v1805
        %v2867 = vpop.f32.mrb[0].mxu0
        %v2868 = vadd.f32 %v1718, %v2867
        %v2869 = vpop.f32.mrb[0].mxu0
        %v2870 = vadd.f32 %v1722, %v2869
        %2871 = vdwg.mxu0
        %2872 = vmatprep.subr.mxu0 %v1544
        %2873 = vmatpush1.msra.mxu0 %v1543
        %2874 = vmatprep.subr.mxu0 %v1584
        %2875 = vmatpush1.msra.mxu0 %v1583
        %2876 = vmatprep.subr.mxu0 0.0
        %2877 = vmatpush1.msra.mxu0 0.0
        %2878 = vmatprep.subr.mxu0 0.0
        %2879 = vmatpush1.msra.mxu0 0.0
        %2880 = vmatprep.subr.mxu0 0.0
        %2881 = vmatpush1.msra.mxu0 0.0
        %2882 = vmatprep.subr.mxu0 0.0
        %2883 = vmatpush1.msra.mxu0 0.0
        %2884 = vmatprep.subr.mxu0 0.0
        %2885 = vmatpush1.msra.mxu0 0.0
        %2886 = vmatprep.subr.mxu0 0.0
        %2887 = vmatpush1.msra.mxu0 0.0
        %2888 = vmatprep.subr.mxu0 0.0
        %2889 = vmatpush1.msra.mxu0 0.0
        %2890 = vmatprep.subr.mxu0 0.0
        %2891 = vmatpush1.msra.mxu0 0.0
        %2892 = vmatprep.subr.mxu0 0.0
        %2893 = vmatpush1.msra.mxu0 0.0
        %2894 = vmatprep.subr.mxu0 0.0
        %2895 = vmatpush1.msra.mxu0 0.0
        %2896 = vmatprep.subr.mxu0 0.0
        %2897 = vmatpush1.msra.mxu0 0.0
        %2898 = vmatprep.subr.mxu0 0.0
        %2899 = vmatpush1.msra.mxu0 0.0
        %2900 = vmatprep.subr.mxu0 0.0
        %2901 = vmatpush1.msra.mxu0 0.0
        %2902 = vmatprep.subr.mxu0 0.0
        %2903 = vmatpush1.msra.mxu0 0.0
        %2904 = vmatprep.subr.mxu0 0.0
        %2905 = vmatpush1.msra.mxu0 0.0
        %2906 = vmatprep.subr.mxu0 0.0
        %2907 = vmatpush1.msra.mxu0 0.0
        %2908 = vmatprep.subr.mxu0 0.0
        %2909 = vmatpush1.msra.mxu0 0.0
        %2910 = vmatprep.subr.mxu0 0.0
        %2911 = vmatpush1.msra.mxu0 0.0
        %2912 = vmatprep.subr.mxu0 0.0
        %2913 = vmatpush1.msra.mxu0 0.0
        %2914 = vmatprep.subr.mxu0 0.0
        %2915 = vmatpush1.msra.mxu0 0.0
        %2916 = vmatprep.subr.mxu0 0.0
        %2917 = vmatpush1.msra.mxu0 0.0
        %2918 = vmatprep.subr.mxu0 0.0
        %2919 = vmatpush1.msra.mxu0 0.0
        %2920 = vmatprep.subr.mxu0 0.0
        %2921 = vmatpush1.msra.mxu0 0.0
        %2922 = vmatprep.subr.mxu0 0.0
        %2923 = vmatpush1.msra.mxu0 0.0
        %2924 = vmatprep.subr.mxu0 0.0
        %2925 = vmatpush1.msra.mxu0 0.0
        %2926 = vmatprep.subr.mxu0 0.0
        %2927 = vmatpush1.msra.mxu0 0.0
        %2928 = vmatprep.subr.mxu0 0.0
        %2929 = vmatpush1.msra.mxu0 0.0
        %2930 = vmatprep.subr.mxu0 0.0
        %2931 = vmatpush1.msra.mxu0 0.0
        %2932 = vmatprep.subr.mxu0 0.0
        %2933 = vmatpush1.msra.mxu0 0.0
        %2934 = vmatprep.subr.mxu0 0.0
        %2935 = vmatpush1.msra.mxu0 0.0
        %2936 = vmatprep.mubr.f32.mxu0 0.0
        %2937 = vmatmul.mubr.f32.gmra.mrb[0].mxu0 %v1805
        %v2938 = vpop.f32.mrb[0].mxu0
        %v2939 = vadd.f32 %v1726, %v2938
        %v2940 = vpop.f32.mrb[0].mxu0
        %v2941 = vadd.f32 %v1730, %v2940
        %2942 = vdwg.mxu0
        %2943 = vmatprep.subr.mxu0 %v1546
        %2944 = vmatpush1.msra.mxu0 %v1545
        %2945 = vmatprep.subr.mxu0 %v1586
        %2946 = vmatpush1.msra.mxu0 %v1585
        %2947 = vmatprep.subr.mxu0 0.0
        %2948 = vmatpush1.msra.mxu0 0.0
        %2949 = vmatprep.subr.mxu0 0.0
        %2950 = vmatpush1.msra.mxu0 0.0
        %2951 = vmatprep.subr.mxu0 0.0
        %2952 = vmatpush1.msra.mxu0 0.0
        %2953 = vmatprep.subr.mxu0 0.0
        %2954 = vmatpush1.msra.mxu0 0.0
        %2955 = vmatprep.subr.mxu0 0.0
        %2956 = vmatpush1.msra.mxu0 0.0
        %2957 = vmatprep.subr.mxu0 0.0
        %2958 = vmatpush1.msra.mxu0 0.0
        %2959 = vmatprep.subr.mxu0 0.0
        %2960 = vmatpush1.msra.mxu0 0.0
        %2961 = vmatprep.subr.mxu0 0.0
        %2962 = vmatpush1.msra.mxu0 0.0
        %2963 = vmatprep.subr.mxu0 0.0
        %2964 = vmatpush1.msra.mxu0 0.0
        %2965 = vmatprep.subr.mxu0 0.0
        %2966 = vmatpush1.msra.mxu0 0.0
        %2967 = vmatprep.subr.mxu0 0.0
        %2968 = vmatpush1.msra.mxu0 0.0
        %2969 = vmatprep.subr.mxu0 0.0
        %2970 = vmatpush1.msra.mxu0 0.0
        %2971 = vmatprep.subr.mxu0 0.0
        %2972 = vmatpush1.msra.mxu0 0.0
        %2973 = vmatprep.subr.mxu0 0.0
        %2974 = vmatpush1.msra.mxu0 0.0
        %2975 = vmatprep.subr.mxu0 0.0
        %2976 = vmatpush1.msra.mxu0 0.0
        %2977 = vmatprep.subr.mxu0 0.0
        %2978 = vmatpush1.msra.mxu0 0.0
        %2979 = vmatprep.subr.mxu0 0.0
        %2980 = vmatpush1.msra.mxu0 0.0
        %2981 = vmatprep.subr.mxu0 0.0
        %2982 = vmatpush1.msra.mxu0 0.0
        %2983 = vmatprep.subr.mxu0 0.0
        %2984 = vmatpush1.msra.mxu0 0.0
        %2985 = vmatprep.subr.mxu0 0.0
        %2986 = vmatpush1.msra.mxu0 0.0
        %2987 = vmatprep.subr.mxu0 0.0
        %2988 = vmatpush1.msra.mxu0 0.0
        %2989 = vmatprep.subr.mxu0 0.0
        %2990 = vmatpush1.msra.mxu0 0.0
        %2991 = vmatprep.subr.mxu0 0.0
        %2992 = vmatpush1.msra.mxu0 0.0
        %2993 = vmatprep.subr.mxu0 0.0
        %2994 = vmatpush1.msra.mxu0 0.0
        %2995 = vmatprep.subr.mxu0 0.0
        %2996 = vmatpush1.msra.mxu0 0.0
        %2997 = vmatprep.subr.mxu0 0.0
        %2998 = vmatpush1.msra.mxu0 0.0
        %2999 = vmatprep.subr.mxu0 0.0
        %3000 = vmatpush1.msra.mxu0 0.0
        %3001 = vmatprep.subr.mxu0 0.0
        %3002 = vmatpush1.msra.mxu0 0.0
        %3003 = vmatprep.subr.mxu0 0.0
        %3004 = vmatpush1.msra.mxu0 0.0
        %3005 = vmatprep.subr.mxu0 0.0
        %3006 = vmatpush1.msra.mxu0 0.0
        %3007 = vmatprep.mubr.f32.mxu0 0.0
        %3008 = vmatmul.mubr.f32.gmra.mrb[0].mxu0 %v1805
        %v3009 = vpop.f32.mrb[0].mxu0
        %v3010 = vadd.f32 %v1734, %v3009
        %v3011 = vpop.f32.mrb[0].mxu0
        %v3012 = vadd.f32 %v1738, %v3011
        %3013 = vdwg.mxu0
        %3014 = vmatprep.subr.mxu0 %v1548
        %3015 = vmatpush1.msra.mxu0 %v1547
        %3016 = vmatprep.subr.mxu0 %v1588
        %3017 = vmatpush1.msra.mxu0 %v1587
        %3018 = vmatprep.subr.mxu0 0.0
        %3019 = vmatpush1.msra.mxu0 0.0
        %3020 = vmatprep.subr.mxu0 0.0
        %3021 = vmatpush1.msra.mxu0 0.0
        %3022 = vmatprep.subr.mxu0 0.0
        %3023 = vmatpush1.msra.mxu0 0.0
        %3024 = vmatprep.subr.mxu0 0.0
        %3025 = vmatpush1.msra.mxu0 0.0
        %3026 = vmatprep.subr.mxu0 0.0
        %3027 = vmatpush1.msra.mxu0 0.0
        %3028 = vmatprep.subr.mxu0 0.0
        %3029 = vmatpush1.msra.mxu0 0.0
        %3030 = vmatprep.subr.mxu0 0.0
        %3031 = vmatpush1.msra.mxu0 0.0
        %3032 = vmatprep.subr.mxu0 0.0
        %3033 = vmatpush1.msra.mxu0 0.0
        %3034 = vmatprep.subr.mxu0 0.0
        %3035 = vmatpush1.msra.mxu0 0.0
        %3036 = vmatprep.subr.mxu0 0.0
        %3037 = vmatpush1.msra.mxu0 0.0
        %3038 = vmatprep.subr.mxu0 0.0
        %3039 = vmatpush1.msra.mxu0 0.0
        %3040 = vmatprep.subr.mxu0 0.0
        %3041 = vmatpush1.msra.mxu0 0.0
        %3042 = vmatprep.subr.mxu0 0.0
        %3043 = vmatpush1.msra.mxu0 0.0
        %3044 = vmatprep.subr.mxu0 0.0
        %3045 = vmatpush1.msra.mxu0 0.0
        %3046 = vmatprep.subr.mxu0 0.0
        %3047 = vmatpush1.msra.mxu0 0.0
        %3048 = vmatprep.subr.mxu0 0.0
        %3049 = vmatpush1.msra.mxu0 0.0
        %3050 = vmatprep.subr.mxu0 0.0
        %3051 = vmatpush1.msra.mxu0 0.0
        %3052 = vmatprep.subr.mxu0 0.0
        %3053 = vmatpush1.msra.mxu0 0.0
        %3054 = vmatprep.subr.mxu0 0.0
        %3055 = vmatpush1.msra.mxu0 0.0
        %3056 = vmatprep.subr.mxu0 0.0
        %3057 = vmatpush1.msra.mxu0 0.0
        %3058 = vmatprep.subr.mxu0 0.0
        %3059 = vmatpush1.msra.mxu0 0.0
        %3060 = vmatprep.subr.mxu0 0.0
        %3061 = vmatpush1.msra.mxu0 0.0
        %3062 = vmatprep.subr.mxu0 0.0
        %3063 = vmatpush1.msra.mxu0 0.0
        %3064 = vmatprep.subr.mxu0 0.0
        %3065 = vmatpush1.msra.mxu0 0.0
        %3066 = vmatprep.subr.mxu0 0.0
        %3067 = vmatpush1.msra.mxu0 0.0
        %3068 = vmatprep.subr.mxu0 0.0
        %3069 = vmatpush1.msra.mxu0 0.0
        %3070 = vmatprep.subr.mxu0 0.0
        %3071 = vmatpush1.msra.mxu0 0.0
        %3072 = vmatprep.subr.mxu0 0.0
        %3073 = vmatpush1.msra.mxu0 0.0
        %3074 = vmatprep.subr.mxu0 0.0
        %3075 = vmatpush1.msra.mxu0 0.0
        %3076 = vmatprep.subr.mxu0 0.0
        %3077 = vmatpush1.msra.mxu0 0.0
        %3078 = vmatprep.mubr.f32.mxu0 0.0
        %3079 = vmatmul.mubr.f32.gmra.mrb[0].mxu0 %v1805
        %v3080 = vpop.f32.mrb[0].mxu0
        %v3081 = vadd.f32 %v1742, %v3080
        %v3082 = vpop.f32.mrb[0].mxu0
        %v3083 = vadd.f32 %v1746, %v3082
        %3084 = vdwg.mxu0
        %3085 = vmatprep.subr.mxu0 %v1550
        %3086 = vmatpush1.msra.mxu0 %v1549
        %3087 = vmatprep.subr.mxu0 %v1590
        %3088 = vmatpush1.msra.mxu0 %v1589
        %3089 = vmatprep.subr.mxu0 0.0
        %3090 = vmatpush1.msra.mxu0 0.0
        %3091 = vmatprep.subr.mxu0 0.0
        %3092 = vmatpush1.msra.mxu0 0.0
        %3093 = vmatprep.subr.mxu0 0.0
        %3094 = vmatpush1.msra.mxu0 0.0
        %3095 = vmatprep.subr.mxu0 0.0
        %3096 = vmatpush1.msra.mxu0 0.0
        %3097 = vmatprep.subr.mxu0 0.0
        %3098 = vmatpush1.msra.mxu0 0.0
        %3099 = vmatprep.subr.mxu0 0.0
        %3100 = vmatpush1.msra.mxu0 0.0
        %3101 = vmatprep.subr.mxu0 0.0
        %3102 = vmatpush1.msra.mxu0 0.0
        %3103 = vmatprep.subr.mxu0 0.0
        %3104 = vmatpush1.msra.mxu0 0.0
        %3105 = vmatprep.subr.mxu0 0.0
        %3106 = vmatpush1.msra.mxu0 0.0
        %3107 = vmatprep.subr.mxu0 0.0
        %3108 = vmatpush1.msra.mxu0 0.0
        %3109 = vmatprep.subr.mxu0 0.0
        %3110 = vmatpush1.msra.mxu0 0.0
        %3111 = vmatprep.subr.mxu0 0.0
        %3112 = vmatpush1.msra.mxu0 0.0
        %3113 = vmatprep.subr.mxu0 0.0
        %3114 = vmatpush1.msra.mxu0 0.0
        %3115 = vmatprep.subr.mxu0 0.0
        %3116 = vmatpush1.msra.mxu0 0.0
        %3117 = vmatprep.subr.mxu0 0.0
        %3118 = vmatpush1.msra.mxu0 0.0
        %3119 = vmatprep.subr.mxu0 0.0
        %3120 = vmatpush1.msra.mxu0 0.0
        %3121 = vmatprep.subr.mxu0 0.0
        %3122 = vmatpush1.msra.mxu0 0.0
        %3123 = vmatprep.subr.mxu0 0.0
        %3124 = vmatpush1.msra.mxu0 0.0
        %3125 = vmatprep.subr.mxu0 0.0
        %3126 = vmatpush1.msra.mxu0 0.0
        %3127 = vmatprep.subr.mxu0 0.0
        %3128 = vmatpush1.msra.mxu0 0.0
        %3129 = vmatprep.subr.mxu0 0.0
        %3130 = vmatpush1.msra.mxu0 0.0
        %3131 = vmatprep.subr.mxu0 0.0
        %3132 = vmatpush1.msra.mxu0 0.0
        %3133 = vmatprep.subr.mxu0 0.0
        %3134 = vmatpush1.msra.mxu0 0.0
        %3135 = vmatprep.subr.mxu0 0.0
        %3136 = vmatpush1.msra.mxu0 0.0
        %3137 = vmatprep.subr.mxu0 0.0
        %3138 = vmatpush1.msra.mxu0 0.0
        %3139 = vmatprep.subr.mxu0 0.0
        %3140 = vmatpush1.msra.mxu0 0.0
        %3141 = vmatprep.subr.mxu0 0.0
        %3142 = vmatpush1.msra.mxu0 0.0
        %3143 = vmatprep.subr.mxu0 0.0
        %3144 = vmatpush1.msra.mxu0 0.0
        %3145 = vmatprep.subr.mxu0 0.0
        %3146 = vmatpush1.msra.mxu0 0.0
        %3147 = vmatprep.subr.mxu0 0.0
        %3148 = vmatpush1.msra.mxu0 0.0
        %3149 = vmatprep.mubr.f32.mxu0 0.0
        %3150 = vmatmul.mubr.f32.gmra.mrb[0].mxu0 %v1805
        %v3151 = vpop.f32.mrb[0].mxu0
        %v3152 = vadd.f32 %v1750, %v3151
        %v3153 = vpop.f32.mrb[0].mxu0
        %v3154 = vadd.f32 %v1754, %v3153
        %3155 = vdwg.mxu0
        %3156 = vmatprep.subr.mxu0 %v1552
        %3157 = vmatpush1.msra.mxu0 %v1551
        %3158 = vmatprep.subr.mxu0 %v1592
        %3159 = vmatpush1.msra.mxu0 %v1591
        %3160 = vmatprep.subr.mxu0 0.0
        %3161 = vmatpush1.msra.mxu0 0.0
        %3162 = vmatprep.subr.mxu0 0.0
        %3163 = vmatpush1.msra.mxu0 0.0
        %3164 = vmatprep.subr.mxu0 0.0
        %3165 = vmatpush1.msra.mxu0 0.0
        %3166 = vmatprep.subr.mxu0 0.0
        %3167 = vmatpush1.msra.mxu0 0.0
        %3168 = vmatprep.subr.mxu0 0.0
        %3169 = vmatpush1.msra.mxu0 0.0
        %3170 = vmatprep.subr.mxu0 0.0
        %3171 = vmatpush1.msra.mxu0 0.0
        %3172 = vmatprep.subr.mxu0 0.0
        %3173 = vmatpush1.msra.mxu0 0.0
        %3174 = vmatprep.subr.mxu0 0.0
        %3175 = vmatpush1.msra.mxu0 0.0
        %3176 = vmatprep.subr.mxu0 0.0
        %3177 = vmatpush1.msra.mxu0 0.0
        %3178 = vmatprep.subr.mxu0 0.0
        %3179 = vmatpush1.msra.mxu0 0.0
        %3180 = vmatprep.subr.mxu0 0.0
        %3181 = vmatpush1.msra.mxu0 0.0
        %3182 = vmatprep.subr.mxu0 0.0
        %3183 = vmatpush1.msra.mxu0 0.0
        %3184 = vmatprep.subr.mxu0 0.0
        %3185 = vmatpush1.msra.mxu0 0.0
        %3186 = vmatprep.subr.mxu0 0.0
        %3187 = vmatpush1.msra.mxu0 0.0
        %3188 = vmatprep.subr.mxu0 0.0
        %3189 = vmatpush1.msra.mxu0 0.0
        %3190 = vmatprep.subr.mxu0 0.0
        %3191 = vmatpush1.msra.mxu0 0.0
        %3192 = vmatprep.subr.mxu0 0.0
        %3193 = vmatpush1.msra.mxu0 0.0
        %3194 = vmatprep.subr.mxu0 0.0
        %3195 = vmatpush1.msra.mxu0 0.0
        %3196 = vmatprep.subr.mxu0 0.0
        %3197 = vmatpush1.msra.mxu0 0.0
        %3198 = vmatprep.subr.mxu0 0.0
        %3199 = vmatpush1.msra.mxu0 0.0
        %3200 = vmatprep.subr.mxu0 0.0
        %3201 = vmatpush1.msra.mxu0 0.0
        %3202 = vmatprep.subr.mxu0 0.0
        %3203 = vmatpush1.msra.mxu0 0.0
        %3204 = vmatprep.subr.mxu0 0.0
        %3205 = vmatpush1.msra.mxu0 0.0
        %3206 = vmatprep.subr.mxu0 0.0
        %3207 = vmatpush1.msra.mxu0 0.0
        %3208 = vmatprep.subr.mxu0 0.0
        %3209 = vmatpush1.msra.mxu0 0.0
        %3210 = vmatprep.subr.mxu0 0.0
        %3211 = vmatpush1.msra.mxu0 0.0
        %3212 = vmatprep.subr.mxu0 0.0
        %3213 = vmatpush1.msra.mxu0 0.0
        %3214 = vmatprep.subr.mxu0 0.0
        %3215 = vmatpush1.msra.mxu0 0.0
        %3216 = vmatprep.subr.mxu0 0.0
        %3217 = vmatpush1.msra.mxu0 0.0
        %3218 = vmatprep.subr.mxu0 0.0
        %3219 = vmatpush1.msra.mxu0 0.0
        %3220 = vmatprep.mubr.f32.mxu0 0.0
        %3221 = vmatmul.mubr.f32.gmra.mrb[0].mxu0 %v1805
        %v3222 = vpop.f32.mrb[0].mxu0
        %v3223 = vadd.f32 %v1758, %v3222
        %v3224 = vpop.f32.mrb[0].mxu0
        %v3225 = vadd.f32 %v1762, %v3224
        %3226 = vdwg.mxu0
        %3227 = vst [vmem:[%s429] sm:$0xff] %v1874
        %3228 = vst [vmem:[%s429 + $0x8] sm:$0xff] %v1876
        %3229 = vst [vmem:[%s429 + $0x10] sm:$0xff] %v1945
        %3230 = vst [vmem:[%s429 + $0x18] sm:$0xff] %v1947
        %3231 = vst [vmem:[%s429 + $0x20] sm:$0xff] %v2016
        %3232 = vst [vmem:[%s429 + $0x28] sm:$0xff] %v2018
        %3233 = vst [vmem:[%s429 + $0x30] sm:$0xff] %v2087
        %3234 = vst [vmem:[%s429 + $0x38] sm:$0xff] %v2089
        %3235 = vst [vmem:[%s429 + $0x40] sm:$0xff] %v2158
        %3236 = vst [vmem:[%s429 + $0x48] sm:$0xff] %v2160
        %3237 = vst [vmem:[%s429 + $0x50] sm:$0xff] %v2229
        %3238 = vst [vmem:[%s429 + $0x58] sm:$0xff] %v2231
        %3239 = vst [vmem:[%s429 + $0x60] sm:$0xff] %v2300
        %3240 = vst [vmem:[%s429 + $0x68] sm:$0xff] %v2302
        %3241 = vst [vmem:[%s429 + $0x70] sm:$0xff] %v2371
        %3242 = vst [vmem:[%s429 + $0x78] sm:$0xff] %v2373
        %3243 = vst [vmem:[%s429 + $0x80] sm:$0xff] %v2442
        %3244 = vst [vmem:[%s429 + $0x88] sm:$0xff] %v2444
        %3245 = vst [vmem:[%s429 + $0x90] sm:$0xff] %v2513
        %3246 = vst [vmem:[%s429 + $0x98] sm:$0xff] %v2515
        %3247 = vst [vmem:[%s429 + $0xa0] sm:$0xff] %v2584
        %3248 = vst [vmem:[%s429 + $0xa8] sm:$0xff] %v2586
        %3249 = vst [vmem:[%s429 + $0xb0] sm:$0xff] %v2655
        %3250 = vst [vmem:[%s429 + $0xb8] sm:$0xff] %v2657
        %3251 = vst [vmem:[%s429 + $0xc0] sm:$0xff] %v2726
        %3252 = vst [vmem:[%s429 + $0xc8] sm:$0xff] %v2728
        %3253 = vst [vmem:[%s429 + $0xd0] sm:$0xff] %v2797
        %3254 = vst [vmem:[%s429 + $0xd8] sm:$0xff] %v2799
        %3255 = vst [vmem:[%s429 + $0xe0] sm:$0xff] %v2868
        %3256 = vst [vmem:[%s429 + $0xe8] sm:$0xff] %v2870
        %3257 = vst [vmem:[%s429 + $0xf0] sm:$0xff] %v2939
        %3258 = vst [vmem:[%s429 + $0xf8] sm:$0xff] %v2941
        %3259 = vst [vmem:[%s429 + $0x100] sm:$0xff] %v3010
        %3260 = vst [vmem:[%s429 + $0x108] sm:$0xff] %v3012
        %3261 = vst [vmem:[%s429 + $0x110] sm:$0xff] %v3081
        %3262 = vst [vmem:[%s429 + $0x118] sm:$0xff] %v3083
        %3263 = vst [vmem:[%s429 + $0x120] sm:$0xff] %v3152
        %3264 = vst [vmem:[%s429 + $0x128] sm:$0xff] %v3154
        %3265 = vst [vmem:[%s429 + $0x130] sm:$0xff] %v3223
        %3266 = vst [vmem:[%s429 + $0x138] sm:$0xff] %v3225
        %s3267 = sand.u32 %s193, 1
        %s3268 = scalar_lea.sflag [#allocation5], %s3267
        %s3269 = sand.u32 %s193, 1
        %s3270 = smul.addr %s3269, 320
        %s3271 = scalar_lea.vmem [#allocation13], %s3270
        // Predicated region
        $region77: #{tpu_custom_call.1} parent=47 // pred_check
          %p3272 = pneg %p203
        $region78: #{tpu_custom_call.1} parent=47 // pred_check_branch
          %3274 = sbr.rel (%p3272) target = $region80
        $region79: #{tpu_custom_call.1} parent=47 // pred_region
          %s3275 = smul.u32 40, %s28
          %s3276 = ssub.s32 77, %s3275
          %p3277 = scmp.lt.s32.totalorder %s3276, 40
          %s3278 = scalar_select %p3277, %s3276, 40
          %s3279 = smul.u32 128, %s3278
          %s3281 = ssub.s32 5120, %s3279
          %3282 = vsyncadd %s3268, %s3281
          %p3283 = scmp.ne.s32.totalorder 0, %s3279
          %s3284 = smul.addr %s3275, 128
          %s3285 = scalar_lea.hbm %s7, %s3284
          %s3286 = smul.u32 %s3278, 8
          %s3287 = sshll.u32 %s3286, 4
          %s3288 = sshll.u32 %s3271, 4
          %s3289 = int_to_ptr.vmem [resolvable:$true] %s3288
          %3291 = dma.vmem_to_hbm [thread:$0]  (%p3283), %s3289, %s3287, %s3285, %s3268
        $region80: #{tpu_custom_call.1} parent=47 // pred_fallthru
          _
        // Predicated region
        $region81: #{tpu_custom_call.1} parent=47 // pred_check
          %p3292 = pneg %p224
        $region82: #{tpu_custom_call.1} parent=47 // pred_check_branch
          %3294 = sbr.rel (%p3292) target = $region84
        $region83: #{tpu_custom_call.1} parent=47 // pred_region
          %s3296 = ssub.s32 128, 128
          %3297 = vsyncadd [#allocation15], %s3296
          %s3299 = sshll.u32 [#allocation14], 4
          %s3300 = int_to_ptr.vmem [resolvable:$true] %s3299
          %3302 = dma.vmem_to_hbm [thread:$0]  %s3300, 128, %s8, [#allocation15]
        $region84: #{tpu_custom_call.1} parent=47 // pred_fallthru
          _
        // Predicated region
        $region85: #{tpu_custom_call.1} parent=47 // pred_check
          %p3303 = pneg %p245
        $region86: #{tpu_custom_call.1} parent=47 // pred_check_branch
          %3305 = sbr.rel (%p3303) target = $region88
        $region87: #{tpu_custom_call.1} parent=47 // pred_region
          %s3307 = ssub.s32 128, 128
          %3308 = vsyncadd [#allocation15], %s3307
          %s3310 = sshll.u32 [#allocation16], 4
          %s3311 = int_to_ptr.vmem [resolvable:$true] %s3310
          %3313 = dma.vmem_to_hbm [thread:$0]  %s3311, 128, %s9, [#allocation15]
        $region88: #{tpu_custom_call.1} parent=47 // pred_fallthru
          _
        // Predicated region
        $region89: #{tpu_custom_call.1} parent=47 // pred_check
          %p3314 = pneg %p224
        $region90: #{tpu_custom_call.1} parent=47 // pred_check_branch
          %3316 = sbr.rel (%p3314) target = $region92
        $region91: #{tpu_custom_call.1} parent=47 // pred_region
          %3317 = dma.done [#allocation15], 128
        $region92: #{tpu_custom_call.1} parent=47 // pred_fallthru
          _
        // Predicated region
        $region93: #{tpu_custom_call.1} parent=47 // pred_check
          %p3318 = pneg %p245
        $region94: #{tpu_custom_call.1} parent=47 // pred_check_branch
          %3320 = sbr.rel (%p3318) target = $region96
        $region95: #{tpu_custom_call.1} parent=47 // pred_region
          %3321 = dma.done [#allocation15], 128
        $region96: #{tpu_custom_call.1} parent=47 // pred_fallthru
          _
      $region48: #{tpu_custom_call.1} parent=5 // pred_fallthru
        _
      %p3322 = scmp.le.s32.totalorder 2, %s23
      // Predicated region
      $region97: #{tpu_custom_call.1} parent=5 // pred_check
        %p3323 = pneg %p3322
      $region98: #{tpu_custom_call.1} parent=5 // pred_check_branch
        %3325 = sbr.rel (%p3323) target = $region100
      $region99: #{tpu_custom_call.1} parent=5 // pred_region
        %s3326 = ssub.s32 %s23, 2
        // Predicated region
        $region101: #{tpu_custom_call.1} parent=99 // pred_check
          %p3327 = pneg %p209
        $region102: #{tpu_custom_call.1} parent=99 // pred_check_branch
          %3329 = sbr.rel (%p3327) target = $region104
        $region103: #{tpu_custom_call.1} parent=99 // pred_region
          %s3330 = sand.u32 %s194, 1
          %s3331 = scalar_lea.sflag [#allocation5], %s3330
          %s3332 = sand.u32 %s194, 1
          %s3333 = smul.addr %s3332, 320
          %s3334 = scalar_lea.vmem [#allocation13], %s3333
          %3335 = dma.done %s3331, 5120
        $region104: #{tpu_custom_call.1} parent=99 // pred_fallthru
          _
      $region100: #{tpu_custom_call.1} parent=5 // pred_fallthru
        _
    $region6: #{tpu_custom_call.1} parent=1 // loop_footer
      %s27 = sadd.s32 1, %s23
    $region7: #{tpu_custom_call.1} parent=1 // loop_footer_branch
      %22 = sbr.rel target = $region3
    $region8: #{tpu_custom_call.1} parent=1 // loop_exit
      _
    %3336 = vsyncpa [#allocation4], 1
    %s3337 = scalar_lea.sflag [#allocation4], 1
    %3338 = vsyncpa %s3337, 1
    %3339 = vsyncpa [#allocation7], 1
    %3340 = vsyncpa [#allocation10], 1
    %3341 = vsyncpa [#allocation5], 1
    %s3342 = scalar_lea.sflag [#allocation5], 1
    %3343 = vsyncpa %s3342, 1
    %3344 = vsyncpa [#allocation15], 1

</llo_original>
